<compile_context>
chip_gen: v6e
topology: v6e:2x2x1
jax: 0.10.0
libtpu: 0.0.40
codegen_flags: <defaults>
</compile_context>

<pallas_src>
import functools
import math

import jax
import jax.numpy as jnp
from jax import lax
from jax.experimental import pallas as pl
from jax.experimental.pallas import tpu as pltpu  # noqa: F401

D_MODEL = 120
N_HEADS = 8


# ------------------------------------------------------------------
# Single fused forward kernel
# ------------------------------------------------------------------
def _fused_forward_kernel(x_ref, adjw_ref, adjb_ref, wqkv_ref, bqkv_ref,
                          wor_ref, bor_ref, w1_ref, bng_ref, bnb_ref,
                          w2_ref, lng_ref, lnb_ref, w3_ref, o_ref,
                          *, batch, seq, n_heads, d_kp, d_k, eps):
    # ---- adjust_dim: (B*S, 1) -> (B*S, d_pad). K=1 contraction is done as an
    #      outer-product broadcast (avoids a degenerate K=1 MXU matmul).
    x = x_ref[...]                                            # (B*S, 1)
    xa = x * adjw_ref[...] + adjb_ref[...]                    # (B*S, d_pad)

    # ---- fused Q|K|V projection: one 128x384 matmul instead of three 120x120.
    qkv = jnp.dot(xa, wqkv_ref[...], preferred_element_type=jnp.float32)
    qkv = qkv + bqkv_ref[...]                                 # (B*S, 3*d_pad)
    d_pad = n_heads * d_kp
    q = qkv[:, :d_pad]
    k = qkv[:, d_pad:2 * d_pad]
    v = qkv[:, 2 * d_pad:3 * d_pad]

    wor = wor_ref[...]                                        # (1, d_pad): folded w_o @ readjust
    scale = 1.0 / math.sqrt(d_k)                              # real d_k (=15), not padded
    contract_last = (((1,), (1,)), ((), ()))                  # contract last dims, no transpose

    # ---- per-(batch, head) scaled-dot-product attention, unrolled in-body.
    # mask is None in MyModel.forward (and the reference's masked_fill result
    # is discarded anyway), so no masking is applied.
    rows = []
    for b in range(batch):
        r0 = b * seq
        acc = None
        for h in range(n_heads):
            c0 = h * d_kp
            qh = q[r0:r0 + seq, c0:c0 + d_kp]                 # (S, d_kp)
            kh = k[r0:r0 + seq, c0:c0 + d_kp]
            vh = v[r0:r0 + seq, c0:c0 + d_kp]
            s = lax.dot_general(qh, kh, contract_last,
                                preferred_element_type=jnp.float32) * scale  # (S, S)
            m = jnp.max(s, axis=-1, keepdims=True)
            p = jnp.exp(s - m)
            denom = jnp.sum(p, axis=-1, keepdims=True)
            p = p * pl.reciprocal(denom, approx=True)
            # TODO(synk): nn.Dropout(0.15) on the attention probabilities
            # (training mode) is stochastic; implemented as identity here.
            oh = jnp.dot(p, vh, preferred_element_type=jnp.float32)          # (S, d_kp)
            # folded (w_o then readjust_dim) restricted to this head -> (1, S)
            contrib = lax.dot_general(wor[:, c0:c0 + d_kp], oh, contract_last,
                                      preferred_element_type=jnp.float32)
            acc = contrib if acc is None else acc + contrib
        rows.append(acc)
    x2 = jnp.concatenate(rows, axis=0) + bor_ref[...]         # (B, S) == (B, input_dim)

    # ---- MLP tail ------------------------------------------------------
    # MyLinear(in, hid): reference computes `x + bias` but discards it -> no bias.
    h1 = jnp.dot(x2, w1_ref[...], preferred_element_type=jnp.float32)
    # MyBatchNorm (training mode): batch statistics, unbiased=False.
    # TODO(synk): running_mean/running_var update is a stateful side effect that
    # does not affect the forward output; not materialized here.
    bmean = jnp.mean(h1, axis=0, keepdims=True)
    bvar = jnp.mean((h1 - bmean) ** 2, axis=0, keepdims=True)
    hb = bng_ref[...] * (h1 - bmean) * lax.rsqrt(bvar + eps) + bnb_ref[...]
    hb = jnp.maximum(hb, 0.0)                                 # ReLU (seq_layers)
    h2 = jnp.dot(hb, w2_ref[...], preferred_element_type=jnp.float32)
    h2 = jnp.maximum(h2, 0.0)                                 # extra ReLU (isinstance MyLinear)
    # MyLayerNorm over last dim, unbiased=False.
    lmean = jnp.mean(h2, axis=-1, keepdims=True)
    lvar = jnp.mean((h2 - lmean) ** 2, axis=-1, keepdims=True)
    hl = lng_ref[...] * (h2 - lmean) * lax.rsqrt(lvar + eps) + lnb_ref[...]
    hl = jnp.maximum(hl, 0.0)                                 # ReLU (ModuleList)
    o_ref[...] = jnp.dot(hl, w3_ref[...], preferred_element_type=jnp.float32)


# ------------------------------------------------------------------
# Parameter construction (deterministic, synthetic) — "raw" PyTorch-like params
# ------------------------------------------------------------------
def init_params(key, input_dim, hidden_dim, output_dim, d_model=D_MODEL):
    ks = jax.random.split(key, 16)

    def lin(k, fan_in, shape):
        return jax.random.normal(k, shape, jnp.float32) / math.sqrt(max(fan_in, 1))

    p = {}
    # nn.Linear layers (stored pre-transposed: (in, out)); these DO add bias.
    p["adjust_w"] = lin(ks[0], 1, (1, d_model))
    p["adjust_b"] = lin(ks[1], 1, (d_model,))
    p["wq"] = lin(ks[2], d_model, (d_model, d_model)); p["bq"] = lin(ks[3], d_model, (d_model,))
    p["wk"] = lin(ks[4], d_model, (d_model, d_model)); p["bk"] = lin(ks[5], d_model, (d_model,))
    p["wv"] = lin(ks[6], d_model, (d_model, d_model)); p["bv"] = lin(ks[7], d_model, (d_model,))
    p["wo"] = lin(ks[8], d_model, (d_model, d_model)); p["bo"] = lin(ks[9], d_model, (d_model,))
    p["readj_w"] = lin(ks[10], d_model, (d_model, 1))
    p["readj_b"] = lin(ks[11], d_model, (1,))
    # MyLinear layers: randn weights (in, out); bias never applied in the reference forward.
    p["w1"] = jax.random.normal(ks[12], (input_dim, hidden_dim), jnp.float32)
    p["w2"] = jax.random.normal(ks[13], (hidden_dim, hidden_dim), jnp.float32)
    p["w3"] = jax.random.normal(ks[14], (hidden_dim, output_dim), jnp.float32)
    # BN / LN affine params (ones / zeros), kept 2D for VMEM layout.
    p["bn_gamma"] = jnp.ones((1, hidden_dim), jnp.float32)
    p["bn_beta"] = jnp.zeros((1, hidden_dim), jnp.float32)
    p["ln_gamma"] = jnp.ones((1, hidden_dim), jnp.float32)
    p["ln_beta"] = jnp.zeros((1, hidden_dim), jnp.float32)
    return p


# ------------------------------------------------------------------
# One-time kernel-layout prep: head-interleaved zero padding (d_k 15->16,
# d_model 120->128), QKV fusion, and the exact w_o/readjust fold.
# ------------------------------------------------------------------
def prepare_kernel_params(p, d_model=D_MODEL, n_heads=N_HEADS):
    d_k = d_model // n_heads
    d_kp = -(-d_k // 8) * 8                      # 15 -> 16
    d_pad = n_heads * d_kp                       # 128 (lane-aligned)
    pad_idx = jnp.array([(j // d_k) * d_kp + (j % d_k) for j in range(d_model)],
                        dtype=jnp.int32)

    def pad_cols(a):                             # (r, d_model) -> (r, d_pad)
        return jnp.zeros((a.shape[0], d_pad), jnp.float32).at[:, pad_idx].set(a)

    def pad_both(a):                             # (d_model, d_model) -> (d_pad, d_pad)
        out = jnp.zeros((d_pad, d_pad), jnp.float32)
        return out.at[pad_idx[:, None], pad_idx[None, :]].set(a)

    wq_p, wk_p, wv_p = pad_both(p["wq"]), pad_both(p["wk"]), pad_both(p["wv"])
    bq_p = pad_cols(p["bq"].reshape(1, -1))
    bk_p = pad_cols(p["bk"].reshape(1, -1))
    bv_p = pad_cols(p["bv"].reshape(1, -1))
    # Fold: y = (merged @ wo + bo) @ readj_w + readj_b
    #         = merged @ (wo @ readj_w) + (bo @ readj_w + readj_b)
    wor = (p["wo"] @ p["readj_w"]).reshape(1, d_model)
    bor = (p["bo"].reshape(1, d_model) @ p["readj_w"]
           + p["readj_b"].reshape(1, 1)).astype(jnp.float32)
    return {
        "adj_w": pad_cols(p["adjust_w"]),
        "adj_b": pad_cols(p["adjust_b"].reshape(1, -1)),
        "wqkv": jnp.concatenate([wq_p, wk_p, wv_p], axis=1),     # (128, 384)
        "bqkv": jnp.concatenate([bq_p, bk_p, bv_p], axis=1),     # (1, 384)
        "wor": pad_cols(wor),                                    # (1, 128)
        "bor": bor,                                              # (1, 1)
        "w1": p["w1"], "bn_g": p["bn_gamma"], "bn_b": p["bn_beta"],
        "w2": p["w2"], "ln_g": p["ln_gamma"], "ln_b": p["ln_beta"],
        "w3": p["w3"],
    }


# ------------------------------------------------------------------
# Full forward pass of MyModel: a single pallas_call, full-array VMEM blocks.
# ------------------------------------------------------------------
def my_model_forward(x, kp, output_dim, d_model=D_MODEL, n_heads=N_HEADS):
    B, S = x.shape                               # shape_before == (B, input_dim)
    d_k = d_model // n_heads
    d_kp = kp["wor"].shape[1] // n_heads
    x2d = x.reshape(B * S, 1).astype(jnp.float32)
    kernel = functools.partial(
        _fused_forward_kernel, batch=B, seq=S, n_heads=n_heads,
        d_kp=d_kp, d_k=d_k, eps=1e-5)
    return pl.pallas_call(
        kernel,
        out_shape=jax.ShapeDtypeStruct((B, output_dim), jnp.float32),
    )(x2d, kp["adj_w"], kp["adj_b"], kp["wqkv"], kp["bqkv"],
      kp["wor"], kp["bor"], kp["w1"], kp["bn_g"], kp["bn_b"],
      kp["w2"], kp["ln_g"], kp["ln_b"], kp["w3"])


if __name__ == "__main__":
    # small shapes implied by the module: seq length == input_dim
    B, INPUT_DIM, HIDDEN_DIM, OUTPUT_DIM = 2, 16, 32, 8

    key = jax.random.PRNGKey(0)
    kx, kparam = jax.random.split(key)
    x = jax.random.normal(kx, (B, INPUT_DIM), jnp.float32)

    raw_params = init_params(kparam, INPUT_DIM, HIDDEN_DIM, OUTPUT_DIM)
    kernel_params = prepare_kernel_params(raw_params)

    fwd = jax.jit(my_model_forward,
                  static_argnames=("output_dim", "d_model", "n_heads"))
    out = fwd(x, kernel_params, output_dim=OUTPUT_DIM)
    out = jax.block_until_ready(out)
    assert out.shape == (B, OUTPUT_DIM), out.shape
    assert bool(jnp.all(jnp.isfinite(out)))
    print("KERNEL_OK")
</pallas_src>

<mosaic_0001>
module attributes {stable_mosaic.version = 11 : i64} {
  func.func @_fused_forward_kernel(%arg0: memref<32x1xf32, #tpu.memory_space<vmem>>, %arg1: memref<1x128xf32, #tpu.memory_space<vmem>>, %arg2: memref<1x128xf32, #tpu.memory_space<vmem>>, %arg3: memref<128x384xf32, #tpu.memory_space<vmem>>, %arg4: memref<1x384xf32, #tpu.memory_space<vmem>>, %arg5: memref<1x128xf32, #tpu.memory_space<vmem>>, %arg6: memref<1x1xf32, #tpu.memory_space<vmem>>, %arg7: memref<16x32xf32, #tpu.memory_space<vmem>>, %arg8: memref<1x32xf32, #tpu.memory_space<vmem>>, %arg9: memref<1x32xf32, #tpu.memory_space<vmem>>, %arg10: memref<32x32xf32, #tpu.memory_space<vmem>>, %arg11: memref<1x32xf32, #tpu.memory_space<vmem>>, %arg12: memref<1x32xf32, #tpu.memory_space<vmem>>, %arg13: memref<32x8xf32, #tpu.memory_space<vmem>>, %arg14: memref<2x8xf32, #tpu.memory_space<vmem>>) attributes {dimension_semantics = [], scalar_prefetch = 0 : i64, scratch_operands = 0 : i64, tpu.core_type = #tpu.core_type<tc>} {
    %c0 = arith.constant 0 : index
    %c0_0 = arith.constant 0 : index
    %0 = vector.load %arg0[%c0, %c0_0] : memref<32x1xf32, #tpu.memory_space<vmem>>, vector<32x1xf32>
    %c0_1 = arith.constant 0 : index
    %c0_2 = arith.constant 0 : index
    %1 = vector.load %arg1[%c0_1, %c0_2] : memref<1x128xf32, #tpu.memory_space<vmem>>, vector<1x128xf32>
    %2 = vector.broadcast %0 : vector<32x1xf32> to vector<32x128xf32>
    %3 = vector.broadcast %1 : vector<1x128xf32> to vector<32x128xf32>
    %4 = arith.mulf %2, %3 : vector<32x128xf32>
    %c0_3 = arith.constant 0 : index
    %c0_4 = arith.constant 0 : index
    %5 = vector.load %arg2[%c0_3, %c0_4] : memref<1x128xf32, #tpu.memory_space<vmem>>, vector<1x128xf32>
    %6 = vector.broadcast %5 : vector<1x128xf32> to vector<32x128xf32>
    %7 = arith.addf %4, %6 : vector<32x128xf32>
    %c0_5 = arith.constant 0 : index
    %c0_6 = arith.constant 0 : index
    %8 = vector.load %arg3[%c0_5, %c0_6] : memref<128x384xf32, #tpu.memory_space<vmem>>, vector<128x384xf32>
    %cst = arith.constant dense<0.000000e+00> : vector<32x384xf32>
    %9 = tpu.matmul %7, %8, %cst {dimension_numbers = #tpu.dot_dimension_numbers<[1], [0], [0], [1], [0, 0, 1, 1], [], []>} : vector<32x128xf32>, vector<128x384xf32>, vector<32x384xf32> -> vector<32x384xf32>
    %c0_7 = arith.constant 0 : index
    %c0_8 = arith.constant 0 : index
    %10 = vector.load %arg4[%c0_7, %c0_8] : memref<1x384xf32, #tpu.memory_space<vmem>>, vector<1x384xf32>
    %11 = vector.broadcast %10 : vector<1x384xf32> to vector<32x384xf32>
    %12 = arith.addf %9, %11 : vector<32x384xf32>
    %13 = vector.extract_strided_slice %12 {offsets = [0, 0], sizes = [32, 128], strides = [1, 1]} : vector<32x384xf32> to vector<32x128xf32>
    %14 = vector.extract_strided_slice %12 {offsets = [0, 128], sizes = [32, 128], strides = [1, 1]} : vector<32x384xf32> to vector<32x128xf32>
    %15 = vector.extract_strided_slice %12 {offsets = [0, 256], sizes = [32, 128], strides = [1, 1]} : vector<32x384xf32> to vector<32x128xf32>
    %c0_9 = arith.constant 0 : index
    %c0_10 = arith.constant 0 : index
    %16 = vector.load %arg5[%c0_9, %c0_10] : memref<1x128xf32, #tpu.memory_space<vmem>>, vector<1x128xf32>
    %17 = vector.extract_strided_slice %13 {offsets = [0, 0], sizes = [16, 16], strides = [1, 1]} : vector<32x128xf32> to vector<16x16xf32>
    %18 = vector.extract_strided_slice %14 {offsets = [0, 0], sizes = [16, 16], strides = [1, 1]} : vector<32x128xf32> to vector<16x16xf32>
    %19 = vector.extract_strided_slice %15 {offsets = [0, 0], sizes = [16, 16], strides = [1, 1]} : vector<32x128xf32> to vector<16x16xf32>
    %cst_11 = arith.constant dense<0.000000e+00> : vector<16x16xf32>
    %20 = tpu.matmul %17, %18, %cst_11 {dimension_numbers = #tpu.dot_dimension_numbers<[1], [1], [0], [0], [0, 0, 1, 0], [], []>} : vector<16x16xf32>, vector<16x16xf32>, vector<16x16xf32> -> vector<16x16xf32>
    %cst_12 = arith.constant 0.258198887 : f32
    %21 = vector.broadcast %cst_12 : f32 to vector<16x16xf32>
    %22 = arith.mulf %20, %21 : vector<16x16xf32>
    %cst_13 = arith.constant dense<0xFF800000> : vector<16xf32>
    %23 = vector.multi_reduction <maximumf>, %22, %cst_13 [1] : vector<16x16xf32> to vector<16xf32>
    %24 = vector.shape_cast %23 : vector<16xf32> to vector<16x1xf32>
    %25 = vector.broadcast %24 : vector<16x1xf32> to vector<16x16xf32>
    %26 = arith.subf %22, %25 : vector<16x16xf32>
    %27 = math.exp %26 : vector<16x16xf32>
    %cst_14 = arith.constant dense<0.000000e+00> : vector<16xf32>
    %28 = vector.multi_reduction <add>, %27, %cst_14 [1] : vector<16x16xf32> to vector<16xf32>
    %29 = vector.shape_cast %28 : vector<16xf32> to vector<16x1xf32>
    %30 = tpu.reciprocal %29 {approx = true} : vector<16x1xf32> -> vector<16x1xf32>
    %31 = vector.broadcast %30 : vector<16x1xf32> to vector<16x16xf32>
    %32 = arith.mulf %27, %31 : vector<16x16xf32>
    %cst_15 = arith.constant dense<0.000000e+00> : vector<16x16xf32>
    %33 = tpu.matmul %32, %19, %cst_15 {dimension_numbers = #tpu.dot_dimension_numbers<[1], [0], [0], [1], [0, 0, 1, 1], [], []>} : vector<16x16xf32>, vector<16x16xf32>, vector<16x16xf32> -> vector<16x16xf32>
    %34 = vector.extract_strided_slice %16 {offsets = [0, 0], sizes = [1, 16], strides = [1, 1]} : vector<1x128xf32> to vector<1x16xf32>
    %cst_16 = arith.constant dense<0.000000e+00> : vector<1x16xf32>
    %35 = tpu.matmul %34, %33, %cst_16 {dimension_numbers = #tpu.dot_dimension_numbers<[1], [1], [0], [0], [0, 0, 1, 0], [], []>} : vector<1x16xf32>, vector<16x16xf32>, vector<1x16xf32> -> vector<1x16xf32>
    %36 = vector.extract_strided_slice %13 {offsets = [0, 16], sizes = [16, 16], strides = [1, 1]} : vector<32x128xf32> to vector<16x16xf32>
    %37 = vector.extract_strided_slice %14 {offsets = [0, 16], sizes = [16, 16], strides = [1, 1]} : vector<32x128xf32> to vector<16x16xf32>
    %38 = vector.extract_strided_slice %15 {offsets = [0, 16], sizes = [16, 16], strides = [1, 1]} : vector<32x128xf32> to vector<16x16xf32>
    %cst_17 = arith.constant dense<0.000000e+00> : vector<16x16xf32>
    %39 = tpu.matmul %36, %37, %cst_17 {dimension_numbers = #tpu.dot_dimension_numbers<[1], [1], [0], [0], [0, 0, 1, 0], [], []>} : vector<16x16xf32>, vector<16x16xf32>, vector<16x16xf32> -> vector<16x16xf32>
    %cst_18 = arith.constant 0.258198887 : f32
    %40 = vector.broadcast %cst_18 : f32 to vector<16x16xf32>
    %41 = arith.mulf %39, %40 : vector<16x16xf32>
    %cst_19 = arith.constant dense<0xFF800000> : vector<16xf32>
    %42 = vector.multi_reduction <maximumf>, %41, %cst_19 [1] : vector<16x16xf32> to vector<16xf32>
    %43 = vector.shape_cast %42 : vector<16xf32> to vector<16x1xf32>
    %44 = vector.broadcast %43 : vector<16x1xf32> to vector<16x16xf32>
    %45 = arith.subf %41, %44 : vector<16x16xf32>
    %46 = math.exp %45 : vector<16x16xf32>
    %cst_20 = arith.constant dense<0.000000e+00> : vector<16xf32>
    %47 = vector.multi_reduction <add>, %46, %cst_20 [1] : vector<16x16xf32> to vector<16xf32>
    %48 = vector.shape_cast %47 : vector<16xf32> to vector<16x1xf32>
    %49 = tpu.reciprocal %48 {approx = true} : vector<16x1xf32> -> vector<16x1xf32>
    %50 = vector.broadcast %49 : vector<16x1xf32> to vector<16x16xf32>
    %51 = arith.mulf %46, %50 : vector<16x16xf32>
    %cst_21 = arith.constant dense<0.000000e+00> : vector<16x16xf32>
    %52 = tpu.matmul %51, %38, %cst_21 {dimension_numbers = #tpu.dot_dimension_numbers<[1], [0], [0], [1], [0, 0, 1, 1], [], []>} : vector<16x16xf32>, vector<16x16xf32>, vector<16x16xf32> -> vector<16x16xf32>
    %53 = vector.extract_strided_slice %16 {offsets = [0, 16], sizes = [1, 16], strides = [1, 1]} : vector<1x128xf32> to vector<1x16xf32>
    %cst_22 = arith.constant dense<0.000000e+00> : vector<1x16xf32>
    %54 = tpu.matmul %53, %52, %cst_22 {dimension_numbers = #tpu.dot_dimension_numbers<[1], [1], [0], [0], [0, 0, 1, 0], [], []>} : vector<1x16xf32>, vector<16x16xf32>, vector<1x16xf32> -> vector<1x16xf32>
    %55 = arith.addf %35, %54 : vector<1x16xf32>
    %56 = vector.extract_strided_slice %13 {offsets = [0, 32], sizes = [16, 16], strides = [1, 1]} : vector<32x128xf32> to vector<16x16xf32>
    %57 = vector.extract_strided_slice %14 {offsets = [0, 32], sizes = [16, 16], strides = [1, 1]} : vector<32x128xf32> to vector<16x16xf32>
    %58 = vector.extract_strided_slice %15 {offsets = [0, 32], sizes = [16, 16], strides = [1, 1]} : vector<32x128xf32> to vector<16x16xf32>
    %cst_23 = arith.constant dense<0.000000e+00> : vector<16x16xf32>
    %59 = tpu.matmul %56, %57, %cst_23 {dimension_numbers = #tpu.dot_dimension_numbers<[1], [1], [0], [0], [0, 0, 1, 0], [], []>} : vector<16x16xf32>, vector<16x16xf32>, vector<16x16xf32> -> vector<16x16xf32>
    %cst_24 = arith.constant 0.258198887 : f32
    %60 = vector.broadcast %cst_24 : f32 to vector<16x16xf32>
    %61 = arith.mulf %59, %60 : vector<16x16xf32>
    %cst_25 = arith.constant dense<0xFF800000> : vector<16xf32>
    %62 = vector.multi_reduction <maximumf>, %61, %cst_25 [1] : vector<16x16xf32> to vector<16xf32>
    %63 = vector.shape_cast %62 : vector<16xf32> to vector<16x1xf32>
    %64 = vector.broadcast %63 : vector<16x1xf32> to vector<16x16xf32>
    %65 = arith.subf %61, %64 : vector<16x16xf32>
    %66 = math.exp %65 : vector<16x16xf32>
    %cst_26 = arith.constant dense<0.000000e+00> : vector<16xf32>
    %67 = vector.multi_reduction <add>, %66, %cst_26 [1] : vector<16x16xf32> to vector<16xf32>
    %68 = vector.shape_cast %67 : vector<16xf32> to vector<16x1xf32>
    %69 = tpu.reciprocal %68 {approx = true} : vector<16x1xf32> -> vector<16x1xf32>
    %70 = vector.broadcast %69 : vector<16x1xf32> to vector<16x16xf32>
    %71 = arith.mulf %66, %70 : vector<16x16xf32>
    %cst_27 = arith.constant dense<0.000000e+00> : vector<16x16xf32>
    %72 = tpu.matmul %71, %58, %cst_27 {dimension_numbers = #tpu.dot_dimension_numbers<[1], [0], [0], [1], [0, 0, 1, 1], [], []>} : vector<16x16xf32>, vector<16x16xf32>, vector<16x16xf32> -> vector<16x16xf32>
    %73 = vector.extract_strided_slice %16 {offsets = [0, 32], sizes = [1, 16], strides = [1, 1]} : vector<1x128xf32> to vector<1x16xf32>
    %cst_28 = arith.constant dense<0.000000e+00> : vector<1x16xf32>
    %74 = tpu.matmul %73, %72, %cst_28 {dimension_numbers = #tpu.dot_dimension_numbers<[1], [1], [0], [0], [0, 0, 1, 0], [], []>} : vector<1x16xf32>, vector<16x16xf32>, vector<1x16xf32> -> vector<1x16xf32>
    %75 = arith.addf %55, %74 : vector<1x16xf32>
    %76 = vector.extract_strided_slice %13 {offsets = [0, 48], sizes = [16, 16], strides = [1, 1]} : vector<32x128xf32> to vector<16x16xf32>
    %77 = vector.extract_strided_slice %14 {offsets = [0, 48], sizes = [16, 16], strides = [1, 1]} : vector<32x128xf32> to vector<16x16xf32>
    %78 = vector.extract_strided_slice %15 {offsets = [0, 48], sizes = [16, 16], strides = [1, 1]} : vector<32x128xf32> to vector<16x16xf32>
    %cst_29 = arith.constant dense<0.000000e+00> : vector<16x16xf32>
    %79 = tpu.matmul %76, %77, %cst_29 {dimension_numbers = #tpu.dot_dimension_numbers<[1], [1], [0], [0], [0, 0, 1, 0], [], []>} : vector<16x16xf32>, vector<16x16xf32>, vector<16x16xf32> -> vector<16x16xf32>
    %cst_30 = arith.constant 0.258198887 : f32
    %80 = vector.broadcast %cst_30 : f32 to vector<16x16xf32>
    %81 = arith.mulf %79, %80 : vector<16x16xf32>
    %cst_31 = arith.constant dense<0xFF800000> : vector<16xf32>
    %82 = vector.multi_reduction <maximumf>, %81, %cst_31 [1] : vector<16x16xf32> to vector<16xf32>
    %83 = vector.shape_cast %82 : vector<16xf32> to vector<16x1xf32>
    %84 = vector.broadcast %83 : vector<16x1xf32> to vector<16x16xf32>
    %85 = arith.subf %81, %84 : vector<16x16xf32>
    %86 = math.exp %85 : vector<16x16xf32>
    %cst_32 = arith.constant dense<0.000000e+00> : vector<16xf32>
    %87 = vector.multi_reduction <add>, %86, %cst_32 [1] : vector<16x16xf32> to vector<16xf32>
    %88 = vector.shape_cast %87 : vector<16xf32> to vector<16x1xf32>
    %89 = tpu.reciprocal %88 {approx = true} : vector<16x1xf32> -> vector<16x1xf32>
    %90 = vector.broadcast %89 : vector<16x1xf32> to vector<16x16xf32>
    %91 = arith.mulf %86, %90 : vector<16x16xf32>
    %cst_33 = arith.constant dense<0.000000e+00> : vector<16x16xf32>
    %92 = tpu.matmul %91, %78, %cst_33 {dimension_numbers = #tpu.dot_dimension_numbers<[1], [0], [0], [1], [0, 0, 1, 1], [], []>} : vector<16x16xf32>, vector<16x16xf32>, vector<16x16xf32> -> vector<16x16xf32>
    %93 = vector.extract_strided_slice %16 {offsets = [0, 48], sizes = [1, 16], strides = [1, 1]} : vector<1x128xf32> to vector<1x16xf32>
    %cst_34 = arith.constant dense<0.000000e+00> : vector<1x16xf32>
    %94 = tpu.matmul %93, %92, %cst_34 {dimension_numbers = #tpu.dot_dimension_numbers<[1], [1], [0], [0], [0, 0, 1, 0], [], []>} : vector<1x16xf32>, vector<16x16xf32>, vector<1x16xf32> -> vector<1x16xf32>
    %95 = arith.addf %75, %94 : vector<1x16xf32>
    %96 = vector.extract_strided_slice %13 {offsets = [0, 64], sizes = [16, 16], strides = [1, 1]} : vector<32x128xf32> to vector<16x16xf32>
    %97 = vector.extract_strided_slice %14 {offsets = [0, 64], sizes = [16, 16], strides = [1, 1]} : vector<32x128xf32> to vector<16x16xf32>
    %98 = vector.extract_strided_slice %15 {offsets = [0, 64], sizes = [16, 16], strides = [1, 1]} : vector<32x128xf32> to vector<16x16xf32>
    %cst_35 = arith.constant dense<0.000000e+00> : vector<16x16xf32>
    %99 = tpu.matmul %96, %97, %cst_35 {dimension_numbers = #tpu.dot_dimension_numbers<[1], [1], [0], [0], [0, 0, 1, 0], [], []>} : vector<16x16xf32>, vector<16x16xf32>, vector<16x16xf32> -> vector<16x16xf32>
    %cst_36 = arith.constant 0.258198887 : f32
    %100 = vector.broadcast %cst_36 : f32 to vector<16x16xf32>
    %101 = arith.mulf %99, %100 : vector<16x16xf32>
    %cst_37 = arith.constant dense<0xFF800000> : vector<16xf32>
    %102 = vector.multi_reduction <maximumf>, %101, %cst_37 [1] : vector<16x16xf32> to vector<16xf32>
    %103 = vector.shape_cast %102 : vector<16xf32> to vector<16x1xf32>
    %104 = vector.broadcast %103 : vector<16x1xf32> to vector<16x16xf32>
    %105 = arith.subf %101, %104 : vector<16x16xf32>
    %106 = math.exp %105 : vector<16x16xf32>
    %cst_38 = arith.constant dense<0.000000e+00> : vector<16xf32>
    %107 = vector.multi_reduction <add>, %106, %cst_38 [1] : vector<16x16xf32> to vector<16xf32>
    %108 = vector.shape_cast %107 : vector<16xf32> to vector<16x1xf32>
    %109 = tpu.reciprocal %108 {approx = true} : vector<16x1xf32> -> vector<16x1xf32>
    %110 = vector.broadcast %109 : vector<16x1xf32> to vector<16x16xf32>
    %111 = arith.mulf %106, %110 : vector<16x16xf32>
    %cst_39 = arith.constant dense<0.000000e+00> : vector<16x16xf32>
    %112 = tpu.matmul %111, %98, %cst_39 {dimension_numbers = #tpu.dot_dimension_numbers<[1], [0], [0], [1], [0, 0, 1, 1], [], []>} : vector<16x16xf32>, vector<16x16xf32>, vector<16x16xf32> -> vector<16x16xf32>
    %113 = vector.extract_strided_slice %16 {offsets = [0, 64], sizes = [1, 16], strides = [1, 1]} : vector<1x128xf32> to vector<1x16xf32>
    %cst_40 = arith.constant dense<0.000000e+00> : vector<1x16xf32>
    %114 = tpu.matmul %113, %112, %cst_40 {dimension_numbers = #tpu.dot_dimension_numbers<[1], [1], [0], [0], [0, 0, 1, 0], [], []>} : vector<1x16xf32>, vector<16x16xf32>, vector<1x16xf32> -> vector<1x16xf32>
    %115 = arith.addf %95, %114 : vector<1x16xf32>
    %116 = vector.extract_strided_slice %13 {offsets = [0, 80], sizes = [16, 16], strides = [1, 1]} : vector<32x128xf32> to vector<16x16xf32>
    %117 = vector.extract_strided_slice %14 {offsets = [0, 80], sizes = [16, 16], strides = [1, 1]} : vector<32x128xf32> to vector<16x16xf32>
    %118 = vector.extract_strided_slice %15 {offsets = [0, 80], sizes = [16, 16], strides = [1, 1]} : vector<32x128xf32> to vector<16x16xf32>
    %cst_41 = arith.constant dense<0.000000e+00> : vector<16x16xf32>
    %119 = tpu.matmul %116, %117, %cst_41 {dimension_numbers = #tpu.dot_dimension_numbers<[1], [1], [0], [0], [0, 0, 1, 0], [], []>} : vector<16x16xf32>, vector<16x16xf32>, vector<16x16xf32> -> vector<16x16xf32>
    %cst_42 = arith.constant 0.258198887 : f32
    %120 = vector.broadcast %cst_42 : f32 to vector<16x16xf32>
    %121 = arith.mulf %119, %120 : vector<16x16xf32>
    %cst_43 = arith.constant dense<0xFF800000> : vector<16xf32>
    %122 = vector.multi_reduction <maximumf>, %121, %cst_43 [1] : vector<16x16xf32> to vector<16xf32>
    %123 = vector.shape_cast %122 : vector<16xf32> to vector<16x1xf32>
    %124 = vector.broadcast %123 : vector<16x1xf32> to vector<16x16xf32>
    %125 = arith.subf %121, %124 : vector<16x16xf32>
    %126 = math.exp %125 : vector<16x16xf32>
    %cst_44 = arith.constant dense<0.000000e+00> : vector<16xf32>
    %127 = vector.multi_reduction <add>, %126, %cst_44 [1] : vector<16x16xf32> to vector<16xf32>
    %128 = vector.shape_cast %127 : vector<16xf32> to vector<16x1xf32>
    %129 = tpu.reciprocal %128 {approx = true} : vector<16x1xf32> -> vector<16x1xf32>
    %130 = vector.broadcast %129 : vector<16x1xf32> to vector<16x16xf32>
    %131 = arith.mulf %126, %130 : vector<16x16xf32>
    %cst_45 = arith.constant dense<0.000000e+00> : vector<16x16xf32>
    %132 = tpu.matmul %131, %118, %cst_45 {dimension_numbers = #tpu.dot_dimension_numbers<[1], [0], [0], [1], [0, 0, 1, 1], [], []>} : vector<16x16xf32>, vector<16x16xf32>, vector<16x16xf32> -> vector<16x16xf32>
    %133 = vector.extract_strided_slice %16 {offsets = [0, 80], sizes = [1, 16], strides = [1, 1]} : vector<1x128xf32> to vector<1x16xf32>
    %cst_46 = arith.constant dense<0.000000e+00> : vector<1x16xf32>
    %134 = tpu.matmul %133, %132, %cst_46 {dimension_numbers = #tpu.dot_dimension_numbers<[1], [1], [0], [0], [0, 0, 1, 0], [], []>} : vector<1x16xf32>, vector<16x16xf32>, vector<1x16xf32> -> vector<1x16xf32>
    %135 = arith.addf %115, %134 : vector<1x16xf32>
    %136 = vector.extract_strided_slice %13 {offsets = [0, 96], sizes = [16, 16], strides = [1, 1]} : vector<32x128xf32> to vector<16x16xf32>
    %137 = vector.extract_strided_slice %14 {offsets = [0, 96], sizes = [16, 16], strides = [1, 1]} : vector<32x128xf32> to vector<16x16xf32>
    %138 = vector.extract_strided_slice %15 {offsets = [0, 96], sizes = [16, 16], strides = [1, 1]} : vector<32x128xf32> to vector<16x16xf32>
    %cst_47 = arith.constant dense<0.000000e+00> : vector<16x16xf32>
    %139 = tpu.matmul %136, %137, %cst_47 {dimension_numbers = #tpu.dot_dimension_numbers<[1], [1], [0], [0], [0, 0, 1, 0], [], []>} : vector<16x16xf32>, vector<16x16xf32>, vector<16x16xf32> -> vector<16x16xf32>
    %cst_48 = arith.constant 0.258198887 : f32
    %140 = vector.broadcast %cst_48 : f32 to vector<16x16xf32>
    %141 = arith.mulf %139, %140 : vector<16x16xf32>
    %cst_49 = arith.constant dense<0xFF800000> : vector<16xf32>
    %142 = vector.multi_reduction <maximumf>, %141, %cst_49 [1] : vector<16x16xf32> to vector<16xf32>
    %143 = vector.shape_cast %142 : vector<16xf32> to vector<16x1xf32>
    %144 = vector.broadcast %143 : vector<16x1xf32> to vector<16x16xf32>
    %145 = arith.subf %141, %144 : vector<16x16xf32>
    %146 = math.exp %145 : vector<16x16xf32>
    %cst_50 = arith.constant dense<0.000000e+00> : vector<16xf32>
    %147 = vector.multi_reduction <add>, %146, %cst_50 [1] : vector<16x16xf32> to vector<16xf32>
    %148 = vector.shape_cast %147 : vector<16xf32> to vector<16x1xf32>
    %149 = tpu.reciprocal %148 {approx = true} : vector<16x1xf32> -> vector<16x1xf32>
    %150 = vector.broadcast %149 : vector<16x1xf32> to vector<16x16xf32>
    %151 = arith.mulf %146, %150 : vector<16x16xf32>
    %cst_51 = arith.constant dense<0.000000e+00> : vector<16x16xf32>
    %152 = tpu.matmul %151, %138, %cst_51 {dimension_numbers = #tpu.dot_dimension_numbers<[1], [0], [0], [1], [0, 0, 1, 1], [], []>} : vector<16x16xf32>, vector<16x16xf32>, vector<16x16xf32> -> vector<16x16xf32>
    %153 = vector.extract_strided_slice %16 {offsets = [0, 96], sizes = [1, 16], strides = [1, 1]} : vector<1x128xf32> to vector<1x16xf32>
    %cst_52 = arith.constant dense<0.000000e+00> : vector<1x16xf32>
    %154 = tpu.matmul %153, %152, %cst_52 {dimension_numbers = #tpu.dot_dimension_numbers<[1], [1], [0], [0], [0, 0, 1, 0], [], []>} : vector<1x16xf32>, vector<16x16xf32>, vector<1x16xf32> -> vector<1x16xf32>
    %155 = arith.addf %135, %154 : vector<1x16xf32>
    %156 = vector.extract_strided_slice %13 {offsets = [0, 112], sizes = [16, 16], strides = [1, 1]} : vector<32x128xf32> to vector<16x16xf32>
    %157 = vector.extract_strided_slice %14 {offsets = [0, 112], sizes = [16, 16], strides = [1, 1]} : vector<32x128xf32> to vector<16x16xf32>
    %158 = vector.extract_strided_slice %15 {offsets = [0, 112], sizes = [16, 16], strides = [1, 1]} : vector<32x128xf32> to vector<16x16xf32>
    %cst_53 = arith.constant dense<0.000000e+00> : vector<16x16xf32>
    %159 = tpu.matmul %156, %157, %cst_53 {dimension_numbers = #tpu.dot_dimension_numbers<[1], [1], [0], [0], [0, 0, 1, 0], [], []>} : vector<16x16xf32>, vector<16x16xf32>, vector<16x16xf32> -> vector<16x16xf32>
    %cst_54 = arith.constant 0.258198887 : f32
    %160 = vector.broadcast %cst_54 : f32 to vector<16x16xf32>
    %161 = arith.mulf %159, %160 : vector<16x16xf32>
    %cst_55 = arith.constant dense<0xFF800000> : vector<16xf32>
    %162 = vector.multi_reduction <maximumf>, %161, %cst_55 [1] : vector<16x16xf32> to vector<16xf32>
    %163 = vector.shape_cast %162 : vector<16xf32> to vector<16x1xf32>
    %164 = vector.broadcast %163 : vector<16x1xf32> to vector<16x16xf32>
    %165 = arith.subf %161, %164 : vector<16x16xf32>
    %166 = math.exp %165 : vector<16x16xf32>
    %cst_56 = arith.constant dense<0.000000e+00> : vector<16xf32>
    %167 = vector.multi_reduction <add>, %166, %cst_56 [1] : vector<16x16xf32> to vector<16xf32>
    %168 = vector.shape_cast %167 : vector<16xf32> to vector<16x1xf32>
    %169 = tpu.reciprocal %168 {approx = true} : vector<16x1xf32> -> vector<16x1xf32>
    %170 = vector.broadcast %169 : vector<16x1xf32> to vector<16x16xf32>
    %171 = arith.mulf %166, %170 : vector<16x16xf32>
    %cst_57 = arith.constant dense<0.000000e+00> : vector<16x16xf32>
    %172 = tpu.matmul %171, %158, %cst_57 {dimension_numbers = #tpu.dot_dimension_numbers<[1], [0], [0], [1], [0, 0, 1, 1], [], []>} : vector<16x16xf32>, vector<16x16xf32>, vector<16x16xf32> -> vector<16x16xf32>
    %173 = vector.extract_strided_slice %16 {offsets = [0, 112], sizes = [1, 16], strides = [1, 1]} : vector<1x128xf32> to vector<1x16xf32>
    %cst_58 = arith.constant dense<0.000000e+00> : vector<1x16xf32>
    %174 = tpu.matmul %173, %172, %cst_58 {dimension_numbers = #tpu.dot_dimension_numbers<[1], [1], [0], [0], [0, 0, 1, 0], [], []>} : vector<1x16xf32>, vector<16x16xf32>, vector<1x16xf32> -> vector<1x16xf32>
    %175 = arith.addf %155, %174 : vector<1x16xf32>
    %176 = vector.extract_strided_slice %13 {offsets = [16, 0], sizes = [16, 16], strides = [1, 1]} : vector<32x128xf32> to vector<16x16xf32>
    %177 = vector.extract_strided_slice %14 {offsets = [16, 0], sizes = [16, 16], strides = [1, 1]} : vector<32x128xf32> to vector<16x16xf32>
    %178 = vector.extract_strided_slice %15 {offsets = [16, 0], sizes = [16, 16], strides = [1, 1]} : vector<32x128xf32> to vector<16x16xf32>
    %cst_59 = arith.constant dense<0.000000e+00> : vector<16x16xf32>
    %179 = tpu.matmul %176, %177, %cst_59 {dimension_numbers = #tpu.dot_dimension_numbers<[1], [1], [0], [0], [0, 0, 1, 0], [], []>} : vector<16x16xf32>, vector<16x16xf32>, vector<16x16xf32> -> vector<16x16xf32>
    %cst_60 = arith.constant 0.258198887 : f32
    %180 = vector.broadcast %cst_60 : f32 to vector<16x16xf32>
    %181 = arith.mulf %179, %180 : vector<16x16xf32>
    %cst_61 = arith.constant dense<0xFF800000> : vector<16xf32>
    %182 = vector.multi_reduction <maximumf>, %181, %cst_61 [1] : vector<16x16xf32> to vector<16xf32>
    %183 = vector.shape_cast %182 : vector<16xf32> to vector<16x1xf32>
    %184 = vector.broadcast %183 : vector<16x1xf32> to vector<16x16xf32>
    %185 = arith.subf %181, %184 : vector<16x16xf32>
    %186 = math.exp %185 : vector<16x16xf32>
    %cst_62 = arith.constant dense<0.000000e+00> : vector<16xf32>
    %187 = vector.multi_reduction <add>, %186, %cst_62 [1] : vector<16x16xf32> to vector<16xf32>
    %188 = vector.shape_cast %187 : vector<16xf32> to vector<16x1xf32>
    %189 = tpu.reciprocal %188 {approx = true} : vector<16x1xf32> -> vector<16x1xf32>
    %190 = vector.broadcast %189 : vector<16x1xf32> to vector<16x16xf32>
    %191 = arith.mulf %186, %190 : vector<16x16xf32>
    %cst_63 = arith.constant dense<0.000000e+00> : vector<16x16xf32>
    %192 = tpu.matmul %191, %178, %cst_63 {dimension_numbers = #tpu.dot_dimension_numbers<[1], [0], [0], [1], [0, 0, 1, 1], [], []>} : vector<16x16xf32>, vector<16x16xf32>, vector<16x16xf32> -> vector<16x16xf32>
    %193 = vector.extract_strided_slice %16 {offsets = [0, 0], sizes = [1, 16], strides = [1, 1]} : vector<1x128xf32> to vector<1x16xf32>
    %cst_64 = arith.constant dense<0.000000e+00> : vector<1x16xf32>
    %194 = tpu.matmul %193, %192, %cst_64 {dimension_numbers = #tpu.dot_dimension_numbers<[1], [1], [0], [0], [0, 0, 1, 0], [], []>} : vector<1x16xf32>, vector<16x16xf32>, vector<1x16xf32> -> vector<1x16xf32>
    %195 = vector.extract_strided_slice %13 {offsets = [16, 16], sizes = [16, 16], strides = [1, 1]} : vector<32x128xf32> to vector<16x16xf32>
    %196 = vector.extract_strided_slice %14 {offsets = [16, 16], sizes = [16, 16], strides = [1, 1]} : vector<32x128xf32> to vector<16x16xf32>
    %197 = vector.extract_strided_slice %15 {offsets = [16, 16], sizes = [16, 16], strides = [1, 1]} : vector<32x128xf32> to vector<16x16xf32>
    %cst_65 = arith.constant dense<0.000000e+00> : vector<16x16xf32>
    %198 = tpu.matmul %195, %196, %cst_65 {dimension_numbers = #tpu.dot_dimension_numbers<[1], [1], [0], [0], [0, 0, 1, 0], [], []>} : vector<16x16xf32>, vector<16x16xf32>, vector<16x16xf32> -> vector<16x16xf32>
    %cst_66 = arith.constant 0.258198887 : f32
    %199 = vector.broadcast %cst_66 : f32 to vector<16x16xf32>
    %200 = arith.mulf %198, %199 : vector<16x16xf32>
    %cst_67 = arith.constant dense<0xFF800000> : vector<16xf32>
    %201 = vector.multi_reduction <maximumf>, %200, %cst_67 [1] : vector<16x16xf32> to vector<16xf32>
    %202 = vector.shape_cast %201 : vector<16xf32> to vector<16x1xf32>
    %203 = vector.broadcast %202 : vector<16x1xf32> to vector<16x16xf32>
    %204 = arith.subf %200, %203 : vector<16x16xf32>
    %205 = math.exp %204 : vector<16x16xf32>
    %cst_68 = arith.constant dense<0.000000e+00> : vector<16xf32>
    %206 = vector.multi_reduction <add>, %205, %cst_68 [1] : vector<16x16xf32> to vector<16xf32>
    %207 = vector.shape_cast %206 : vector<16xf32> to vector<16x1xf32>
    %208 = tpu.reciprocal %207 {approx = true} : vector<16x1xf32> -> vector<16x1xf32>
    %209 = vector.broadcast %208 : vector<16x1xf32> to vector<16x16xf32>
    %210 = arith.mulf %205, %209 : vector<16x16xf32>
    %cst_69 = arith.constant dense<0.000000e+00> : vector<16x16xf32>
    %211 = tpu.matmul %210, %197, %cst_69 {dimension_numbers = #tpu.dot_dimension_numbers<[1], [0], [0], [1], [0, 0, 1, 1], [], []>} : vector<16x16xf32>, vector<16x16xf32>, vector<16x16xf32> -> vector<16x16xf32>
    %212 = vector.extract_strided_slice %16 {offsets = [0, 16], sizes = [1, 16], strides = [1, 1]} : vector<1x128xf32> to vector<1x16xf32>
    %cst_70 = arith.constant dense<0.000000e+00> : vector<1x16xf32>
    %213 = tpu.matmul %212, %211, %cst_70 {dimension_numbers = #tpu.dot_dimension_numbers<[1], [1], [0], [0], [0, 0, 1, 0], [], []>} : vector<1x16xf32>, vector<16x16xf32>, vector<1x16xf32> -> vector<1x16xf32>
    %214 = arith.addf %194, %213 : vector<1x16xf32>
    %215 = vector.extract_strided_slice %13 {offsets = [16, 32], sizes = [16, 16], strides = [1, 1]} : vector<32x128xf32> to vector<16x16xf32>
    %216 = vector.extract_strided_slice %14 {offsets = [16, 32], sizes = [16, 16], strides = [1, 1]} : vector<32x128xf32> to vector<16x16xf32>
    %217 = vector.extract_strided_slice %15 {offsets = [16, 32], sizes = [16, 16], strides = [1, 1]} : vector<32x128xf32> to vector<16x16xf32>
    %cst_71 = arith.constant dense<0.000000e+00> : vector<16x16xf32>
    %218 = tpu.matmul %215, %216, %cst_71 {dimension_numbers = #tpu.dot_dimension_numbers<[1], [1], [0], [0], [0, 0, 1, 0], [], []>} : vector<16x16xf32>, vector<16x16xf32>, vector<16x16xf32> -> vector<16x16xf32>
    %cst_72 = arith.constant 0.258198887 : f32
    %219 = vector.broadcast %cst_72 : f32 to vector<16x16xf32>
    %220 = arith.mulf %218, %219 : vector<16x16xf32>
    %cst_73 = arith.constant dense<0xFF800000> : vector<16xf32>
    %221 = vector.multi_reduction <maximumf>, %220, %cst_73 [1] : vector<16x16xf32> to vector<16xf32>
    %222 = vector.shape_cast %221 : vector<16xf32> to vector<16x1xf32>
    %223 = vector.broadcast %222 : vector<16x1xf32> to vector<16x16xf32>
    %224 = arith.subf %220, %223 : vector<16x16xf32>
    %225 = math.exp %224 : vector<16x16xf32>
    %cst_74 = arith.constant dense<0.000000e+00> : vector<16xf32>
    %226 = vector.multi_reduction <add>, %225, %cst_74 [1] : vector<16x16xf32> to vector<16xf32>
    %227 = vector.shape_cast %226 : vector<16xf32> to vector<16x1xf32>
    %228 = tpu.reciprocal %227 {approx = true} : vector<16x1xf32> -> vector<16x1xf32>
    %229 = vector.broadcast %228 : vector<16x1xf32> to vector<16x16xf32>
    %230 = arith.mulf %225, %229 : vector<16x16xf32>
    %cst_75 = arith.constant dense<0.000000e+00> : vector<16x16xf32>
    %231 = tpu.matmul %230, %217, %cst_75 {dimension_numbers = #tpu.dot_dimension_numbers<[1], [0], [0], [1], [0, 0, 1, 1], [], []>} : vector<16x16xf32>, vector<16x16xf32>, vector<16x16xf32> -> vector<16x16xf32>
    %232 = vector.extract_strided_slice %16 {offsets = [0, 32], sizes = [1, 16], strides = [1, 1]} : vector<1x128xf32> to vector<1x16xf32>
    %cst_76 = arith.constant dense<0.000000e+00> : vector<1x16xf32>
    %233 = tpu.matmul %232, %231, %cst_76 {dimension_numbers = #tpu.dot_dimension_numbers<[1], [1], [0], [0], [0, 0, 1, 0], [], []>} : vector<1x16xf32>, vector<16x16xf32>, vector<1x16xf32> -> vector<1x16xf32>
    %234 = arith.addf %214, %233 : vector<1x16xf32>
    %235 = vector.extract_strided_slice %13 {offsets = [16, 48], sizes = [16, 16], strides = [1, 1]} : vector<32x128xf32> to vector<16x16xf32>
    %236 = vector.extract_strided_slice %14 {offsets = [16, 48], sizes = [16, 16], strides = [1, 1]} : vector<32x128xf32> to vector<16x16xf32>
    %237 = vector.extract_strided_slice %15 {offsets = [16, 48], sizes = [16, 16], strides = [1, 1]} : vector<32x128xf32> to vector<16x16xf32>
    %cst_77 = arith.constant dense<0.000000e+00> : vector<16x16xf32>
    %238 = tpu.matmul %235, %236, %cst_77 {dimension_numbers = #tpu.dot_dimension_numbers<[1], [1], [0], [0], [0, 0, 1, 0], [], []>} : vector<16x16xf32>, vector<16x16xf32>, vector<16x16xf32> -> vector<16x16xf32>
    %cst_78 = arith.constant 0.258198887 : f32
    %239 = vector.broadcast %cst_78 : f32 to vector<16x16xf32>
    %240 = arith.mulf %238, %239 : vector<16x16xf32>
    %cst_79 = arith.constant dense<0xFF800000> : vector<16xf32>
    %241 = vector.multi_reduction <maximumf>, %240, %cst_79 [1] : vector<16x16xf32> to vector<16xf32>
    %242 = vector.shape_cast %241 : vector<16xf32> to vector<16x1xf32>
    %243 = vector.broadcast %242 : vector<16x1xf32> to vector<16x16xf32>
    %244 = arith.subf %240, %243 : vector<16x16xf32>
    %245 = math.exp %244 : vector<16x16xf32>
    %cst_80 = arith.constant dense<0.000000e+00> : vector<16xf32>
    %246 = vector.multi_reduction <add>, %245, %cst_80 [1] : vector<16x16xf32> to vector<16xf32>
    %247 = vector.shape_cast %246 : vector<16xf32> to vector<16x1xf32>
    %248 = tpu.reciprocal %247 {approx = true} : vector<16x1xf32> -> vector<16x1xf32>
    %249 = vector.broadcast %248 : vector<16x1xf32> to vector<16x16xf32>
    %250 = arith.mulf %245, %249 : vector<16x16xf32>
    %cst_81 = arith.constant dense<0.000000e+00> : vector<16x16xf32>
    %251 = tpu.matmul %250, %237, %cst_81 {dimension_numbers = #tpu.dot_dimension_numbers<[1], [0], [0], [1], [0, 0, 1, 1], [], []>} : vector<16x16xf32>, vector<16x16xf32>, vector<16x16xf32> -> vector<16x16xf32>
    %252 = vector.extract_strided_slice %16 {offsets = [0, 48], sizes = [1, 16], strides = [1, 1]} : vector<1x128xf32> to vector<1x16xf32>
    %cst_82 = arith.constant dense<0.000000e+00> : vector<1x16xf32>
    %253 = tpu.matmul %252, %251, %cst_82 {dimension_numbers = #tpu.dot_dimension_numbers<[1], [1], [0], [0], [0, 0, 1, 0], [], []>} : vector<1x16xf32>, vector<16x16xf32>, vector<1x16xf32> -> vector<1x16xf32>
    %254 = arith.addf %234, %253 : vector<1x16xf32>
    %255 = vector.extract_strided_slice %13 {offsets = [16, 64], sizes = [16, 16], strides = [1, 1]} : vector<32x128xf32> to vector<16x16xf32>
    %256 = vector.extract_strided_slice %14 {offsets = [16, 64], sizes = [16, 16], strides = [1, 1]} : vector<32x128xf32> to vector<16x16xf32>
    %257 = vector.extract_strided_slice %15 {offsets = [16, 64], sizes = [16, 16], strides = [1, 1]} : vector<32x128xf32> to vector<16x16xf32>
    %cst_83 = arith.constant dense<0.000000e+00> : vector<16x16xf32>
    %258 = tpu.matmul %255, %256, %cst_83 {dimension_numbers = #tpu.dot_dimension_numbers<[1], [1], [0], [0], [0, 0, 1, 0], [], []>} : vector<16x16xf32>, vector<16x16xf32>, vector<16x16xf32> -> vector<16x16xf32>
    %cst_84 = arith.constant 0.258198887 : f32
    %259 = vector.broadcast %cst_84 : f32 to vector<16x16xf32>
    %260 = arith.mulf %258, %259 : vector<16x16xf32>
    %cst_85 = arith.constant dense<0xFF800000> : vector<16xf32>
    %261 = vector.multi_reduction <maximumf>, %260, %cst_85 [1] : vector<16x16xf32> to vector<16xf32>
    %262 = vector.shape_cast %261 : vector<16xf32> to vector<16x1xf32>
    %263 = vector.broadcast %262 : vector<16x1xf32> to vector<16x16xf32>
    %264 = arith.subf %260, %263 : vector<16x16xf32>
    %265 = math.exp %264 : vector<16x16xf32>
    %cst_86 = arith.constant dense<0.000000e+00> : vector<16xf32>
    %266 = vector.multi_reduction <add>, %265, %cst_86 [1] : vector<16x16xf32> to vector<16xf32>
    %267 = vector.shape_cast %266 : vector<16xf32> to vector<16x1xf32>
    %268 = tpu.reciprocal %267 {approx = true} : vector<16x1xf32> -> vector<16x1xf32>
    %269 = vector.broadcast %268 : vector<16x1xf32> to vector<16x16xf32>
    %270 = arith.mulf %265, %269 : vector<16x16xf32>
    %cst_87 = arith.constant dense<0.000000e+00> : vector<16x16xf32>
    %271 = tpu.matmul %270, %257, %cst_87 {dimension_numbers = #tpu.dot_dimension_numbers<[1], [0], [0], [1], [0, 0, 1, 1], [], []>} : vector<16x16xf32>, vector<16x16xf32>, vector<16x16xf32> -> vector<16x16xf32>
    %272 = vector.extract_strided_slice %16 {offsets = [0, 64], sizes = [1, 16], strides = [1, 1]} : vector<1x128xf32> to vector<1x16xf32>
    %cst_88 = arith.constant dense<0.000000e+00> : vector<1x16xf32>
    %273 = tpu.matmul %272, %271, %cst_88 {dimension_numbers = #tpu.dot_dimension_numbers<[1], [1], [0], [0], [0, 0, 1, 0], [], []>} : vector<1x16xf32>, vector<16x16xf32>, vector<1x16xf32> -> vector<1x16xf32>
    %274 = arith.addf %254, %273 : vector<1x16xf32>
    %275 = vector.extract_strided_slice %13 {offsets = [16, 80], sizes = [16, 16], strides = [1, 1]} : vector<32x128xf32> to vector<16x16xf32>
    %276 = vector.extract_strided_slice %14 {offsets = [16, 80], sizes = [16, 16], strides = [1, 1]} : vector<32x128xf32> to vector<16x16xf32>
    %277 = vector.extract_strided_slice %15 {offsets = [16, 80], sizes = [16, 16], strides = [1, 1]} : vector<32x128xf32> to vector<16x16xf32>
    %cst_89 = arith.constant dense<0.000000e+00> : vector<16x16xf32>
    %278 = tpu.matmul %275, %276, %cst_89 {dimension_numbers = #tpu.dot_dimension_numbers<[1], [1], [0], [0], [0, 0, 1, 0], [], []>} : vector<16x16xf32>, vector<16x16xf32>, vector<16x16xf32> -> vector<16x16xf32>
    %cst_90 = arith.constant 0.258198887 : f32
    %279 = vector.broadcast %cst_90 : f32 to vector<16x16xf32>
    %280 = arith.mulf %278, %279 : vector<16x16xf32>
    %cst_91 = arith.constant dense<0xFF800000> : vector<16xf32>
    %281 = vector.multi_reduction <maximumf>, %280, %cst_91 [1] : vector<16x16xf32> to vector<16xf32>
    %282 = vector.shape_cast %281 : vector<16xf32> to vector<16x1xf32>
    %283 = vector.broadcast %282 : vector<16x1xf32> to vector<16x16xf32>
    %284 = arith.subf %280, %283 : vector<16x16xf32>
    %285 = math.exp %284 : vector<16x16xf32>
    %cst_92 = arith.constant dense<0.000000e+00> : vector<16xf32>
    %286 = vector.multi_reduction <add>, %285, %cst_92 [1] : vector<16x16xf32> to vector<16xf32>
    %287 = vector.shape_cast %286 : vector<16xf32> to vector<16x1xf32>
    %288 = tpu.reciprocal %287 {approx = true} : vector<16x1xf32> -> vector<16x1xf32>
    %289 = vector.broadcast %288 : vector<16x1xf32> to vector<16x16xf32>
    %290 = arith.mulf %285, %289 : vector<16x16xf32>
    %cst_93 = arith.constant dense<0.000000e+00> : vector<16x16xf32>
    %291 = tpu.matmul %290, %277, %cst_93 {dimension_numbers = #tpu.dot_dimension_numbers<[1], [0], [0], [1], [0, 0, 1, 1], [], []>} : vector<16x16xf32>, vector<16x16xf32>, vector<16x16xf32> -> vector<16x16xf32>
    %292 = vector.extract_strided_slice %16 {offsets = [0, 80], sizes = [1, 16], strides = [1, 1]} : vector<1x128xf32> to vector<1x16xf32>
    %cst_94 = arith.constant dense<0.000000e+00> : vector<1x16xf32>
    %293 = tpu.matmul %292, %291, %cst_94 {dimension_numbers = #tpu.dot_dimension_numbers<[1], [1], [0], [0], [0, 0, 1, 0], [], []>} : vector<1x16xf32>, vector<16x16xf32>, vector<1x16xf32> -> vector<1x16xf32>
    %294 = arith.addf %274, %293 : vector<1x16xf32>
    %295 = vector.extract_strided_slice %13 {offsets = [16, 96], sizes = [16, 16], strides = [1, 1]} : vector<32x128xf32> to vector<16x16xf32>
    %296 = vector.extract_strided_slice %14 {offsets = [16, 96], sizes = [16, 16], strides = [1, 1]} : vector<32x128xf32> to vector<16x16xf32>
    %297 = vector.extract_strided_slice %15 {offsets = [16, 96], sizes = [16, 16], strides = [1, 1]} : vector<32x128xf32> to vector<16x16xf32>
    %cst_95 = arith.constant dense<0.000000e+00> : vector<16x16xf32>
    %298 = tpu.matmul %295, %296, %cst_95 {dimension_numbers = #tpu.dot_dimension_numbers<[1], [1], [0], [0], [0, 0, 1, 0], [], []>} : vector<16x16xf32>, vector<16x16xf32>, vector<16x16xf32> -> vector<16x16xf32>
    %cst_96 = arith.constant 0.258198887 : f32
    %299 = vector.broadcast %cst_96 : f32 to vector<16x16xf32>
    %300 = arith.mulf %298, %299 : vector<16x16xf32>
    %cst_97 = arith.constant dense<0xFF800000> : vector<16xf32>
    %301 = vector.multi_reduction <maximumf>, %300, %cst_97 [1] : vector<16x16xf32> to vector<16xf32>
    %302 = vector.shape_cast %301 : vector<16xf32> to vector<16x1xf32>
    %303 = vector.broadcast %302 : vector<16x1xf32> to vector<16x16xf32>
    %304 = arith.subf %300, %303 : vector<16x16xf32>
    %305 = math.exp %304 : vector<16x16xf32>
    %cst_98 = arith.constant dense<0.000000e+00> : vector<16xf32>
    %306 = vector.multi_reduction <add>, %305, %cst_98 [1] : vector<16x16xf32> to vector<16xf32>
    %307 = vector.shape_cast %306 : vector<16xf32> to vector<16x1xf32>
    %308 = tpu.reciprocal %307 {approx = true} : vector<16x1xf32> -> vector<16x1xf32>
    %309 = vector.broadcast %308 : vector<16x1xf32> to vector<16x16xf32>
    %310 = arith.mulf %305, %309 : vector<16x16xf32>
    %cst_99 = arith.constant dense<0.000000e+00> : vector<16x16xf32>
    %311 = tpu.matmul %310, %297, %cst_99 {dimension_numbers = #tpu.dot_dimension_numbers<[1], [0], [0], [1], [0, 0, 1, 1], [], []>} : vector<16x16xf32>, vector<16x16xf32>, vector<16x16xf32> -> vector<16x16xf32>
    %312 = vector.extract_strided_slice %16 {offsets = [0, 96], sizes = [1, 16], strides = [1, 1]} : vector<1x128xf32> to vector<1x16xf32>
    %cst_100 = arith.constant dense<0.000000e+00> : vector<1x16xf32>
    %313 = tpu.matmul %312, %311, %cst_100 {dimension_numbers = #tpu.dot_dimension_numbers<[1], [1], [0], [0], [0, 0, 1, 0], [], []>} : vector<1x16xf32>, vector<16x16xf32>, vector<1x16xf32> -> vector<1x16xf32>
    %314 = arith.addf %294, %313 : vector<1x16xf32>
    %315 = vector.extract_strided_slice %13 {offsets = [16, 112], sizes = [16, 16], strides = [1, 1]} : vector<32x128xf32> to vector<16x16xf32>
    %316 = vector.extract_strided_slice %14 {offsets = [16, 112], sizes = [16, 16], strides = [1, 1]} : vector<32x128xf32> to vector<16x16xf32>
    %317 = vector.extract_strided_slice %15 {offsets = [16, 112], sizes = [16, 16], strides = [1, 1]} : vector<32x128xf32> to vector<16x16xf32>
    %cst_101 = arith.constant dense<0.000000e+00> : vector<16x16xf32>
    %318 = tpu.matmul %315, %316, %cst_101 {dimension_numbers = #tpu.dot_dimension_numbers<[1], [1], [0], [0], [0, 0, 1, 0], [], []>} : vector<16x16xf32>, vector<16x16xf32>, vector<16x16xf32> -> vector<16x16xf32>
    %cst_102 = arith.constant 0.258198887 : f32
    %319 = vector.broadcast %cst_102 : f32 to vector<16x16xf32>
    %320 = arith.mulf %318, %319 : vector<16x16xf32>
    %cst_103 = arith.constant dense<0xFF800000> : vector<16xf32>
    %321 = vector.multi_reduction <maximumf>, %320, %cst_103 [1] : vector<16x16xf32> to vector<16xf32>
    %322 = vector.shape_cast %321 : vector<16xf32> to vector<16x1xf32>
    %323 = vector.broadcast %322 : vector<16x1xf32> to vector<16x16xf32>
    %324 = arith.subf %320, %323 : vector<16x16xf32>
    %325 = math.exp %324 : vector<16x16xf32>
    %cst_104 = arith.constant dense<0.000000e+00> : vector<16xf32>
    %326 = vector.multi_reduction <add>, %325, %cst_104 [1] : vector<16x16xf32> to vector<16xf32>
    %327 = vector.shape_cast %326 : vector<16xf32> to vector<16x1xf32>
    %328 = tpu.reciprocal %327 {approx = true} : vector<16x1xf32> -> vector<16x1xf32>
    %329 = vector.broadcast %328 : vector<16x1xf32> to vector<16x16xf32>
    %330 = arith.mulf %325, %329 : vector<16x16xf32>
    %cst_105 = arith.constant dense<0.000000e+00> : vector<16x16xf32>
    %331 = tpu.matmul %330, %317, %cst_105 {dimension_numbers = #tpu.dot_dimension_numbers<[1], [0], [0], [1], [0, 0, 1, 1], [], []>} : vector<16x16xf32>, vector<16x16xf32>, vector<16x16xf32> -> vector<16x16xf32>
    %332 = vector.extract_strided_slice %16 {offsets = [0, 112], sizes = [1, 16], strides = [1, 1]} : vector<1x128xf32> to vector<1x16xf32>
    %cst_106 = arith.constant dense<0.000000e+00> : vector<1x16xf32>
    %333 = tpu.matmul %332, %331, %cst_106 {dimension_numbers = #tpu.dot_dimension_numbers<[1], [1], [0], [0], [0, 0, 1, 0], [], []>} : vector<1x16xf32>, vector<16x16xf32>, vector<1x16xf32> -> vector<1x16xf32>
    %334 = arith.addf %314, %333 : vector<1x16xf32>
    %335 = tpu.concatenate %175, %334 in 0 : vector<1x16xf32>, vector<1x16xf32> -> vector<2x16xf32>
    %c0_107 = arith.constant 0 : index
    %c0_108 = arith.constant 0 : index
    %336 = vector.load %arg6[%c0_107, %c0_108] : memref<1x1xf32, #tpu.memory_space<vmem>>, vector<1x1xf32>
    %337 = vector.broadcast %336 : vector<1x1xf32> to vector<2x16xf32>
    %338 = arith.addf %335, %337 : vector<2x16xf32>
    %c0_109 = arith.constant 0 : index
    %c0_110 = arith.constant 0 : index
    %339 = vector.load %arg7[%c0_109, %c0_110] : memref<16x32xf32, #tpu.memory_space<vmem>>, vector<16x32xf32>
    %cst_111 = arith.constant dense<0.000000e+00> : vector<2x32xf32>
    %340 = tpu.matmul %338, %339, %cst_111 {dimension_numbers = #tpu.dot_dimension_numbers<[1], [0], [0], [1], [0, 0, 1, 1], [], []>} : vector<2x16xf32>, vector<16x32xf32>, vector<2x32xf32> -> vector<2x32xf32>
    %cst_112 = arith.constant dense<0.000000e+00> : vector<32xf32>
    %341 = vector.multi_reduction <add>, %340, %cst_112 [0] : vector<2x32xf32> to vector<32xf32>
    %342 = vector.shape_cast %341 : vector<32xf32> to vector<1x32xf32>
    %cst_113 = arith.constant 2.000000e+00 : f32
    %343 = vector.broadcast %cst_113 : f32 to vector<1x32xf32>
    %344 = arith.divf %342, %343 : vector<1x32xf32>
    %345 = vector.broadcast %344 : vector<1x32xf32> to vector<2x32xf32>
    %346 = arith.subf %340, %345 : vector<2x32xf32>
    %347 = arith.mulf %346, %346 : vector<2x32xf32>
    %cst_114 = arith.constant dense<0.000000e+00> : vector<32xf32>
    %348 = vector.multi_reduction <add>, %347, %cst_114 [0] : vector<2x32xf32> to vector<32xf32>
    %349 = vector.shape_cast %348 : vector<32xf32> to vector<1x32xf32>
    %cst_115 = arith.constant 2.000000e+00 : f32
    %350 = vector.broadcast %cst_115 : f32 to vector<1x32xf32>
    %351 = arith.divf %349, %350 : vector<1x32xf32>
    %c0_116 = arith.constant 0 : index
    %c0_117 = arith.constant 0 : index
    %352 = vector.load %arg8[%c0_116, %c0_117] : memref<1x32xf32, #tpu.memory_space<vmem>>, vector<1x32xf32>
    %353 = vector.broadcast %344 : vector<1x32xf32> to vector<2x32xf32>
    %354 = arith.subf %340, %353 : vector<2x32xf32>
    %355 = vector.broadcast %352 : vector<1x32xf32> to vector<2x32xf32>
    %356 = arith.mulf %355, %354 : vector<2x32xf32>
    %cst_118 = arith.constant 9.99999974E-6 : f32
    %357 = vector.broadcast %cst_118 : f32 to vector<1x32xf32>
    %358 = arith.addf %351, %357 : vector<1x32xf32>
    %359 = math.rsqrt %358 : vector<1x32xf32>
    %360 = vector.broadcast %359 : vector<1x32xf32> to vector<2x32xf32>
    %361 = arith.mulf %356, %360 : vector<2x32xf32>
    %c0_119 = arith.constant 0 : index
    %c0_120 = arith.constant 0 : index
    %362 = vector.load %arg9[%c0_119, %c0_120] : memref<1x32xf32, #tpu.memory_space<vmem>>, vector<1x32xf32>
    %363 = vector.broadcast %362 : vector<1x32xf32> to vector<2x32xf32>
    %364 = arith.addf %361, %363 : vector<2x32xf32>
    %cst_121 = arith.constant 0.000000e+00 : f32
    %365 = vector.broadcast %cst_121 : f32 to vector<2x32xf32>
    %366 = arith.maximumf %364, %365 : vector<2x32xf32>
    %c0_122 = arith.constant 0 : index
    %c0_123 = arith.constant 0 : index
    %367 = vector.load %arg10[%c0_122, %c0_123] : memref<32x32xf32, #tpu.memory_space<vmem>>, vector<32x32xf32>
    %cst_124 = arith.constant dense<0.000000e+00> : vector<2x32xf32>
    %368 = tpu.matmul %366, %367, %cst_124 {dimension_numbers = #tpu.dot_dimension_numbers<[1], [0], [0], [1], [0, 0, 1, 1], [], []>} : vector<2x32xf32>, vector<32x32xf32>, vector<2x32xf32> -> vector<2x32xf32>
    %cst_125 = arith.constant 0.000000e+00 : f32
    %369 = vector.broadcast %cst_125 : f32 to vector<2x32xf32>
    %370 = arith.maximumf %368, %369 : vector<2x32xf32>
    %cst_126 = arith.constant dense<0.000000e+00> : vector<2xf32>
    %371 = vector.multi_reduction <add>, %370, %cst_126 [1] : vector<2x32xf32> to vector<2xf32>
    %372 = vector.shape_cast %371 : vector<2xf32> to vector<2x1xf32>
    %cst_127 = arith.constant 3.200000e+01 : f32
    %373 = vector.broadcast %cst_127 : f32 to vector<2x1xf32>
    %374 = arith.divf %372, %373 : vector<2x1xf32>
    %375 = vector.broadcast %374 : vector<2x1xf32> to vector<2x32xf32>
    %376 = arith.subf %370, %375 : vector<2x32xf32>
    %377 = arith.mulf %376, %376 : vector<2x32xf32>
    %cst_128 = arith.constant dense<0.000000e+00> : vector<2xf32>
    %378 = vector.multi_reduction <add>, %377, %cst_128 [1] : vector<2x32xf32> to vector<2xf32>
    %379 = vector.shape_cast %378 : vector<2xf32> to vector<2x1xf32>
    %cst_129 = arith.constant 3.200000e+01 : f32
    %380 = vector.broadcast %cst_129 : f32 to vector<2x1xf32>
    %381 = arith.divf %379, %380 : vector<2x1xf32>
    %c0_130 = arith.constant 0 : index
    %c0_131 = arith.constant 0 : index
    %382 = vector.load %arg11[%c0_130, %c0_131] : memref<1x32xf32, #tpu.memory_space<vmem>>, vector<1x32xf32>
    %383 = vector.broadcast %374 : vector<2x1xf32> to vector<2x32xf32>
    %384 = arith.subf %370, %383 : vector<2x32xf32>
    %385 = vector.broadcast %382 : vector<1x32xf32> to vector<2x32xf32>
    %386 = arith.mulf %385, %384 : vector<2x32xf32>
    %cst_132 = arith.constant 9.99999974E-6 : f32
    %387 = vector.broadcast %cst_132 : f32 to vector<2x1xf32>
    %388 = arith.addf %381, %387 : vector<2x1xf32>
    %389 = math.rsqrt %388 : vector<2x1xf32>
    %390 = vector.broadcast %389 : vector<2x1xf32> to vector<2x32xf32>
    %391 = arith.mulf %386, %390 : vector<2x32xf32>
    %c0_133 = arith.constant 0 : index
    %c0_134 = arith.constant 0 : index
    %392 = vector.load %arg12[%c0_133, %c0_134] : memref<1x32xf32, #tpu.memory_space<vmem>>, vector<1x32xf32>
    %393 = vector.broadcast %392 : vector<1x32xf32> to vector<2x32xf32>
    %394 = arith.addf %391, %393 : vector<2x32xf32>
    %cst_135 = arith.constant 0.000000e+00 : f32
    %395 = vector.broadcast %cst_135 : f32 to vector<2x32xf32>
    %396 = arith.maximumf %394, %395 : vector<2x32xf32>
    %c0_136 = arith.constant 0 : index
    %c0_137 = arith.constant 0 : index
    %397 = vector.load %arg13[%c0_136, %c0_137] : memref<32x8xf32, #tpu.memory_space<vmem>>, vector<32x8xf32>
    %cst_138 = arith.constant dense<0.000000e+00> : vector<2x8xf32>
    %398 = tpu.matmul %396, %397, %cst_138 {dimension_numbers = #tpu.dot_dimension_numbers<[1], [0], [0], [1], [0, 0, 1, 1], [], []>} : vector<2x32xf32>, vector<32x8xf32>, vector<2x8xf32> -> vector<2x8xf32>
    %c0_139 = arith.constant 0 : index
    %c0_140 = arith.constant 0 : index
    %399 = vector.load %arg14[%c0_139, %c0_140] : memref<2x8xf32, #tpu.memory_space<vmem>>, vector<2x8xf32>
    tpu.vector_store %arg14[%c0_139, %c0_140], %398 {strides = array<i32>} : memref<2x8xf32, #tpu.memory_space<vmem>>, vector<2x8xf32>,
    return
  }
}

</mosaic_0001>

<llo_original>
// kernel: my_model_forward.1
$region0: #{my_model_forward.1}
  #allocation0 [shape = 'u32[]', space=smem, size = 0x4, offset = 0x4, fixed_abs, tag = 'smem constant byte address 0x4 - core index']
  #allocation1 [shape = 'u32[144,128]{1,0:T(1,128)}', space=vmem, size = 0x12000, scoped, tag = 'internal scratch']
  #allocation2 [shape = 'f32[1,1]{1,0:T(1,128)S(1)}', space=vmem, size = 0x200, scoped, tag = 'scoped memory for my_model_forward.1']
  %s0 = inlined_call_operand.vmem [shape: f32[32,1], index: 0, kind: input, shape index: {}]
  %s1 = inlined_call_operand.vmem [shape: f32[1,128], index: 1, kind: input, shape index: {}]
  %s2 = inlined_call_operand.vmem [shape: f32[1,128], index: 2, kind: input, shape index: {}]
  %s3 = inlined_call_operand.hbm [shape: f32[128,384], index: 3, kind: input, shape index: {}]
  %s4 = inlined_call_operand.vmem [shape: f32[1,384], index: 4, kind: input, shape index: {}]
  %s5 = inlined_call_operand.vmem [shape: f32[1,128], index: 5, kind: input, shape index: {}]
  %s6 = inlined_call_operand.<no memory space> [shape: f32[1,1], index: 6, kind: input, shape index: {}]
  %s7 = inlined_call_operand.vmem [shape: f32[16,32], index: 7, kind: input, shape index: {}]
  %s8 = inlined_call_operand.vmem [shape: f32[1,32], index: 8, kind: input, shape index: {}]
  %s9 = inlined_call_operand.vmem [shape: f32[1,32], index: 9, kind: input, shape index: {}]
  %s10 = inlined_call_operand.vmem [shape: f32[32,32], index: 10, kind: input, shape index: {}]
  %s11 = inlined_call_operand.vmem [shape: f32[1,32], index: 11, kind: input, shape index: {}]
  %s12 = inlined_call_operand.vmem [shape: f32[1,32], index: 12, kind: input, shape index: {}]
  %s13 = inlined_call_operand.vmem [shape: f32[32,8], index: 13, kind: input, shape index: {}]
  %s14 = inlined_call_operand.hbm [shape: f32[2,8], index: 14, kind: output, shape index: {}]
  %s15 = sld [smem:[#allocation0]]
  $region70: #{my_model_forward.1} parent=0
    _
  %s17 = ssub.s32 1, %s15
  %s18 = scalar_select 0, %s17, %s15
  %v19 = vstv %s6
  %20 = vst [vmem:[#allocation2] sm:$0x1] %v19
  $region1: #{my_model_forward.1} parent=0
    #allocation3 [shape = 'u8[196608]{0}', space=vmem, size = 0x30000, scoped, tag = 'input window, operand 3, single buffered']
    #allocation4 [shape = 's32[1]{0}', space=sflag, size = 0x4, scoped, tag = 'scoped memory for my_model_forward.1']
    #allocation5 [shape = 's32[1]{0}', space=sflag, size = 0x4, scoped, tag = 'scoped memory for my_model_forward.1']
    #allocation6 [shape = 'u8[1024]{0}', space=vmem, size = 0x400, scoped, tag = 'output window, operand 0, single buffered']
    %21 = vsyncpa [#allocation4], 0
    %22 = vsyncpa [#allocation5], 0
    // Predicated region
    $region2: #{my_model_forward.1} parent=1 // pred_check
      _
    $region3: #{my_model_forward.1} parent=1 // pred_check_branch
      %24 = sbr.rel (0) target = $region5
    $region4: #{my_model_forward.1} parent=1 // pred_region
      _
    $region5: #{my_model_forward.1} parent=1 // pred_fallthru
      _
    // Predicated region
    $region6: #{my_model_forward.1} parent=1 // pred_check
      _
    $region7: #{my_model_forward.1} parent=1 // pred_check_branch
      %26 = sbr.rel (0) target = $region9
    $region8: #{my_model_forward.1} parent=1 // pred_region
      _
    $region9: #{my_model_forward.1} parent=1 // pred_fallthru
      _
    // Predicated region
    $region10: #{my_model_forward.1} parent=1 // pred_check
      _
    $region11: #{my_model_forward.1} parent=1 // pred_check_branch
      %28 = sbr.rel (0) target = $region13
    $region12: #{my_model_forward.1} parent=1 // pred_region
      _
    $region13: #{my_model_forward.1} parent=1 // pred_fallthru
      _
    // Predicated region
    $region14: #{my_model_forward.1} parent=1 // pred_check
      _
    $region15: #{my_model_forward.1} parent=1 // pred_check_branch
      %30 = sbr.rel (0) target = $region17
    $region16: #{my_model_forward.1} parent=1 // pred_region
      %s32 = ssub.s32 6144, 6144
      %33 = vsyncadd [#allocation4], %s32
      %s34 = sshll.u32 [#allocation3], 4
      %s35 = int_to_ptr.vmem [resolvable:$true] %s34
      %40 = dma.hbm_to_vmem [thread:$0]  %s3, 6144, %s35, [#allocation4], 384, 384, 24
    $region17: #{my_model_forward.1} parent=1 // pred_fallthru
      _
    // Predicated region
    $region18: #{my_model_forward.1} parent=1 // pred_check
      _
    $region19: #{my_model_forward.1} parent=1 // pred_check_branch
      %42 = sbr.rel (0) target = $region21
    $region20: #{my_model_forward.1} parent=1 // pred_region
      _
    $region21: #{my_model_forward.1} parent=1 // pred_fallthru
      _
    // Predicated region
    $region22: #{my_model_forward.1} parent=1 // pred_check
      _
    $region23: #{my_model_forward.1} parent=1 // pred_check_branch
      %44 = sbr.rel (0) target = $region25
    $region24: #{my_model_forward.1} parent=1 // pred_region
      _
    $region25: #{my_model_forward.1} parent=1 // pred_fallthru
      _
    // Predicated region
    $region26: #{my_model_forward.1} parent=1 // pred_check
      _
    $region27: #{my_model_forward.1} parent=1 // pred_check_branch
      %46 = sbr.rel (0) target = $region29
    $region28: #{my_model_forward.1} parent=1 // pred_region
      _
    $region29: #{my_model_forward.1} parent=1 // pred_fallthru
      _
    // Predicated region
    $region30: #{my_model_forward.1} parent=1 // pred_check
      _
    $region31: #{my_model_forward.1} parent=1 // pred_check_branch
      %48 = sbr.rel (0) target = $region33
    $region32: #{my_model_forward.1} parent=1 // pred_region
      _
    $region33: #{my_model_forward.1} parent=1 // pred_fallthru
      _
    // Predicated region
    $region34: #{my_model_forward.1} parent=1 // pred_check
      _
    $region35: #{my_model_forward.1} parent=1 // pred_check_branch
      %50 = sbr.rel (0) target = $region37
    $region36: #{my_model_forward.1} parent=1 // pred_region
      _
    $region37: #{my_model_forward.1} parent=1 // pred_fallthru
      _
    // Predicated region
    $region38: #{my_model_forward.1} parent=1 // pred_check
      _
    $region39: #{my_model_forward.1} parent=1 // pred_check_branch
      %52 = sbr.rel (0) target = $region41
    $region40: #{my_model_forward.1} parent=1 // pred_region
      _
    $region41: #{my_model_forward.1} parent=1 // pred_fallthru
      _
    // Predicated region
    $region42: #{my_model_forward.1} parent=1 // pred_check
      _
    $region43: #{my_model_forward.1} parent=1 // pred_check_branch
      %54 = sbr.rel (0) target = $region45
    $region44: #{my_model_forward.1} parent=1 // pred_region
      _
    $region45: #{my_model_forward.1} parent=1 // pred_fallthru
      _
    // Predicated region
    $region46: #{my_model_forward.1} parent=1 // pred_check
      _
    $region47: #{my_model_forward.1} parent=1 // pred_check_branch
      %56 = sbr.rel (0) target = $region49
    $region48: #{my_model_forward.1} parent=1 // pred_region
      _
    $region49: #{my_model_forward.1} parent=1 // pred_fallthru
      _
    // Predicated region
    $region50: #{my_model_forward.1} parent=1 // pred_check
      _
    $region51: #{my_model_forward.1} parent=1 // pred_check_branch
      %58 = sbr.rel (0) target = $region53
    $region52: #{my_model_forward.1} parent=1 // pred_region
      _
    $region53: #{my_model_forward.1} parent=1 // pred_fallthru
      _
    // Predicated region
    $region54: #{my_model_forward.1} parent=1 // pred_check
      _
    $region55: #{my_model_forward.1} parent=1 // pred_check_branch
      %60 = sbr.rel (0) target = $region57
    $region56: #{my_model_forward.1} parent=1 // pred_region
      _
    $region57: #{my_model_forward.1} parent=1 // pred_fallthru
      _
    // Predicated region
    $region58: #{my_model_forward.1} parent=1 // pred_check
      _
    $region59: #{my_model_forward.1} parent=1 // pred_check_branch
      %62 = sbr.rel (0) target = $region61
    $region60: #{my_model_forward.1} parent=1 // pred_region
      %63 = dma.done [#allocation4], 6144
    $region61: #{my_model_forward.1} parent=1 // pred_fallthru
      _
    %v64 = vld [vmem:[%s0] sm:$0xff]
    %v65 = vld [vmem:[%s0 + $0x8] sm:$0xff]
    %v66 = vld [vmem:[%s0 + $0x10] sm:$0xff]
    %v67 = vld [vmem:[%s0 + $0x18] sm:$0xff]
    %v68 = vld [vmem:[%s1] sm:$0x1]
    %70 = vset.pattern.permute.xlu0 0
    %71 = vperm.xlu0 %70, %v64
    %v72 = vpop.permute.xlu0 %71
    %75 = vset.pattern.permute.xlu0 0
    %76 = vperm.xlu0 %75, %v65
    %v77 = vpop.permute.xlu0 %76
    %80 = vset.pattern.permute.xlu0 0
    %81 = vperm.xlu0 %80, %v66
    %v82 = vpop.permute.xlu0 %81
    %85 = vset.pattern.permute.xlu0 0
    %86 = vperm.xlu0 %85, %v67
    %v87 = vpop.permute.xlu0 %86
    %v90 = vlaneseq
    %v91 = vshrl.u32 %v90, 7
    %v92 = vsub.s32 0, %v91
    %v93 = vrot.slane %v68, %v92
    %v95 = vmul.f32 %v72, %v93
    %v96 = vmul.f32 %v77, %v93
    %v97 = vmul.f32 %v82, %v93
    %v98 = vmul.f32 %v87, %v93
    %v99 = vld [vmem:[%s2] sm:$0x1]
    %v101 = vlaneseq
    %v102 = vshrl.u32 %v101, 7
    %v103 = vsub.s32 0, %v102
    %v104 = vrot.slane %v99, %v103
    %v106 = vadd.f32 %v95, %v104
    %v107 = vadd.f32 %v96, %v104
    %v108 = vadd.f32 %v97, %v104
    %v109 = vadd.f32 %v98, %v104
    %v110 = vld [vmem:[#allocation3] sm:$0xff]
    %v111 = vld [vmem:[#allocation3 + $0x8] sm:$0xff]
    %v112 = vld [vmem:[#allocation3 + $0x10] sm:$0xff]
    %v113 = vld [vmem:[#allocation3 + $0x18] sm:$0xff]
    %v114 = vld [vmem:[#allocation3 + $0x20] sm:$0xff]
    %v115 = vld [vmem:[#allocation3 + $0x28] sm:$0xff]
    %v116 = vld [vmem:[#allocation3 + $0x30] sm:$0xff]
    %v117 = vld [vmem:[#allocation3 + $0x38] sm:$0xff]
    %v118 = vld [vmem:[#allocation3 + $0x40] sm:$0xff]
    %v119 = vld [vmem:[#allocation3 + $0x48] sm:$0xff]
    %v120 = vld [vmem:[#allocation3 + $0x50] sm:$0xff]
    %v121 = vld [vmem:[#allocation3 + $0x58] sm:$0xff]
    %v122 = vld [vmem:[#allocation3 + $0x60] sm:$0xff]
    %v123 = vld [vmem:[#allocation3 + $0x68] sm:$0xff]
    %v124 = vld [vmem:[#allocation3 + $0x70] sm:$0xff]
    %v125 = vld [vmem:[#allocation3 + $0x78] sm:$0xff]
    %v126 = vld [vmem:[#allocation3 + $0x80] sm:$0xff]
    %v127 = vld [vmem:[#allocation3 + $0x88] sm:$0xff]
    %v128 = vld [vmem:[#allocation3 + $0x90] sm:$0xff]
    %v129 = vld [vmem:[#allocation3 + $0x98] sm:$0xff]
    %v130 = vld [vmem:[#allocation3 + $0xa0] sm:$0xff]
    %v131 = vld [vmem:[#allocation3 + $0xa8] sm:$0xff]
    %v132 = vld [vmem:[#allocation3 + $0xb0] sm:$0xff]
    %v133 = vld [vmem:[#allocation3 + $0xb8] sm:$0xff]
    %v134 = vld [vmem:[#allocation3 + $0xc0] sm:$0xff]
    %v135 = vld [vmem:[#allocation3 + $0xc8] sm:$0xff]
    %v136 = vld [vmem:[#allocation3 + $0xd0] sm:$0xff]
    %v137 = vld [vmem:[#allocation3 + $0xd8] sm:$0xff]
    %v138 = vld [vmem:[#allocation3 + $0xe0] sm:$0xff]
    %v139 = vld [vmem:[#allocation3 + $0xe8] sm:$0xff]
    %v140 = vld [vmem:[#allocation3 + $0xf0] sm:$0xff]
    %v141 = vld [vmem:[#allocation3 + $0xf8] sm:$0xff]
    %v142 = vld [vmem:[#allocation3 + $0x100] sm:$0xff]
    %v143 = vld [vmem:[#allocation3 + $0x108] sm:$0xff]
    %v144 = vld [vmem:[#allocation3 + $0x110] sm:$0xff]
    %v145 = vld [vmem:[#allocation3 + $0x118] sm:$0xff]
    %v146 = vld [vmem:[#allocation3 + $0x120] sm:$0xff]
    %v147 = vld [vmem:[#allocation3 + $0x128] sm:$0xff]
    %v148 = vld [vmem:[#allocation3 + $0x130] sm:$0xff]
    %v149 = vld [vmem:[#allocation3 + $0x138] sm:$0xff]
    %v150 = vld [vmem:[#allocation3 + $0x140] sm:$0xff]
    %v151 = vld [vmem:[#allocation3 + $0x148] sm:$0xff]
    %v152 = vld [vmem:[#allocation3 + $0x150] sm:$0xff]
    %v153 = vld [vmem:[#allocation3 + $0x158] sm:$0xff]
    %v154 = vld [vmem:[#allocation3 + $0x160] sm:$0xff]
    %v155 = vld [vmem:[#allocation3 + $0x168] sm:$0xff]
    %v156 = vld [vmem:[#allocation3 + $0x170] sm:$0xff]
    %v157 = vld [vmem:[#allocation3 + $0x178] sm:$0xff]
    %v158 = vld [vmem:[%s4] sm:$0x7]
    %v160 = vlaneseq
    %v161 = vshrl.u32 %v160, 7
    %v162 = vsub.s32 0, %v161
    %v163 = vrot.slane %v158, %v162
    %v164 = vlaneseq
    %v165 = vshrl.u32 %v164, 7
    %v166 = vsub.s32 1, %v165
    %v167 = vrot.slane %v158, %v166
    %v168 = vlaneseq
    %v169 = vshrl.u32 %v168, 7
    %v170 = vsub.s32 2, %v169
    %v171 = vrot.slane %v158, %v170
    %175 = vmatprep.subr.mxu0 %v156
    %176 = vmatpush1.msra.mxu0 %v155
    %177 = vmatprep.subr.mxu0 %v153
    %178 = vmatpush1.msra.mxu0 %v152
    %179 = vmatprep.subr.mxu0 %v150
    %180 = vmatpush1.msra.mxu0 %v149
    %181 = vmatprep.subr.mxu0 %v147
    %182 = vmatpush1.msra.mxu0 %v146
    %183 = vmatprep.subr.mxu0 %v144
    %184 = vmatpush1.msra.mxu0 %v143
    %185 = vmatprep.subr.mxu0 %v141
    %186 = vmatpush1.msra.mxu0 %v140
    %187 = vmatprep.subr.mxu0 %v138
    %188 = vmatpush1.msra.mxu0 %v137
    %189 = vmatprep.subr.mxu0 %v135
    %190 = vmatpush1.msra.mxu0 %v134
    %191 = vmatprep.subr.mxu0 %v132
    %192 = vmatpush1.msra.mxu0 %v131
    %193 = vmatprep.subr.mxu0 %v129
    %194 = vmatpush1.msra.mxu0 %v128
    %195 = vmatprep.subr.mxu0 %v126
    %196 = vmatpush1.msra.mxu0 %v125
    %197 = vmatprep.subr.mxu0 %v123
    %198 = vmatpush1.msra.mxu0 %v122
    %199 = vmatprep.subr.mxu0 %v120
    %200 = vmatpush1.msra.mxu0 %v119
    %201 = vmatprep.subr.mxu0 %v117
    %202 = vmatpush1.msra.mxu0 %v116
    %203 = vmatprep.subr.mxu0 %v114
    %204 = vmatpush1.msra.mxu0 %v113
    %205 = vmatprep.subr.mxu0 %v111
    %206 = vmatpush1.msra.mxu0 %v110
    %207 = vmatprep.subr.mxu0 0.0
    %208 = vmatpush2.msra.mxu0 0.0
    %209 = vmatprep.subr.mxu0 0.0
    %210 = vmatpush2.msra.mxu0 0.0
    %211 = vmatprep.subr.mxu0 0.0
    %212 = vmatpush2.msra.mxu0 0.0
    %213 = vmatprep.subr.mxu0 0.0
    %214 = vmatpush2.msra.mxu0 0.0
    %215 = vmatprep.subr.mxu0 0.0
    %216 = vmatpush2.msra.mxu0 0.0
    %217 = vmatprep.subr.mxu0 0.0
    %218 = vmatpush2.msra.mxu0 0.0
    %219 = vmatprep.subr.mxu0 0.0
    %220 = vmatpush2.msra.mxu0 0.0
    %221 = vmatprep.subr.mxu0 0.0
    %222 = vmatpush2.msra.mxu0 0.0
    %223 = vmatprep.subr.mxu0 0.0
    %224 = vmatpush2.msra.mxu0 0.0
    %225 = vmatprep.subr.mxu0 0.0
    %226 = vmatpush2.msra.mxu0 0.0
    %227 = vmatprep.subr.mxu0 0.0
    %228 = vmatpush2.msra.mxu0 0.0
    %229 = vmatprep.subr.mxu0 0.0
    %230 = vmatpush2.msra.mxu0 0.0
    %231 = vmatprep.subr.mxu0 0.0
    %232 = vmatpush2.msra.mxu0 0.0
    %233 = vmatprep.subr.mxu0 0.0
    %234 = vmatpush2.msra.mxu0 0.0
    %235 = vmatprep.subr.mxu0 0.0
    %236 = vmatpush2.msra.mxu0 0.0
    %237 = vmatprep.subr.mxu0 0.0
    %238 = vmatpush2.msra.mxu0 0.0
    %239 = vmatprep.mubr.f32.mxu0 0.0
    %240 = vmatmul.mubr.f32.gmra.mxu0 %v106
    %v241 = vpop.f32.mrf.mxu0
    %v242 = vadd.f32 %v163, %v241
    %v243 = vpop.f32.mrf.mxu0
    %v244 = vadd.f32 %v167, %v243
    %245 = vmatprep.mubr.f32.mxu0 0.0
    %246 = vmatmul.mubr.f32.gmra.mxu0 %v107
    %v247 = vpop.f32.mrf.mxu0
    %v248 = vadd.f32 %v163, %v247
    %v249 = vpop.f32.mrf.mxu0
    %v250 = vadd.f32 %v167, %v249
    %251 = vmatprep.mubr.f32.mxu0 0.0
    %252 = vmatmul.mubr.f32.gmra.mxu0 %v108
    %v253 = vpop.f32.mrf.mxu0
    %v254 = vadd.f32 %v163, %v253
    %v255 = vpop.f32.mrf.mxu0
    %v256 = vadd.f32 %v167, %v255
    %257 = vmatprep.mubr.f32.mxu0 0.0
    %258 = vmatmul.mubr.f32.gmra.mxu0 %v109
    %v259 = vpop.f32.mrf.mxu0
    %v260 = vadd.f32 %v163, %v259
    %v261 = vpop.f32.mrf.mxu0
    %v262 = vadd.f32 %v167, %v261
    %263 = vdwg.mxu0
    %264 = vmatprep.subr.mxu0 0.0
    %265 = vmatpush1.msra.mxu0 %v157
    %266 = vmatprep.subr.mxu0 0.0
    %267 = vmatpush1.msra.mxu0 %v154
    %268 = vmatprep.subr.mxu0 0.0
    %269 = vmatpush1.msra.mxu0 %v151
    %270 = vmatprep.subr.mxu0 0.0
    %271 = vmatpush1.msra.mxu0 %v148
    %272 = vmatprep.subr.mxu0 0.0
    %273 = vmatpush1.msra.mxu0 %v145
    %274 = vmatprep.subr.mxu0 0.0
    %275 = vmatpush1.msra.mxu0 %v142
    %276 = vmatprep.subr.mxu0 0.0
    %277 = vmatpush1.msra.mxu0 %v139
    %278 = vmatprep.subr.mxu0 0.0
    %279 = vmatpush1.msra.mxu0 %v136
    %280 = vmatprep.subr.mxu0 0.0
    %281 = vmatpush1.msra.mxu0 %v133
    %282 = vmatprep.subr.mxu0 0.0
    %283 = vmatpush1.msra.mxu0 %v130
    %284 = vmatprep.subr.mxu0 0.0
    %285 = vmatpush1.msra.mxu0 %v127
    %286 = vmatprep.subr.mxu0 0.0
    %287 = vmatpush1.msra.mxu0 %v124
    %288 = vmatprep.subr.mxu0 0.0
    %289 = vmatpush1.msra.mxu0 %v121
    %290 = vmatprep.subr.mxu0 0.0
    %291 = vmatpush1.msra.mxu0 %v118
    %292 = vmatprep.subr.mxu0 0.0
    %293 = vmatpush1.msra.mxu0 %v115
    %294 = vmatprep.subr.mxu0 0.0
    %295 = vmatpush1.msra.mxu0 %v112
    %296 = vmatprep.subr.mxu0 0.0
    %297 = vmatpush2.msra.mxu0 0.0
    %298 = vmatprep.subr.mxu0 0.0
    %299 = vmatpush2.msra.mxu0 0.0
    %300 = vmatprep.subr.mxu0 0.0
    %301 = vmatpush2.msra.mxu0 0.0
    %302 = vmatprep.subr.mxu0 0.0
    %303 = vmatpush2.msra.mxu0 0.0
    %304 = vmatprep.subr.mxu0 0.0
    %305 = vmatpush2.msra.mxu0 0.0
    %306 = vmatprep.subr.mxu0 0.0
    %307 = vmatpush2.msra.mxu0 0.0
    %308 = vmatprep.subr.mxu0 0.0
    %309 = vmatpush2.msra.mxu0 0.0
    %310 = vmatprep.subr.mxu0 0.0
    %311 = vmatpush2.msra.mxu0 0.0
    %312 = vmatprep.subr.mxu0 0.0
    %313 = vmatpush2.msra.mxu0 0.0
    %314 = vmatprep.subr.mxu0 0.0
    %315 = vmatpush2.msra.mxu0 0.0
    %316 = vmatprep.subr.mxu0 0.0
    %317 = vmatpush2.msra.mxu0 0.0
    %318 = vmatprep.subr.mxu0 0.0
    %319 = vmatpush2.msra.mxu0 0.0
    %320 = vmatprep.subr.mxu0 0.0
    %321 = vmatpush2.msra.mxu0 0.0
    %322 = vmatprep.subr.mxu0 0.0
    %323 = vmatpush2.msra.mxu0 0.0
    %324 = vmatprep.subr.mxu0 0.0
    %325 = vmatpush2.msra.mxu0 0.0
    %326 = vmatprep.subr.mxu0 0.0
    %327 = vmatpush2.msra.mxu0 0.0
    %328 = vmatprep.mubr.f32.mxu0 0.0
    %329 = vmatmul.mubr.f32.gmra.mxu0 %v106
    %v330 = vpop.f32.mrf.mxu0
    %v331 = vadd.f32 %v171, %v330
    %v332 = vpop.f32.mrf.mxu0
    %333 = vmatprep.mubr.f32.mxu0 0.0
    %334 = vmatmul.mubr.f32.gmra.mxu0 %v107
    %v335 = vpop.f32.mrf.mxu0
    %v336 = vadd.f32 %v171, %v335
    %v337 = vpop.f32.mrf.mxu0
    %338 = vmatprep.mubr.f32.mxu0 0.0
    %339 = vmatmul.mubr.f32.gmra.mxu0 %v108
    %v340 = vpop.f32.mrf.mxu0
    %v341 = vadd.f32 %v171, %v340
    %v342 = vpop.f32.mrf.mxu0
    %343 = vmatprep.mubr.f32.mxu0 0.0
    %344 = vmatmul.mubr.f32.gmra.mxu0 %v109
    %v345 = vpop.f32.mrf.mxu0
    %v346 = vadd.f32 %v171, %v345
    %v347 = vpop.f32.mrf.mxu0
    %348 = vdwg.mxu0
    %v349 = vld [vmem:[%s5] sm:$0x1]
    %vm350 = vcmask 130048
    %v352 = vsel %vm350, %v242, 0
    %v355 = vsel %vm350, %v248, 0
    %v358 = vsel %vm350, %v244, 0
    %v361 = vsel %vm350, %v250, 0
    %363 = vmatprep.subr.mxu0 0.0
    %364 = vmatpush1.xpose.msra.mxu0 0.0
    %365 = vmatprep.subr.mxu0 0.0
    %366 = vmatpush1.xpose.msra.mxu0 0.0
    %367 = vmatprep.subr.mxu0 0.0
    %368 = vmatpush1.xpose.msra.mxu0 0.0
    %369 = vmatprep.subr.mxu0 0.0
    %370 = vmatpush1.xpose.msra.mxu0 0.0
    %371 = vmatprep.subr.mxu0 0.0
    %372 = vmatpush1.xpose.msra.mxu0 0.0
    %373 = vmatprep.subr.mxu0 0.0
    %374 = vmatpush1.xpose.msra.mxu0 0.0
    %375 = vmatprep.subr.mxu0 0.0
    %376 = vmatpush1.xpose.msra.mxu0 0.0
    %377 = vmatprep.subr.mxu0 0.0
    %378 = vmatpush1.xpose.msra.mxu0 0.0
    %379 = vmatprep.subr.mxu0 0.0
    %380 = vmatpush1.xpose.msra.mxu0 0.0
    %381 = vmatprep.subr.mxu0 0.0
    %382 = vmatpush1.xpose.msra.mxu0 0.0
    %383 = vmatprep.subr.mxu0 0.0
    %384 = vmatpush1.xpose.msra.mxu0 0.0
    %385 = vmatprep.subr.mxu0 0.0
    %386 = vmatpush1.xpose.msra.mxu0 0.0
    %387 = vmatprep.subr.mxu0 0.0
    %388 = vmatpush1.xpose.msra.mxu0 0.0
    %389 = vmatprep.subr.mxu0 0.0
    %390 = vmatpush1.xpose.msra.mxu0 0.0
    %391 = vmatprep.subr.mxu0 0.0
    %392 = vmatpush1.xpose.msra.mxu0 %v361
    %393 = vmatprep.subr.mxu0 0.0
    %394 = vmatpush1.xpose.msra.mxu0 %v358
    %395 = vmatprep.subr.mxu0 0.0
    %396 = vmatpush2.xpose.msra.mxu0 0.0
    %397 = vmatprep.subr.mxu0 0.0
    %398 = vmatpush2.xpose.msra.mxu0 0.0
    %399 = vmatprep.subr.mxu0 0.0
    %400 = vmatpush2.xpose.msra.mxu0 0.0
    %401 = vmatprep.subr.mxu0 0.0
    %402 = vmatpush2.xpose.msra.mxu0 0.0
    %403 = vmatprep.subr.mxu0 0.0
    %404 = vmatpush2.xpose.msra.mxu0 0.0
    %405 = vmatprep.subr.mxu0 0.0
    %406 = vmatpush2.xpose.msra.mxu0 0.0
    %407 = vmatprep.subr.mxu0 0.0
    %408 = vmatpush2.xpose.msra.mxu0 0.0
    %409 = vmatprep.subr.mxu0 0.0
    %410 = vmatpush2.xpose.msra.mxu0 0.0
    %411 = vmatprep.subr.mxu0 0.0
    %412 = vmatpush2.xpose.msra.mxu0 0.0
    %413 = vmatprep.subr.mxu0 0.0
    %414 = vmatpush2.xpose.msra.mxu0 0.0
    %415 = vmatprep.subr.mxu0 0.0
    %416 = vmatpush2.xpose.msra.mxu0 0.0
    %417 = vmatprep.subr.mxu0 0.0
    %418 = vmatpush2.xpose.msra.mxu0 0.0
    %419 = vmatprep.subr.mxu0 0.0
    %420 = vmatpush2.xpose.msra.mxu0 0.0
    %421 = vmatprep.subr.mxu0 0.0
    %422 = vmatpush2.xpose.msra.mxu0 0.0
    %423 = vmatprep.subr.mxu0 0.0
    %424 = vmatpush2.xpose.msra.mxu0 0.0
    %425 = vmatprep.subr.mxu0 0.0
    %426 = vmatpush2.xpose.msra.mxu0 0.0
    %427 = vmatprep.mubr.f32.mxu0 0.0
    %428 = vmatmul.mubr.f32.gmra.mxu0 %v352
    %v429 = vpop.f32.mrf.mxu0
    %v430 = vadd.f32 0.0, %v429
    %v431 = vpop.f32.mrf.mxu0
    %432 = vmatprep.mubr.f32.mxu0 0.0
    %433 = vmatmul.mubr.f32.gmra.mxu0 %v355
    %v434 = vpop.f32.mrf.mxu0
    %v435 = vadd.f32 0.0, %v434
    %v436 = vpop.f32.mrf.mxu0
    %437 = vdwg.mxu0
    %v438 = vmul.f32 %v430, 0.2581989
    %v439 = vmul.f32 %v435, 0.2581989
    %v440 = vsel %vm350, %v438, -inf
    %441 = vmax.xlane.f32.xlu0 %v440
    %v442 = vpop.xlane.xlu0 %441
    %v443 = vsel %vm350, %v439, -inf
    %444 = vmax.xlane.f32.xlu0 %v443
    %v445 = vpop.xlane.xlu0 %444
    %v446 = vsub.f32 %v438, %v442
    %v447 = vsub.f32 %v439, %v445
    %v448 = vmul.f32 %v446, 1.442695
    %v449 = vpow.pop %v448
    %v450 = vmul.f32 %v447, 1.442695
    %v451 = vpow.pop %v450
    %v452 = vsel %vm350, %v449, 0.0
    %453 = vadd.xlane.f32.xlu0 %v452
    %v454 = vpop.xlane.xlu0 %453
    %v455 = vsel %vm350, %v451, 0.0
    %456 = vadd.xlane.f32.xlu0 %v455
    %v457 = vpop.xlane.xlu0 %456
    %v458 = vrcp.pop %v454
    %v459 = vrcp.pop %v457
    %v460 = vmul.f32 %v449, %v458
    %v461 = vmul.f32 %v451, %v459
    %v463 = vsel %vm350, %v460, 0
    %v466 = vsel %vm350, %v461, 0
    %468 = vmatprep.subr.mxu0 0.0
    %469 = vmatpush1.msra.mxu0 0.0
    %470 = vmatprep.subr.mxu0 0.0
    %471 = vmatpush1.msra.mxu0 0.0
    %472 = vmatprep.subr.mxu0 0.0
    %473 = vmatpush1.msra.mxu0 0.0
    %474 = vmatprep.subr.mxu0 0.0
    %475 = vmatpush1.msra.mxu0 0.0
    %476 = vmatprep.subr.mxu0 0.0
    %477 = vmatpush1.msra.mxu0 0.0
    %478 = vmatprep.subr.mxu0 0.0
    %479 = vmatpush1.msra.mxu0 0.0
    %480 = vmatprep.subr.mxu0 0.0
    %481 = vmatpush1.msra.mxu0 0.0
    %482 = vmatprep.subr.mxu0 0.0
    %483 = vmatpush1.msra.mxu0 0.0
    %484 = vmatprep.subr.mxu0 0.0
    %485 = vmatpush1.msra.mxu0 0.0
    %486 = vmatprep.subr.mxu0 0.0
    %487 = vmatpush1.msra.mxu0 0.0
    %488 = vmatprep.subr.mxu0 0.0
    %489 = vmatpush1.msra.mxu0 0.0
    %490 = vmatprep.subr.mxu0 0.0
    %491 = vmatpush1.msra.mxu0 0.0
    %492 = vmatprep.subr.mxu0 0.0
    %493 = vmatpush1.msra.mxu0 0.0
    %494 = vmatprep.subr.mxu0 0.0
    %495 = vmatpush1.msra.mxu0 0.0
    %496 = vmatprep.subr.mxu0 0.0
    %497 = vmatpush1.msra.mxu0 %v336
    %498 = vmatprep.subr.mxu0 0.0
    %499 = vmatpush1.msra.mxu0 %v331
    %500 = vmatprep.subr.mxu0 0.0
    %501 = vmatpush2.msra.mxu0 0.0
    %502 = vmatprep.subr.mxu0 0.0
    %503 = vmatpush2.msra.mxu0 0.0
    %504 = vmatprep.subr.mxu0 0.0
    %505 = vmatpush2.msra.mxu0 0.0
    %506 = vmatprep.subr.mxu0 0.0
    %507 = vmatpush2.msra.mxu0 0.0
    %508 = vmatprep.subr.mxu0 0.0
    %509 = vmatpush2.msra.mxu0 0.0
    %510 = vmatprep.subr.mxu0 0.0
    %511 = vmatpush2.msra.mxu0 0.0
    %512 = vmatprep.subr.mxu0 0.0
    %513 = vmatpush2.msra.mxu0 0.0
    %514 = vmatprep.subr.mxu0 0.0
    %515 = vmatpush2.msra.mxu0 0.0
    %516 = vmatprep.subr.mxu0 0.0
    %517 = vmatpush2.msra.mxu0 0.0
    %518 = vmatprep.subr.mxu0 0.0
    %519 = vmatpush2.msra.mxu0 0.0
    %520 = vmatprep.subr.mxu0 0.0
    %521 = vmatpush2.msra.mxu0 0.0
    %522 = vmatprep.subr.mxu0 0.0
    %523 = vmatpush2.msra.mxu0 0.0
    %524 = vmatprep.subr.mxu0 0.0
    %525 = vmatpush2.msra.mxu0 0.0
    %526 = vmatprep.subr.mxu0 0.0
    %527 = vmatpush2.msra.mxu0 0.0
    %528 = vmatprep.subr.mxu0 0.0
    %529 = vmatpush2.msra.mxu0 0.0
    %530 = vmatprep.subr.mxu0 0.0
    %531 = vmatpush2.msra.mxu0 0.0
    %532 = vmatprep.mubr.f32.mxu0 0.0
    %533 = vmatmul.mubr.f32.gmra.mxu0 %v463
    %v534 = vpop.f32.mrf.mxu0
    %v535 = vadd.f32 0.0, %v534
    %v536 = vpop.f32.mrf.mxu0
    %537 = vmatprep.mubr.f32.mxu0 0.0
    %538 = vmatmul.mubr.f32.gmra.mxu0 %v466
    %v539 = vpop.f32.mrf.mxu0
    %v540 = vadd.f32 0.0, %v539
    %v541 = vpop.f32.mrf.mxu0
    %542 = vdwg.mxu0
    %543 = vrot.lane.b32.xlu0 %v242, 112
    %v544 = vpop.permute.xlu0 %543
    %545 = vrot.lane.b32.xlu0 %v248, 112
    %v546 = vpop.permute.xlu0 %545
    %547 = vrot.lane.b32.xlu0 %v244, 112
    %v548 = vpop.permute.xlu0 %547
    %549 = vrot.lane.b32.xlu0 %v250, 112
    %v550 = vpop.permute.xlu0 %549
    %v551 = vsel %vm350, %v544, 0
    %v553 = vsel %vm350, %v546, 0
    %v555 = vsel %vm350, %v548, 0
    %v557 = vsel %vm350, %v550, 0
    %559 = vmatprep.subr.mxu0 0.0
    %560 = vmatpush1.xpose.msra.mxu0 0.0
    %561 = vmatprep.subr.mxu0 0.0
    %562 = vmatpush1.xpose.msra.mxu0 0.0
    %563 = vmatprep.subr.mxu0 0.0
    %564 = vmatpush1.xpose.msra.mxu0 0.0
    %565 = vmatprep.subr.mxu0 0.0
    %566 = vmatpush1.xpose.msra.mxu0 0.0
    %567 = vmatprep.subr.mxu0 0.0
    %568 = vmatpush1.xpose.msra.mxu0 0.0
    %569 = vmatprep.subr.mxu0 0.0
    %570 = vmatpush1.xpose.msra.mxu0 0.0
    %571 = vmatprep.subr.mxu0 0.0
    %572 = vmatpush1.xpose.msra.mxu0 0.0
    %573 = vmatprep.subr.mxu0 0.0
    %574 = vmatpush1.xpose.msra.mxu0 0.0
    %575 = vmatprep.subr.mxu0 0.0
    %576 = vmatpush1.xpose.msra.mxu0 0.0
    %577 = vmatprep.subr.mxu0 0.0
    %578 = vmatpush1.xpose.msra.mxu0 0.0
    %579 = vmatprep.subr.mxu0 0.0
    %580 = vmatpush1.xpose.msra.mxu0 0.0
    %581 = vmatprep.subr.mxu0 0.0
    %582 = vmatpush1.xpose.msra.mxu0 0.0
    %583 = vmatprep.subr.mxu0 0.0
    %584 = vmatpush1.xpose.msra.mxu0 0.0
    %585 = vmatprep.subr.mxu0 0.0
    %586 = vmatpush1.xpose.msra.mxu0 0.0
    %587 = vmatprep.subr.mxu0 0.0
    %588 = vmatpush1.xpose.msra.mxu0 %v557
    %589 = vmatprep.subr.mxu0 0.0
    %590 = vmatpush1.xpose.msra.mxu0 %v555
    %591 = vmatprep.subr.mxu0 0.0
    %592 = vmatpush2.xpose.msra.mxu0 0.0
    %593 = vmatprep.subr.mxu0 0.0
    %594 = vmatpush2.xpose.msra.mxu0 0.0
    %595 = vmatprep.subr.mxu0 0.0
    %596 = vmatpush2.xpose.msra.mxu0 0.0
    %597 = vmatprep.subr.mxu0 0.0
    %598 = vmatpush2.xpose.msra.mxu0 0.0
    %599 = vmatprep.subr.mxu0 0.0
    %600 = vmatpush2.xpose.msra.mxu0 0.0
    %601 = vmatprep.subr.mxu0 0.0
    %602 = vmatpush2.xpose.msra.mxu0 0.0
    %603 = vmatprep.subr.mxu0 0.0
    %604 = vmatpush2.xpose.msra.mxu0 0.0
    %605 = vmatprep.subr.mxu0 0.0
    %606 = vmatpush2.xpose.msra.mxu0 0.0
    %607 = vmatprep.subr.mxu0 0.0
    %608 = vmatpush2.xpose.msra.mxu0 0.0
    %609 = vmatprep.subr.mxu0 0.0
    %610 = vmatpush2.xpose.msra.mxu0 0.0
    %611 = vmatprep.subr.mxu0 0.0
    %612 = vmatpush2.xpose.msra.mxu0 0.0
    %613 = vmatprep.subr.mxu0 0.0
    %614 = vmatpush2.xpose.msra.mxu0 0.0
    %615 = vmatprep.subr.mxu0 0.0
    %616 = vmatpush2.xpose.msra.mxu0 0.0
    %617 = vmatprep.subr.mxu0 0.0
    %618 = vmatpush2.xpose.msra.mxu0 0.0
    %619 = vmatprep.subr.mxu0 0.0
    %620 = vmatpush2.xpose.msra.mxu0 0.0
    %621 = vmatprep.subr.mxu0 0.0
    %622 = vmatpush2.xpose.msra.mxu0 0.0
    %623 = vmatprep.mubr.f32.mxu0 0.0
    %624 = vmatmul.mubr.f32.gmra.mxu0 %v551
    %v625 = vpop.f32.mrf.mxu0
    %v626 = vadd.f32 0.0, %v625
    %v627 = vpop.f32.mrf.mxu0
    %628 = vmatprep.mubr.f32.mxu0 0.0
    %629 = vmatmul.mubr.f32.gmra.mxu0 %v553
    %v630 = vpop.f32.mrf.mxu0
    %v631 = vadd.f32 0.0, %v630
    %v632 = vpop.f32.mrf.mxu0
    %633 = vdwg.mxu0
    %v634 = vmul.f32 %v626, 0.2581989
    %v635 = vmul.f32 %v631, 0.2581989
    %v636 = vsel %vm350, %v634, -inf
    %637 = vmax.xlane.f32.xlu0 %v636
    %v638 = vpop.xlane.xlu0 %637
    %v639 = vsel %vm350, %v635, -inf
    %640 = vmax.xlane.f32.xlu0 %v639
    %v641 = vpop.xlane.xlu0 %640
    %v642 = vsub.f32 %v634, %v638
    %v643 = vsub.f32 %v635, %v641
    %v644 = vmul.f32 %v642, 1.442695
    %v645 = vpow.pop %v644
    %v646 = vmul.f32 %v643, 1.442695
    %v647 = vpow.pop %v646
    %v648 = vsel %vm350, %v645, 0.0
    %649 = vadd.xlane.f32.xlu0 %v648
    %v650 = vpop.xlane.xlu0 %649
    %v651 = vsel %vm350, %v647, 0.0
    %652 = vadd.xlane.f32.xlu0 %v651
    %v653 = vpop.xlane.xlu0 %652
    %v654 = vrcp.pop %v650
    %v655 = vrcp.pop %v653
    %v656 = vmul.f32 %v645, %v654
    %v657 = vmul.f32 %v647, %v655
    %660 = vrot.lane.b32.xlu0 %v331, 112
    %v661 = vpop.permute.xlu0 %660
    %662 = vrot.lane.b32.xlu0 %v336, 112
    %v663 = vpop.permute.xlu0 %662
    %v667 = vsel %vm350, %v656, 0
    %v670 = vsel %vm350, %v657, 0
    %672 = vmatprep.subr.mxu0 0.0
    %673 = vmatpush1.msra.mxu0 0.0
    %674 = vmatprep.subr.mxu0 0.0
    %675 = vmatpush1.msra.mxu0 0.0
    %676 = vmatprep.subr.mxu0 0.0
    %677 = vmatpush1.msra.mxu0 0.0
    %678 = vmatprep.subr.mxu0 0.0
    %679 = vmatpush1.msra.mxu0 0.0
    %680 = vmatprep.subr.mxu0 0.0
    %681 = vmatpush1.msra.mxu0 0.0
    %682 = vmatprep.subr.mxu0 0.0
    %683 = vmatpush1.msra.mxu0 0.0
    %684 = vmatprep.subr.mxu0 0.0
    %685 = vmatpush1.msra.mxu0 0.0
    %686 = vmatprep.subr.mxu0 0.0
    %687 = vmatpush1.msra.mxu0 0.0
    %688 = vmatprep.subr.mxu0 0.0
    %689 = vmatpush1.msra.mxu0 0.0
    %690 = vmatprep.subr.mxu0 0.0
    %691 = vmatpush1.msra.mxu0 0.0
    %692 = vmatprep.subr.mxu0 0.0
    %693 = vmatpush1.msra.mxu0 0.0
    %694 = vmatprep.subr.mxu0 0.0
    %695 = vmatpush1.msra.mxu0 0.0
    %696 = vmatprep.subr.mxu0 0.0
    %697 = vmatpush1.msra.mxu0 0.0
    %698 = vmatprep.subr.mxu0 0.0
    %699 = vmatpush1.msra.mxu0 0.0
    %700 = vmatprep.subr.mxu0 0.0
    %701 = vmatpush1.msra.mxu0 %v663
    %702 = vmatprep.subr.mxu0 0.0
    %703 = vmatpush1.msra.mxu0 %v661
    %704 = vmatprep.subr.mxu0 0.0
    %705 = vmatpush2.msra.mxu0 0.0
    %706 = vmatprep.subr.mxu0 0.0
    %707 = vmatpush2.msra.mxu0 0.0
    %708 = vmatprep.subr.mxu0 0.0
    %709 = vmatpush2.msra.mxu0 0.0
    %710 = vmatprep.subr.mxu0 0.0
    %711 = vmatpush2.msra.mxu0 0.0
    %712 = vmatprep.subr.mxu0 0.0
    %713 = vmatpush2.msra.mxu0 0.0
    %714 = vmatprep.subr.mxu0 0.0
    %715 = vmatpush2.msra.mxu0 0.0
    %716 = vmatprep.subr.mxu0 0.0
    %717 = vmatpush2.msra.mxu0 0.0
    %718 = vmatprep.subr.mxu0 0.0
    %719 = vmatpush2.msra.mxu0 0.0
    %720 = vmatprep.subr.mxu0 0.0
    %721 = vmatpush2.msra.mxu0 0.0
    %722 = vmatprep.subr.mxu0 0.0
    %723 = vmatpush2.msra.mxu0 0.0
    %724 = vmatprep.subr.mxu0 0.0
    %725 = vmatpush2.msra.mxu0 0.0
    %726 = vmatprep.subr.mxu0 0.0
    %727 = vmatpush2.msra.mxu0 0.0
    %728 = vmatprep.subr.mxu0 0.0
    %729 = vmatpush2.msra.mxu0 0.0
    %730 = vmatprep.subr.mxu0 0.0
    %731 = vmatpush2.msra.mxu0 0.0
    %732 = vmatprep.subr.mxu0 0.0
    %733 = vmatpush2.msra.mxu0 0.0
    %734 = vmatprep.subr.mxu0 0.0
    %735 = vmatpush2.msra.mxu0 0.0
    %736 = vmatprep.mubr.f32.mxu0 0.0
    %737 = vmatmul.mubr.f32.gmra.mxu0 %v667
    %v738 = vpop.f32.mrf.mxu0
    %v739 = vadd.f32 0.0, %v738
    %v740 = vpop.f32.mrf.mxu0
    %741 = vmatprep.mubr.f32.mxu0 0.0
    %742 = vmatmul.mubr.f32.gmra.mxu0 %v670
    %v743 = vpop.f32.mrf.mxu0
    %v744 = vadd.f32 0.0, %v743
    %v745 = vpop.f32.mrf.mxu0
    %746 = vdwg.mxu0
    %v748 = vlaneseq
    %v749 = vshrl.u32 %v748, 7
    %v750 = vsub.s32 0, %v749
    %v751 = vrot.slane %v349, %v750
    %752 = vrot.lane.b32.xlu0 %v751, 112
    %v753 = vpop.permute.xlu0 %752
    %v754 = vsel %vm350, %v753, 0
    %v757 = vsel %vm350, %v739, 0
    %v760 = vsel %vm350, %v744, 0
    %762 = vmatprep.subr.mxu0 0.0
    %763 = vmatpush1.xpose.msra.mxu0 0.0
    %764 = vmatprep.subr.mxu0 0.0
    %765 = vmatpush1.xpose.msra.mxu0 0.0
    %766 = vmatprep.subr.mxu0 0.0
    %767 = vmatpush1.xpose.msra.mxu0 0.0
    %768 = vmatprep.subr.mxu0 0.0
    %769 = vmatpush1.xpose.msra.mxu0 0.0
    %770 = vmatprep.subr.mxu0 0.0
    %771 = vmatpush1.xpose.msra.mxu0 0.0
    %772 = vmatprep.subr.mxu0 0.0
    %773 = vmatpush1.xpose.msra.mxu0 0.0
    %774 = vmatprep.subr.mxu0 0.0
    %775 = vmatpush1.xpose.msra.mxu0 0.0
    %776 = vmatprep.subr.mxu0 0.0
    %777 = vmatpush1.xpose.msra.mxu0 0.0
    %778 = vmatprep.subr.mxu0 0.0
    %779 = vmatpush1.xpose.msra.mxu0 0.0
    %780 = vmatprep.subr.mxu0 0.0
    %781 = vmatpush1.xpose.msra.mxu0 0.0
    %782 = vmatprep.subr.mxu0 0.0
    %783 = vmatpush1.xpose.msra.mxu0 0.0
    %784 = vmatprep.subr.mxu0 0.0
    %785 = vmatpush1.xpose.msra.mxu0 0.0
    %786 = vmatprep.subr.mxu0 0.0
    %787 = vmatpush1.xpose.msra.mxu0 0.0
    %788 = vmatprep.subr.mxu0 0.0
    %789 = vmatpush1.xpose.msra.mxu0 0.0
    %790 = vmatprep.subr.mxu0 0.0
    %791 = vmatpush1.xpose.msra.mxu0 %v760
    %792 = vmatprep.subr.mxu0 0.0
    %793 = vmatpush1.xpose.msra.mxu0 %v757
    %794 = vmatprep.subr.mxu0 0.0
    %795 = vmatpush2.xpose.msra.mxu0 0.0
    %796 = vmatprep.subr.mxu0 0.0
    %797 = vmatpush2.xpose.msra.mxu0 0.0
    %798 = vmatprep.subr.mxu0 0.0
    %799 = vmatpush2.xpose.msra.mxu0 0.0
    %800 = vmatprep.subr.mxu0 0.0
    %801 = vmatpush2.xpose.msra.mxu0 0.0
    %802 = vmatprep.subr.mxu0 0.0
    %803 = vmatpush2.xpose.msra.mxu0 0.0
    %804 = vmatprep.subr.mxu0 0.0
    %805 = vmatpush2.xpose.msra.mxu0 0.0
    %806 = vmatprep.subr.mxu0 0.0
    %807 = vmatpush2.xpose.msra.mxu0 0.0
    %808 = vmatprep.subr.mxu0 0.0
    %809 = vmatpush2.xpose.msra.mxu0 0.0
    %810 = vmatprep.subr.mxu0 0.0
    %811 = vmatpush2.xpose.msra.mxu0 0.0
    %812 = vmatprep.subr.mxu0 0.0
    %813 = vmatpush2.xpose.msra.mxu0 0.0
    %814 = vmatprep.subr.mxu0 0.0
    %815 = vmatpush2.xpose.msra.mxu0 0.0
    %816 = vmatprep.subr.mxu0 0.0
    %817 = vmatpush2.xpose.msra.mxu0 0.0
    %818 = vmatprep.subr.mxu0 0.0
    %819 = vmatpush2.xpose.msra.mxu0 0.0
    %820 = vmatprep.subr.mxu0 0.0
    %821 = vmatpush2.xpose.msra.mxu0 0.0
    %822 = vmatprep.subr.mxu0 0.0
    %823 = vmatpush2.xpose.msra.mxu0 0.0
    %824 = vmatprep.subr.mxu0 0.0
    %825 = vmatpush2.xpose.msra.mxu0 0.0
    %826 = vmatprep.mubr.f32.mxu0 0.0
    %827 = vmatmul.mubr.f32.gmra.mxu0 %v754
    %v828 = vpop.f32.mrf.mxu0
    %v829 = vadd.f32 0.0, %v828
    %v830 = vpop.f32.mrf.mxu0
    %831 = vdwg.mxu0
    %v832 = vsel %vm350, %v349, 0
    %v835 = vsel %vm350, %v535, 0
    %v838 = vsel %vm350, %v540, 0
    %840 = vmatprep.subr.mxu0 0.0
    %841 = vmatpush1.xpose.msra.mxu0 0.0
    %842 = vmatprep.subr.mxu0 0.0
    %843 = vmatpush1.xpose.msra.mxu0 0.0
    %844 = vmatprep.subr.mxu0 0.0
    %845 = vmatpush1.xpose.msra.mxu0 0.0
    %846 = vmatprep.subr.mxu0 0.0
    %847 = vmatpush1.xpose.msra.mxu0 0.0
    %848 = vmatprep.subr.mxu0 0.0
    %849 = vmatpush1.xpose.msra.mxu0 0.0
    %850 = vmatprep.subr.mxu0 0.0
    %851 = vmatpush1.xpose.msra.mxu0 0.0
    %852 = vmatprep.subr.mxu0 0.0
    %853 = vmatpush1.xpose.msra.mxu0 0.0
    %854 = vmatprep.subr.mxu0 0.0
    %855 = vmatpush1.xpose.msra.mxu0 0.0
    %856 = vmatprep.subr.mxu0 0.0
    %857 = vmatpush1.xpose.msra.mxu0 0.0
    %858 = vmatprep.subr.mxu0 0.0
    %859 = vmatpush1.xpose.msra.mxu0 0.0
    %860 = vmatprep.subr.mxu0 0.0
    %861 = vmatpush1.xpose.msra.mxu0 0.0
    %862 = vmatprep.subr.mxu0 0.0
    %863 = vmatpush1.xpose.msra.mxu0 0.0
    %864 = vmatprep.subr.mxu0 0.0
    %865 = vmatpush1.xpose.msra.mxu0 0.0
    %866 = vmatprep.subr.mxu0 0.0
    %867 = vmatpush1.xpose.msra.mxu0 0.0
    %868 = vmatprep.subr.mxu0 0.0
    %869 = vmatpush1.xpose.msra.mxu0 %v838
    %870 = vmatprep.subr.mxu0 0.0
    %871 = vmatpush1.xpose.msra.mxu0 %v835
    %872 = vmatprep.subr.mxu0 0.0
    %873 = vmatpush2.xpose.msra.mxu0 0.0
    %874 = vmatprep.subr.mxu0 0.0
    %875 = vmatpush2.xpose.msra.mxu0 0.0
    %876 = vmatprep.subr.mxu0 0.0
    %877 = vmatpush2.xpose.msra.mxu0 0.0
    %878 = vmatprep.subr.mxu0 0.0
    %879 = vmatpush2.xpose.msra.mxu0 0.0
    %880 = vmatprep.subr.mxu0 0.0
    %881 = vmatpush2.xpose.msra.mxu0 0.0
    %882 = vmatprep.subr.mxu0 0.0
    %883 = vmatpush2.xpose.msra.mxu0 0.0
    %884 = vmatprep.subr.mxu0 0.0
    %885 = vmatpush2.xpose.msra.mxu0 0.0
    %886 = vmatprep.subr.mxu0 0.0
    %887 = vmatpush2.xpose.msra.mxu0 0.0
    %888 = vmatprep.subr.mxu0 0.0
    %889 = vmatpush2.xpose.msra.mxu0 0.0
    %890 = vmatprep.subr.mxu0 0.0
    %891 = vmatpush2.xpose.msra.mxu0 0.0
    %892 = vmatprep.subr.mxu0 0.0
    %893 = vmatpush2.xpose.msra.mxu0 0.0
    %894 = vmatprep.subr.mxu0 0.0
    %895 = vmatpush2.xpose.msra.mxu0 0.0
    %896 = vmatprep.subr.mxu0 0.0
    %897 = vmatpush2.xpose.msra.mxu0 0.0
    %898 = vmatprep.subr.mxu0 0.0
    %899 = vmatpush2.xpose.msra.mxu0 0.0
    %900 = vmatprep.subr.mxu0 0.0
    %901 = vmatpush2.xpose.msra.mxu0 0.0
    %902 = vmatprep.subr.mxu0 0.0
    %903 = vmatpush2.xpose.msra.mxu0 0.0
    %904 = vmatprep.mubr.f32.mxu0 0.0
    %905 = vmatmul.mubr.f32.gmra.mxu0 %v832
    %v906 = vpop.f32.mrf.mxu0
    %v907 = vadd.f32 %v829, %v906
    %v908 = vpop.f32.mrf.mxu0
    %909 = vdwg.mxu0
    %910 = vrot.lane.b32.xlu0 %v242, 96
    %v911 = vpop.permute.xlu0 %910
    %912 = vrot.lane.b32.xlu0 %v248, 96
    %v913 = vpop.permute.xlu0 %912
    %914 = vrot.lane.b32.xlu0 %v244, 96
    %v915 = vpop.permute.xlu0 %914
    %916 = vrot.lane.b32.xlu0 %v250, 96
    %v917 = vpop.permute.xlu0 %916
    %v918 = vsel %vm350, %v911, 0
    %v920 = vsel %vm350, %v913, 0
    %v922 = vsel %vm350, %v915, 0
    %v924 = vsel %vm350, %v917, 0
    %926 = vmatprep.subr.mxu0 0.0
    %927 = vmatpush1.xpose.msra.mxu0 0.0
    %928 = vmatprep.subr.mxu0 0.0
    %929 = vmatpush1.xpose.msra.mxu0 0.0
    %930 = vmatprep.subr.mxu0 0.0
    %931 = vmatpush1.xpose.msra.mxu0 0.0
    %932 = vmatprep.subr.mxu0 0.0
    %933 = vmatpush1.xpose.msra.mxu0 0.0
    %934 = vmatprep.subr.mxu0 0.0
    %935 = vmatpush1.xpose.msra.mxu0 0.0
    %936 = vmatprep.subr.mxu0 0.0
    %937 = vmatpush1.xpose.msra.mxu0 0.0
    %938 = vmatprep.subr.mxu0 0.0
    %939 = vmatpush1.xpose.msra.mxu0 0.0
    %940 = vmatprep.subr.mxu0 0.0
    %941 = vmatpush1.xpose.msra.mxu0 0.0
    %942 = vmatprep.subr.mxu0 0.0
    %943 = vmatpush1.xpose.msra.mxu0 0.0
    %944 = vmatprep.subr.mxu0 0.0
    %945 = vmatpush1.xpose.msra.mxu0 0.0
    %946 = vmatprep.subr.mxu0 0.0
    %947 = vmatpush1.xpose.msra.mxu0 0.0
    %948 = vmatprep.subr.mxu0 0.0
    %949 = vmatpush1.xpose.msra.mxu0 0.0
    %950 = vmatprep.subr.mxu0 0.0
    %951 = vmatpush1.xpose.msra.mxu0 0.0
    %952 = vmatprep.subr.mxu0 0.0
    %953 = vmatpush1.xpose.msra.mxu0 0.0
    %954 = vmatprep.subr.mxu0 0.0
    %955 = vmatpush1.xpose.msra.mxu0 %v924
    %956 = vmatprep.subr.mxu0 0.0
    %957 = vmatpush1.xpose.msra.mxu0 %v922
    %958 = vmatprep.subr.mxu0 0.0
    %959 = vmatpush2.xpose.msra.mxu0 0.0
    %960 = vmatprep.subr.mxu0 0.0
    %961 = vmatpush2.xpose.msra.mxu0 0.0
    %962 = vmatprep.subr.mxu0 0.0
    %963 = vmatpush2.xpose.msra.mxu0 0.0
    %964 = vmatprep.subr.mxu0 0.0
    %965 = vmatpush2.xpose.msra.mxu0 0.0
    %966 = vmatprep.subr.mxu0 0.0
    %967 = vmatpush2.xpose.msra.mxu0 0.0
    %968 = vmatprep.subr.mxu0 0.0
    %969 = vmatpush2.xpose.msra.mxu0 0.0
    %970 = vmatprep.subr.mxu0 0.0
    %971 = vmatpush2.xpose.msra.mxu0 0.0
    %972 = vmatprep.subr.mxu0 0.0
    %973 = vmatpush2.xpose.msra.mxu0 0.0
    %974 = vmatprep.subr.mxu0 0.0
    %975 = vmatpush2.xpose.msra.mxu0 0.0
    %976 = vmatprep.subr.mxu0 0.0
    %977 = vmatpush2.xpose.msra.mxu0 0.0
    %978 = vmatprep.subr.mxu0 0.0
    %979 = vmatpush2.xpose.msra.mxu0 0.0
    %980 = vmatprep.subr.mxu0 0.0
    %981 = vmatpush2.xpose.msra.mxu0 0.0
    %982 = vmatprep.subr.mxu0 0.0
    %983 = vmatpush2.xpose.msra.mxu0 0.0
    %984 = vmatprep.subr.mxu0 0.0
    %985 = vmatpush2.xpose.msra.mxu0 0.0
    %986 = vmatprep.subr.mxu0 0.0
    %987 = vmatpush2.xpose.msra.mxu0 0.0
    %988 = vmatprep.subr.mxu0 0.0
    %989 = vmatpush2.xpose.msra.mxu0 0.0
    %990 = vmatprep.mubr.f32.mxu0 0.0
    %991 = vmatmul.mubr.f32.gmra.mxu0 %v918
    %v992 = vpop.f32.mrf.mxu0
    %v993 = vadd.f32 0.0, %v992
    %v994 = vpop.f32.mrf.mxu0
    %995 = vmatprep.mubr.f32.mxu0 0.0
    %996 = vmatmul.mubr.f32.gmra.mxu0 %v920
    %v997 = vpop.f32.mrf.mxu0
    %v998 = vadd.f32 0.0, %v997
    %v999 = vpop.f32.mrf.mxu0
    %1000 = vdwg.mxu0
    %v1001 = vmul.f32 %v993, 0.2581989
    %v1002 = vmul.f32 %v998, 0.2581989
    %v1003 = vsel %vm350, %v1001, -inf
    %1004 = vmax.xlane.f32.xlu0 %v1003
    %v1005 = vpop.xlane.xlu0 %1004
    %v1006 = vsel %vm350, %v1002, -inf
    %1007 = vmax.xlane.f32.xlu0 %v1006
    %v1008 = vpop.xlane.xlu0 %1007
    %v1009 = vsub.f32 %v1001, %v1005
    %v1010 = vsub.f32 %v1002, %v1008
    %v1011 = vmul.f32 %v1009, 1.442695
    %v1012 = vpow.pop %v1011
    %v1013 = vmul.f32 %v1010, 1.442695
    %v1014 = vpow.pop %v1013
    %v1015 = vsel %vm350, %v1012, 0.0
    %1016 = vadd.xlane.f32.xlu0 %v1015
    %v1017 = vpop.xlane.xlu0 %1016
    %v1018 = vsel %vm350, %v1014, 0.0
    %1019 = vadd.xlane.f32.xlu0 %v1018
    %v1020 = vpop.xlane.xlu0 %1019
    %v1021 = vrcp.pop %v1017
    %v1022 = vrcp.pop %v1020
    %v1023 = vmul.f32 %v1012, %v1021
    %v1024 = vmul.f32 %v1014, %v1022
    %1025 = vrot.lane.b32.xlu0 %v331, 96
    %v1026 = vpop.permute.xlu0 %1025
    %1027 = vrot.lane.b32.xlu0 %v336, 96
    %v1028 = vpop.permute.xlu0 %1027
    %v1032 = vsel %vm350, %v1023, 0
    %v1035 = vsel %vm350, %v1024, 0
    %1037 = vmatprep.subr.mxu0 0.0
    %1038 = vmatpush1.msra.mxu0 0.0
    %1039 = vmatprep.subr.mxu0 0.0
    %1040 = vmatpush1.msra.mxu0 0.0
    %1041 = vmatprep.subr.mxu0 0.0
    %1042 = vmatpush1.msra.mxu0 0.0
    %1043 = vmatprep.subr.mxu0 0.0
    %1044 = vmatpush1.msra.mxu0 0.0
    %1045 = vmatprep.subr.mxu0 0.0
    %1046 = vmatpush1.msra.mxu0 0.0
    %1047 = vmatprep.subr.mxu0 0.0
    %1048 = vmatpush1.msra.mxu0 0.0
    %1049 = vmatprep.subr.mxu0 0.0
    %1050 = vmatpush1.msra.mxu0 0.0
    %1051 = vmatprep.subr.mxu0 0.0
    %1052 = vmatpush1.msra.mxu0 0.0
    %1053 = vmatprep.subr.mxu0 0.0
    %1054 = vmatpush1.msra.mxu0 0.0
    %1055 = vmatprep.subr.mxu0 0.0
    %1056 = vmatpush1.msra.mxu0 0.0
    %1057 = vmatprep.subr.mxu0 0.0
    %1058 = vmatpush1.msra.mxu0 0.0
    %1059 = vmatprep.subr.mxu0 0.0
    %1060 = vmatpush1.msra.mxu0 0.0
    %1061 = vmatprep.subr.mxu0 0.0
    %1062 = vmatpush1.msra.mxu0 0.0
    %1063 = vmatprep.subr.mxu0 0.0
    %1064 = vmatpush1.msra.mxu0 0.0
    %1065 = vmatprep.subr.mxu0 0.0
    %1066 = vmatpush1.msra.mxu0 %v1028
    %1067 = vmatprep.subr.mxu0 0.0
    %1068 = vmatpush1.msra.mxu0 %v1026
    %1069 = vmatprep.subr.mxu0 0.0
    %1070 = vmatpush2.msra.mxu0 0.0
    %1071 = vmatprep.subr.mxu0 0.0
    %1072 = vmatpush2.msra.mxu0 0.0
    %1073 = vmatprep.subr.mxu0 0.0
    %1074 = vmatpush2.msra.mxu0 0.0
    %1075 = vmatprep.subr.mxu0 0.0
    %1076 = vmatpush2.msra.mxu0 0.0
    %1077 = vmatprep.subr.mxu0 0.0
    %1078 = vmatpush2.msra.mxu0 0.0
    %1079 = vmatprep.subr.mxu0 0.0
    %1080 = vmatpush2.msra.mxu0 0.0
    %1081 = vmatprep.subr.mxu0 0.0
    %1082 = vmatpush2.msra.mxu0 0.0
    %1083 = vmatprep.subr.mxu0 0.0
    %1084 = vmatpush2.msra.mxu0 0.0
    %1085 = vmatprep.subr.mxu0 0.0
    %1086 = vmatpush2.msra.mxu0 0.0
    %1087 = vmatprep.subr.mxu0 0.0
    %1088 = vmatpush2.msra.mxu0 0.0
    %1089 = vmatprep.subr.mxu0 0.0
    %1090 = vmatpush2.msra.mxu0 0.0
    %1091 = vmatprep.subr.mxu0 0.0
    %1092 = vmatpush2.msra.mxu0 0.0
    %1093 = vmatprep.subr.mxu0 0.0
    %1094 = vmatpush2.msra.mxu0 0.0
    %1095 = vmatprep.subr.mxu0 0.0
    %1096 = vmatpush2.msra.mxu0 0.0
    %1097 = vmatprep.subr.mxu0 0.0
    %1098 = vmatpush2.msra.mxu0 0.0
    %1099 = vmatprep.subr.mxu0 0.0
    %1100 = vmatpush2.msra.mxu0 0.0
    %1101 = vmatprep.mubr.f32.mxu0 0.0
    %1102 = vmatmul.mubr.f32.gmra.mxu0 %v1032
    %v1103 = vpop.f32.mrf.mxu0
    %v1104 = vadd.f32 0.0, %v1103
    %v1105 = vpop.f32.mrf.mxu0
    %1106 = vmatprep.mubr.f32.mxu0 0.0
    %1107 = vmatmul.mubr.f32.gmra.mxu0 %v1035
    %v1108 = vpop.f32.mrf.mxu0
    %v1109 = vadd.f32 0.0, %v1108
    %v1110 = vpop.f32.mrf.mxu0
    %1111 = vdwg.mxu0
    %1112 = vrot.lane.b32.xlu0 %v751, 96
    %v1113 = vpop.permute.xlu0 %1112
    %v1114 = vsel %vm350, %v1113, 0
    %v1117 = vsel %vm350, %v1104, 0
    %v1120 = vsel %vm350, %v1109, 0
    %1122 = vmatprep.subr.mxu0 0.0
    %1123 = vmatpush1.xpose.msra.mxu0 0.0
    %1124 = vmatprep.subr.mxu0 0.0
    %1125 = vmatpush1.xpose.msra.mxu0 0.0
    %1126 = vmatprep.subr.mxu0 0.0
    %1127 = vmatpush1.xpose.msra.mxu0 0.0
    %1128 = vmatprep.subr.mxu0 0.0
    %1129 = vmatpush1.xpose.msra.mxu0 0.0
    %1130 = vmatprep.subr.mxu0 0.0
    %1131 = vmatpush1.xpose.msra.mxu0 0.0
    %1132 = vmatprep.subr.mxu0 0.0
    %1133 = vmatpush1.xpose.msra.mxu0 0.0
    %1134 = vmatprep.subr.mxu0 0.0
    %1135 = vmatpush1.xpose.msra.mxu0 0.0
    %1136 = vmatprep.subr.mxu0 0.0
    %1137 = vmatpush1.xpose.msra.mxu0 0.0
    %1138 = vmatprep.subr.mxu0 0.0
    %1139 = vmatpush1.xpose.msra.mxu0 0.0
    %1140 = vmatprep.subr.mxu0 0.0
    %1141 = vmatpush1.xpose.msra.mxu0 0.0
    %1142 = vmatprep.subr.mxu0 0.0
    %1143 = vmatpush1.xpose.msra.mxu0 0.0
    %1144 = vmatprep.subr.mxu0 0.0
    %1145 = vmatpush1.xpose.msra.mxu0 0.0
    %1146 = vmatprep.subr.mxu0 0.0
    %1147 = vmatpush1.xpose.msra.mxu0 0.0
    %1148 = vmatprep.subr.mxu0 0.0
    %1149 = vmatpush1.xpose.msra.mxu0 0.0
    %1150 = vmatprep.subr.mxu0 0.0
    %1151 = vmatpush1.xpose.msra.mxu0 %v1120
    %1152 = vmatprep.subr.mxu0 0.0
    %1153 = vmatpush1.xpose.msra.mxu0 %v1117
    %1154 = vmatprep.subr.mxu0 0.0
    %1155 = vmatpush2.xpose.msra.mxu0 0.0
    %1156 = vmatprep.subr.mxu0 0.0
    %1157 = vmatpush2.xpose.msra.mxu0 0.0
    %1158 = vmatprep.subr.mxu0 0.0
    %1159 = vmatpush2.xpose.msra.mxu0 0.0
    %1160 = vmatprep.subr.mxu0 0.0
    %1161 = vmatpush2.xpose.msra.mxu0 0.0
    %1162 = vmatprep.subr.mxu0 0.0
    %1163 = vmatpush2.xpose.msra.mxu0 0.0
    %1164 = vmatprep.subr.mxu0 0.0
    %1165 = vmatpush2.xpose.msra.mxu0 0.0
    %1166 = vmatprep.subr.mxu0 0.0
    %1167 = vmatpush2.xpose.msra.mxu0 0.0
    %1168 = vmatprep.subr.mxu0 0.0
    %1169 = vmatpush2.xpose.msra.mxu0 0.0
    %1170 = vmatprep.subr.mxu0 0.0
    %1171 = vmatpush2.xpose.msra.mxu0 0.0
    %1172 = vmatprep.subr.mxu0 0.0
    %1173 = vmatpush2.xpose.msra.mxu0 0.0
    %1174 = vmatprep.subr.mxu0 0.0
    %1175 = vmatpush2.xpose.msra.mxu0 0.0
    %1176 = vmatprep.subr.mxu0 0.0
    %1177 = vmatpush2.xpose.msra.mxu0 0.0
    %1178 = vmatprep.subr.mxu0 0.0
    %1179 = vmatpush2.xpose.msra.mxu0 0.0
    %1180 = vmatprep.subr.mxu0 0.0
    %1181 = vmatpush2.xpose.msra.mxu0 0.0
    %1182 = vmatprep.subr.mxu0 0.0
    %1183 = vmatpush2.xpose.msra.mxu0 0.0
    %1184 = vmatprep.subr.mxu0 0.0
    %1185 = vmatpush2.xpose.msra.mxu0 0.0
    %1186 = vmatprep.mubr.f32.mxu0 0.0
    %1187 = vmatmul.mubr.f32.gmra.mxu0 %v1114
    %v1188 = vpop.f32.mrf.mxu0
    %v1189 = vadd.f32 0.0, %v1188
    %v1190 = vpop.f32.mrf.mxu0
    %1191 = vdwg.mxu0
    %v1192 = vadd.f32 %v907, %v1189
    %1193 = vrot.lane.b32.xlu0 %v242, 80
    %v1194 = vpop.permute.xlu0 %1193
    %1195 = vrot.lane.b32.xlu0 %v248, 80
    %v1196 = vpop.permute.xlu0 %1195
    %1197 = vrot.lane.b32.xlu0 %v244, 80
    %v1198 = vpop.permute.xlu0 %1197
    %1199 = vrot.lane.b32.xlu0 %v250, 80
    %v1200 = vpop.permute.xlu0 %1199
    %v1201 = vsel %vm350, %v1194, 0
    %v1203 = vsel %vm350, %v1196, 0
    %v1205 = vsel %vm350, %v1198, 0
    %v1207 = vsel %vm350, %v1200, 0
    %1209 = vmatprep.subr.mxu0 0.0
    %1210 = vmatpush1.xpose.msra.mxu0 0.0
    %1211 = vmatprep.subr.mxu0 0.0
    %1212 = vmatpush1.xpose.msra.mxu0 0.0
    %1213 = vmatprep.subr.mxu0 0.0
    %1214 = vmatpush1.xpose.msra.mxu0 0.0
    %1215 = vmatprep.subr.mxu0 0.0
    %1216 = vmatpush1.xpose.msra.mxu0 0.0
    %1217 = vmatprep.subr.mxu0 0.0
    %1218 = vmatpush1.xpose.msra.mxu0 0.0
    %1219 = vmatprep.subr.mxu0 0.0
    %1220 = vmatpush1.xpose.msra.mxu0 0.0
    %1221 = vmatprep.subr.mxu0 0.0
    %1222 = vmatpush1.xpose.msra.mxu0 0.0
    %1223 = vmatprep.subr.mxu0 0.0
    %1224 = vmatpush1.xpose.msra.mxu0 0.0
    %1225 = vmatprep.subr.mxu0 0.0
    %1226 = vmatpush1.xpose.msra.mxu0 0.0
    %1227 = vmatprep.subr.mxu0 0.0
    %1228 = vmatpush1.xpose.msra.mxu0 0.0
    %1229 = vmatprep.subr.mxu0 0.0
    %1230 = vmatpush1.xpose.msra.mxu0 0.0
    %1231 = vmatprep.subr.mxu0 0.0
    %1232 = vmatpush1.xpose.msra.mxu0 0.0
    %1233 = vmatprep.subr.mxu0 0.0
    %1234 = vmatpush1.xpose.msra.mxu0 0.0
    %1235 = vmatprep.subr.mxu0 0.0
    %1236 = vmatpush1.xpose.msra.mxu0 0.0
    %1237 = vmatprep.subr.mxu0 0.0
    %1238 = vmatpush1.xpose.msra.mxu0 %v1207
    %1239 = vmatprep.subr.mxu0 0.0
    %1240 = vmatpush1.xpose.msra.mxu0 %v1205
    %1241 = vmatprep.subr.mxu0 0.0
    %1242 = vmatpush2.xpose.msra.mxu0 0.0
    %1243 = vmatprep.subr.mxu0 0.0
    %1244 = vmatpush2.xpose.msra.mxu0 0.0
    %1245 = vmatprep.subr.mxu0 0.0
    %1246 = vmatpush2.xpose.msra.mxu0 0.0
    %1247 = vmatprep.subr.mxu0 0.0
    %1248 = vmatpush2.xpose.msra.mxu0 0.0
    %1249 = vmatprep.subr.mxu0 0.0
    %1250 = vmatpush2.xpose.msra.mxu0 0.0
    %1251 = vmatprep.subr.mxu0 0.0
    %1252 = vmatpush2.xpose.msra.mxu0 0.0
    %1253 = vmatprep.subr.mxu0 0.0
    %1254 = vmatpush2.xpose.msra.mxu0 0.0
    %1255 = vmatprep.subr.mxu0 0.0
    %1256 = vmatpush2.xpose.msra.mxu0 0.0
    %1257 = vmatprep.subr.mxu0 0.0
    %1258 = vmatpush2.xpose.msra.mxu0 0.0
    %1259 = vmatprep.subr.mxu0 0.0
    %1260 = vmatpush2.xpose.msra.mxu0 0.0
    %1261 = vmatprep.subr.mxu0 0.0
    %1262 = vmatpush2.xpose.msra.mxu0 0.0
    %1263 = vmatprep.subr.mxu0 0.0
    %1264 = vmatpush2.xpose.msra.mxu0 0.0
    %1265 = vmatprep.subr.mxu0 0.0
    %1266 = vmatpush2.xpose.msra.mxu0 0.0
    %1267 = vmatprep.subr.mxu0 0.0
    %1268 = vmatpush2.xpose.msra.mxu0 0.0
    %1269 = vmatprep.subr.mxu0 0.0
    %1270 = vmatpush2.xpose.msra.mxu0 0.0
    %1271 = vmatprep.subr.mxu0 0.0
    %1272 = vmatpush2.xpose.msra.mxu0 0.0
    %1273 = vmatprep.mubr.f32.mxu0 0.0
    %1274 = vmatmul.mubr.f32.gmra.mxu0 %v1201
    %v1275 = vpop.f32.mrf.mxu0
    %v1276 = vadd.f32 0.0, %v1275
    %v1277 = vpop.f32.mrf.mxu0
    %1278 = vmatprep.mubr.f32.mxu0 0.0
    %1279 = vmatmul.mubr.f32.gmra.mxu0 %v1203
    %v1280 = vpop.f32.mrf.mxu0
    %v1281 = vadd.f32 0.0, %v1280
    %v1282 = vpop.f32.mrf.mxu0
    %1283 = vdwg.mxu0
    %v1284 = vmul.f32 %v1276, 0.2581989
    %v1285 = vmul.f32 %v1281, 0.2581989
    %v1286 = vsel %vm350, %v1284, -inf
    %1287 = vmax.xlane.f32.xlu0 %v1286
    %v1288 = vpop.xlane.xlu0 %1287
    %v1289 = vsel %vm350, %v1285, -inf
    %1290 = vmax.xlane.f32.xlu0 %v1289
    %v1291 = vpop.xlane.xlu0 %1290
    %v1292 = vsub.f32 %v1284, %v1288
    %v1293 = vsub.f32 %v1285, %v1291
    %v1294 = vmul.f32 %v1292, 1.442695
    %v1295 = vpow.pop %v1294
    %v1296 = vmul.f32 %v1293, 1.442695
    %v1297 = vpow.pop %v1296
    %v1298 = vsel %vm350, %v1295, 0.0
    %1299 = vadd.xlane.f32.xlu0 %v1298
    %v1300 = vpop.xlane.xlu0 %1299
    %v1301 = vsel %vm350, %v1297, 0.0
    %1302 = vadd.xlane.f32.xlu0 %v1301
    %v1303 = vpop.xlane.xlu0 %1302
    %v1304 = vrcp.pop %v1300
    %v1305 = vrcp.pop %v1303
    %v1306 = vmul.f32 %v1295, %v1304
    %v1307 = vmul.f32 %v1297, %v1305
    %1308 = vrot.lane.b32.xlu0 %v331, 80
    %v1309 = vpop.permute.xlu0 %1308
    %1310 = vrot.lane.b32.xlu0 %v336, 80
    %v1311 = vpop.permute.xlu0 %1310
    %v1315 = vsel %vm350, %v1306, 0
    %v1318 = vsel %vm350, %v1307, 0
    %1320 = vmatprep.subr.mxu0 0.0
    %1321 = vmatpush1.msra.mxu0 0.0
    %1322 = vmatprep.subr.mxu0 0.0
    %1323 = vmatpush1.msra.mxu0 0.0
    %1324 = vmatprep.subr.mxu0 0.0
    %1325 = vmatpush1.msra.mxu0 0.0
    %1326 = vmatprep.subr.mxu0 0.0
    %1327 = vmatpush1.msra.mxu0 0.0
    %1328 = vmatprep.subr.mxu0 0.0
    %1329 = vmatpush1.msra.mxu0 0.0
    %1330 = vmatprep.subr.mxu0 0.0
    %1331 = vmatpush1.msra.mxu0 0.0
    %1332 = vmatprep.subr.mxu0 0.0
    %1333 = vmatpush1.msra.mxu0 0.0
    %1334 = vmatprep.subr.mxu0 0.0
    %1335 = vmatpush1.msra.mxu0 0.0
    %1336 = vmatprep.subr.mxu0 0.0
    %1337 = vmatpush1.msra.mxu0 0.0
    %1338 = vmatprep.subr.mxu0 0.0
    %1339 = vmatpush1.msra.mxu0 0.0
    %1340 = vmatprep.subr.mxu0 0.0
    %1341 = vmatpush1.msra.mxu0 0.0
    %1342 = vmatprep.subr.mxu0 0.0
    %1343 = vmatpush1.msra.mxu0 0.0
    %1344 = vmatprep.subr.mxu0 0.0
    %1345 = vmatpush1.msra.mxu0 0.0
    %1346 = vmatprep.subr.mxu0 0.0
    %1347 = vmatpush1.msra.mxu0 0.0
    %1348 = vmatprep.subr.mxu0 0.0
    %1349 = vmatpush1.msra.mxu0 %v1311
    %1350 = vmatprep.subr.mxu0 0.0
    %1351 = vmatpush1.msra.mxu0 %v1309
    %1352 = vmatprep.subr.mxu0 0.0
    %1353 = vmatpush2.msra.mxu0 0.0
    %1354 = vmatprep.subr.mxu0 0.0
    %1355 = vmatpush2.msra.mxu0 0.0
    %1356 = vmatprep.subr.mxu0 0.0
    %1357 = vmatpush2.msra.mxu0 0.0
    %1358 = vmatprep.subr.mxu0 0.0
    %1359 = vmatpush2.msra.mxu0 0.0
    %1360 = vmatprep.subr.mxu0 0.0
    %1361 = vmatpush2.msra.mxu0 0.0
    %1362 = vmatprep.subr.mxu0 0.0
    %1363 = vmatpush2.msra.mxu0 0.0
    %1364 = vmatprep.subr.mxu0 0.0
    %1365 = vmatpush2.msra.mxu0 0.0
    %1366 = vmatprep.subr.mxu0 0.0
    %1367 = vmatpush2.msra.mxu0 0.0
    %1368 = vmatprep.subr.mxu0 0.0
    %1369 = vmatpush2.msra.mxu0 0.0
    %1370 = vmatprep.subr.mxu0 0.0
    %1371 = vmatpush2.msra.mxu0 0.0
    %1372 = vmatprep.subr.mxu0 0.0
    %1373 = vmatpush2.msra.mxu0 0.0
    %1374 = vmatprep.subr.mxu0 0.0
    %1375 = vmatpush2.msra.mxu0 0.0
    %1376 = vmatprep.subr.mxu0 0.0
    %1377 = vmatpush2.msra.mxu0 0.0
    %1378 = vmatprep.subr.mxu0 0.0
    %1379 = vmatpush2.msra.mxu0 0.0
    %1380 = vmatprep.subr.mxu0 0.0
    %1381 = vmatpush2.msra.mxu0 0.0
    %1382 = vmatprep.subr.mxu0 0.0
    %1383 = vmatpush2.msra.mxu0 0.0
    %1384 = vmatprep.mubr.f32.mxu0 0.0
    %1385 = vmatmul.mubr.f32.gmra.mxu0 %v1315
    %v1386 = vpop.f32.mrf.mxu0
    %v1387 = vadd.f32 0.0, %v1386
    %v1388 = vpop.f32.mrf.mxu0
    %1389 = vmatprep.mubr.f32.mxu0 0.0
    %1390 = vmatmul.mubr.f32.gmra.mxu0 %v1318
    %v1391 = vpop.f32.mrf.mxu0
    %v1392 = vadd.f32 0.0, %v1391
    %v1393 = vpop.f32.mrf.mxu0
    %1394 = vdwg.mxu0
    %1395 = vrot.lane.b32.xlu0 %v751, 80
    %v1396 = vpop.permute.xlu0 %1395
    %v1397 = vsel %vm350, %v1396, 0
    %v1400 = vsel %vm350, %v1387, 0
    %v1403 = vsel %vm350, %v1392, 0
    %1405 = vmatprep.subr.mxu0 0.0
    %1406 = vmatpush1.xpose.msra.mxu0 0.0
    %1407 = vmatprep.subr.mxu0 0.0
    %1408 = vmatpush1.xpose.msra.mxu0 0.0
    %1409 = vmatprep.subr.mxu0 0.0
    %1410 = vmatpush1.xpose.msra.mxu0 0.0
    %1411 = vmatprep.subr.mxu0 0.0
    %1412 = vmatpush1.xpose.msra.mxu0 0.0
    %1413 = vmatprep.subr.mxu0 0.0
    %1414 = vmatpush1.xpose.msra.mxu0 0.0
    %1415 = vmatprep.subr.mxu0 0.0
    %1416 = vmatpush1.xpose.msra.mxu0 0.0
    %1417 = vmatprep.subr.mxu0 0.0
    %1418 = vmatpush1.xpose.msra.mxu0 0.0
    %1419 = vmatprep.subr.mxu0 0.0
    %1420 = vmatpush1.xpose.msra.mxu0 0.0
    %1421 = vmatprep.subr.mxu0 0.0
    %1422 = vmatpush1.xpose.msra.mxu0 0.0
    %1423 = vmatprep.subr.mxu0 0.0
    %1424 = vmatpush1.xpose.msra.mxu0 0.0
    %1425 = vmatprep.subr.mxu0 0.0
    %1426 = vmatpush1.xpose.msra.mxu0 0.0
    %1427 = vmatprep.subr.mxu0 0.0
    %1428 = vmatpush1.xpose.msra.mxu0 0.0
    %1429 = vmatprep.subr.mxu0 0.0
    %1430 = vmatpush1.xpose.msra.mxu0 0.0
    %1431 = vmatprep.subr.mxu0 0.0
    %1432 = vmatpush1.xpose.msra.mxu0 0.0
    %1433 = vmatprep.subr.mxu0 0.0
    %1434 = vmatpush1.xpose.msra.mxu0 %v1403
    %1435 = vmatprep.subr.mxu0 0.0
    %1436 = vmatpush1.xpose.msra.mxu0 %v1400
    %1437 = vmatprep.subr.mxu0 0.0
    %1438 = vmatpush2.xpose.msra.mxu0 0.0
    %1439 = vmatprep.subr.mxu0 0.0
    %1440 = vmatpush2.xpose.msra.mxu0 0.0
    %1441 = vmatprep.subr.mxu0 0.0
    %1442 = vmatpush2.xpose.msra.mxu0 0.0
    %1443 = vmatprep.subr.mxu0 0.0
    %1444 = vmatpush2.xpose.msra.mxu0 0.0
    %1445 = vmatprep.subr.mxu0 0.0
    %1446 = vmatpush2.xpose.msra.mxu0 0.0
    %1447 = vmatprep.subr.mxu0 0.0
    %1448 = vmatpush2.xpose.msra.mxu0 0.0
    %1449 = vmatprep.subr.mxu0 0.0
    %1450 = vmatpush2.xpose.msra.mxu0 0.0
    %1451 = vmatprep.subr.mxu0 0.0
    %1452 = vmatpush2.xpose.msra.mxu0 0.0
    %1453 = vmatprep.subr.mxu0 0.0
    %1454 = vmatpush2.xpose.msra.mxu0 0.0
    %1455 = vmatprep.subr.mxu0 0.0
    %1456 = vmatpush2.xpose.msra.mxu0 0.0
    %1457 = vmatprep.subr.mxu0 0.0
    %1458 = vmatpush2.xpose.msra.mxu0 0.0
    %1459 = vmatprep.subr.mxu0 0.0
    %1460 = vmatpush2.xpose.msra.mxu0 0.0
    %1461 = vmatprep.subr.mxu0 0.0
    %1462 = vmatpush2.xpose.msra.mxu0 0.0
    %1463 = vmatprep.subr.mxu0 0.0
    %1464 = vmatpush2.xpose.msra.mxu0 0.0
    %1465 = vmatprep.subr.mxu0 0.0
    %1466 = vmatpush2.xpose.msra.mxu0 0.0
    %1467 = vmatprep.subr.mxu0 0.0
    %1468 = vmatpush2.xpose.msra.mxu0 0.0
    %1469 = vmatprep.mubr.f32.mxu0 0.0
    %1470 = vmatmul.mubr.f32.gmra.mxu0 %v1397
    %v1471 = vpop.f32.mrf.mxu0
    %v1472 = vadd.f32 0.0, %v1471
    %v1473 = vpop.f32.mrf.mxu0
    %1474 = vdwg.mxu0
    %v1475 = vadd.f32 %v1192, %v1472
    %1476 = vrot.lane.b32.xlu0 %v242, 64
    %v1477 = vpop.permute.xlu0 %1476
    %1478 = vrot.lane.b32.xlu0 %v248, 64
    %v1479 = vpop.permute.xlu0 %1478
    %1480 = vrot.lane.b32.xlu0 %v244, 64
    %v1481 = vpop.permute.xlu0 %1480
    %1482 = vrot.lane.b32.xlu0 %v250, 64
    %v1483 = vpop.permute.xlu0 %1482
    %v1484 = vsel %vm350, %v1477, 0
    %v1486 = vsel %vm350, %v1479, 0
    %v1488 = vsel %vm350, %v1481, 0
    %v1490 = vsel %vm350, %v1483, 0
    %1492 = vmatprep.subr.mxu0 0.0
    %1493 = vmatpush1.xpose.msra.mxu0 0.0
    %1494 = vmatprep.subr.mxu0 0.0
    %1495 = vmatpush1.xpose.msra.mxu0 0.0
    %1496 = vmatprep.subr.mxu0 0.0
    %1497 = vmatpush1.xpose.msra.mxu0 0.0
    %1498 = vmatprep.subr.mxu0 0.0
    %1499 = vmatpush1.xpose.msra.mxu0 0.0
    %1500 = vmatprep.subr.mxu0 0.0
    %1501 = vmatpush1.xpose.msra.mxu0 0.0
    %1502 = vmatprep.subr.mxu0 0.0
    %1503 = vmatpush1.xpose.msra.mxu0 0.0
    %1504 = vmatprep.subr.mxu0 0.0
    %1505 = vmatpush1.xpose.msra.mxu0 0.0
    %1506 = vmatprep.subr.mxu0 0.0
    %1507 = vmatpush1.xpose.msra.mxu0 0.0
    %1508 = vmatprep.subr.mxu0 0.0
    %1509 = vmatpush1.xpose.msra.mxu0 0.0
    %1510 = vmatprep.subr.mxu0 0.0
    %1511 = vmatpush1.xpose.msra.mxu0 0.0
    %1512 = vmatprep.subr.mxu0 0.0
    %1513 = vmatpush1.xpose.msra.mxu0 0.0
    %1514 = vmatprep.subr.mxu0 0.0
    %1515 = vmatpush1.xpose.msra.mxu0 0.0
    %1516 = vmatprep.subr.mxu0 0.0
    %1517 = vmatpush1.xpose.msra.mxu0 0.0
    %1518 = vmatprep.subr.mxu0 0.0
    %1519 = vmatpush1.xpose.msra.mxu0 0.0
    %1520 = vmatprep.subr.mxu0 0.0
    %1521 = vmatpush1.xpose.msra.mxu0 %v1490
    %1522 = vmatprep.subr.mxu0 0.0
    %1523 = vmatpush1.xpose.msra.mxu0 %v1488
    %1524 = vmatprep.subr.mxu0 0.0
    %1525 = vmatpush2.xpose.msra.mxu0 0.0
    %1526 = vmatprep.subr.mxu0 0.0
    %1527 = vmatpush2.xpose.msra.mxu0 0.0
    %1528 = vmatprep.subr.mxu0 0.0
    %1529 = vmatpush2.xpose.msra.mxu0 0.0
    %1530 = vmatprep.subr.mxu0 0.0
    %1531 = vmatpush2.xpose.msra.mxu0 0.0
    %1532 = vmatprep.subr.mxu0 0.0
    %1533 = vmatpush2.xpose.msra.mxu0 0.0
    %1534 = vmatprep.subr.mxu0 0.0
    %1535 = vmatpush2.xpose.msra.mxu0 0.0
    %1536 = vmatprep.subr.mxu0 0.0
    %1537 = vmatpush2.xpose.msra.mxu0 0.0
    %1538 = vmatprep.subr.mxu0 0.0
    %1539 = vmatpush2.xpose.msra.mxu0 0.0
    %1540 = vmatprep.subr.mxu0 0.0
    %1541 = vmatpush2.xpose.msra.mxu0 0.0
    %1542 = vmatprep.subr.mxu0 0.0
    %1543 = vmatpush2.xpose.msra.mxu0 0.0
    %1544 = vmatprep.subr.mxu0 0.0
    %1545 = vmatpush2.xpose.msra.mxu0 0.0
    %1546 = vmatprep.subr.mxu0 0.0
    %1547 = vmatpush2.xpose.msra.mxu0 0.0
    %1548 = vmatprep.subr.mxu0 0.0
    %1549 = vmatpush2.xpose.msra.mxu0 0.0
    %1550 = vmatprep.subr.mxu0 0.0
    %1551 = vmatpush2.xpose.msra.mxu0 0.0
    %1552 = vmatprep.subr.mxu0 0.0
    %1553 = vmatpush2.xpose.msra.mxu0 0.0
    %1554 = vmatprep.subr.mxu0 0.0
    %1555 = vmatpush2.xpose.msra.mxu0 0.0
    %1556 = vmatprep.mubr.f32.mxu0 0.0
    %1557 = vmatmul.mubr.f32.gmra.mxu0 %v1484
    %v1558 = vpop.f32.mrf.mxu0
    %v1559 = vadd.f32 0.0, %v1558
    %v1560 = vpop.f32.mrf.mxu0
    %1561 = vmatprep.mubr.f32.mxu0 0.0
    %1562 = vmatmul.mubr.f32.gmra.mxu0 %v1486
    %v1563 = vpop.f32.mrf.mxu0
    %v1564 = vadd.f32 0.0, %v1563
    %v1565 = vpop.f32.mrf.mxu0
    %1566 = vdwg.mxu0
    %v1567 = vmul.f32 %v1559, 0.2581989
    %v1568 = vmul.f32 %v1564, 0.2581989
    %v1569 = vsel %vm350, %v1567, -inf
    %1570 = vmax.xlane.f32.xlu0 %v1569
    %v1571 = vpop.xlane.xlu0 %1570
    %v1572 = vsel %vm350, %v1568, -inf
    %1573 = vmax.xlane.f32.xlu0 %v1572
    %v1574 = vpop.xlane.xlu0 %1573
    %v1575 = vsub.f32 %v1567, %v1571
    %v1576 = vsub.f32 %v1568, %v1574
    %v1577 = vmul.f32 %v1575, 1.442695
    %v1578 = vpow.pop %v1577
    %v1579 = vmul.f32 %v1576, 1.442695
    %v1580 = vpow.pop %v1579
    %v1581 = vsel %vm350, %v1578, 0.0
    %1582 = vadd.xlane.f32.xlu0 %v1581
    %v1583 = vpop.xlane.xlu0 %1582
    %v1584 = vsel %vm350, %v1580, 0.0
    %1585 = vadd.xlane.f32.xlu0 %v1584
    %v1586 = vpop.xlane.xlu0 %1585
    %v1587 = vrcp.pop %v1583
    %v1588 = vrcp.pop %v1586
    %v1589 = vmul.f32 %v1578, %v1587
    %v1590 = vmul.f32 %v1580, %v1588
    %1591 = vrot.lane.b32.xlu0 %v331, 64
    %v1592 = vpop.permute.xlu0 %1591
    %1593 = vrot.lane.b32.xlu0 %v336, 64
    %v1594 = vpop.permute.xlu0 %1593
    %v1598 = vsel %vm350, %v1589, 0
    %v1601 = vsel %vm350, %v1590, 0
    %1603 = vmatprep.subr.mxu0 0.0
    %1604 = vmatpush1.msra.mxu0 0.0
    %1605 = vmatprep.subr.mxu0 0.0
    %1606 = vmatpush1.msra.mxu0 0.0
    %1607 = vmatprep.subr.mxu0 0.0
    %1608 = vmatpush1.msra.mxu0 0.0
    %1609 = vmatprep.subr.mxu0 0.0
    %1610 = vmatpush1.msra.mxu0 0.0
    %1611 = vmatprep.subr.mxu0 0.0
    %1612 = vmatpush1.msra.mxu0 0.0
    %1613 = vmatprep.subr.mxu0 0.0
    %1614 = vmatpush1.msra.mxu0 0.0
    %1615 = vmatprep.subr.mxu0 0.0
    %1616 = vmatpush1.msra.mxu0 0.0
    %1617 = vmatprep.subr.mxu0 0.0
    %1618 = vmatpush1.msra.mxu0 0.0
    %1619 = vmatprep.subr.mxu0 0.0
    %1620 = vmatpush1.msra.mxu0 0.0
    %1621 = vmatprep.subr.mxu0 0.0
    %1622 = vmatpush1.msra.mxu0 0.0
    %1623 = vmatprep.subr.mxu0 0.0
    %1624 = vmatpush1.msra.mxu0 0.0
    %1625 = vmatprep.subr.mxu0 0.0
    %1626 = vmatpush1.msra.mxu0 0.0
    %1627 = vmatprep.subr.mxu0 0.0
    %1628 = vmatpush1.msra.mxu0 0.0
    %1629 = vmatprep.subr.mxu0 0.0
    %1630 = vmatpush1.msra.mxu0 0.0
    %1631 = vmatprep.subr.mxu0 0.0
    %1632 = vmatpush1.msra.mxu0 %v1594
    %1633 = vmatprep.subr.mxu0 0.0
    %1634 = vmatpush1.msra.mxu0 %v1592
    %1635 = vmatprep.subr.mxu0 0.0
    %1636 = vmatpush2.msra.mxu0 0.0
    %1637 = vmatprep.subr.mxu0 0.0
    %1638 = vmatpush2.msra.mxu0 0.0
    %1639 = vmatprep.subr.mxu0 0.0
    %1640 = vmatpush2.msra.mxu0 0.0
    %1641 = vmatprep.subr.mxu0 0.0
    %1642 = vmatpush2.msra.mxu0 0.0
    %1643 = vmatprep.subr.mxu0 0.0
    %1644 = vmatpush2.msra.mxu0 0.0
    %1645 = vmatprep.subr.mxu0 0.0
    %1646 = vmatpush2.msra.mxu0 0.0
    %1647 = vmatprep.subr.mxu0 0.0
    %1648 = vmatpush2.msra.mxu0 0.0
    %1649 = vmatprep.subr.mxu0 0.0
    %1650 = vmatpush2.msra.mxu0 0.0
    %1651 = vmatprep.subr.mxu0 0.0
    %1652 = vmatpush2.msra.mxu0 0.0
    %1653 = vmatprep.subr.mxu0 0.0
    %1654 = vmatpush2.msra.mxu0 0.0
    %1655 = vmatprep.subr.mxu0 0.0
    %1656 = vmatpush2.msra.mxu0 0.0
    %1657 = vmatprep.subr.mxu0 0.0
    %1658 = vmatpush2.msra.mxu0 0.0
    %1659 = vmatprep.subr.mxu0 0.0
    %1660 = vmatpush2.msra.mxu0 0.0
    %1661 = vmatprep.subr.mxu0 0.0
    %1662 = vmatpush2.msra.mxu0 0.0
    %1663 = vmatprep.subr.mxu0 0.0
    %1664 = vmatpush2.msra.mxu0 0.0
    %1665 = vmatprep.subr.mxu0 0.0
    %1666 = vmatpush2.msra.mxu0 0.0
    %1667 = vmatprep.mubr.f32.mxu0 0.0
    %1668 = vmatmul.mubr.f32.gmra.mxu0 %v1598
    %v1669 = vpop.f32.mrf.mxu0
    %v1670 = vadd.f32 0.0, %v1669
    %v1671 = vpop.f32.mrf.mxu0
    %1672 = vmatprep.mubr.f32.mxu0 0.0
    %1673 = vmatmul.mubr.f32.gmra.mxu0 %v1601
    %v1674 = vpop.f32.mrf.mxu0
    %v1675 = vadd.f32 0.0, %v1674
    %v1676 = vpop.f32.mrf.mxu0
    %1677 = vdwg.mxu0
    %1678 = vrot.lane.b32.xlu0 %v751, 64
    %v1679 = vpop.permute.xlu0 %1678
    %v1680 = vsel %vm350, %v1679, 0
    %v1683 = vsel %vm350, %v1670, 0
    %v1686 = vsel %vm350, %v1675, 0
    %1688 = vmatprep.subr.mxu0 0.0
    %1689 = vmatpush1.xpose.msra.mxu0 0.0
    %1690 = vmatprep.subr.mxu0 0.0
    %1691 = vmatpush1.xpose.msra.mxu0 0.0
    %1692 = vmatprep.subr.mxu0 0.0
    %1693 = vmatpush1.xpose.msra.mxu0 0.0
    %1694 = vmatprep.subr.mxu0 0.0
    %1695 = vmatpush1.xpose.msra.mxu0 0.0
    %1696 = vmatprep.subr.mxu0 0.0
    %1697 = vmatpush1.xpose.msra.mxu0 0.0
    %1698 = vmatprep.subr.mxu0 0.0
    %1699 = vmatpush1.xpose.msra.mxu0 0.0
    %1700 = vmatprep.subr.mxu0 0.0
    %1701 = vmatpush1.xpose.msra.mxu0 0.0
    %1702 = vmatprep.subr.mxu0 0.0
    %1703 = vmatpush1.xpose.msra.mxu0 0.0
    %1704 = vmatprep.subr.mxu0 0.0
    %1705 = vmatpush1.xpose.msra.mxu0 0.0
    %1706 = vmatprep.subr.mxu0 0.0
    %1707 = vmatpush1.xpose.msra.mxu0 0.0
    %1708 = vmatprep.subr.mxu0 0.0
    %1709 = vmatpush1.xpose.msra.mxu0 0.0
    %1710 = vmatprep.subr.mxu0 0.0
    %1711 = vmatpush1.xpose.msra.mxu0 0.0
    %1712 = vmatprep.subr.mxu0 0.0
    %1713 = vmatpush1.xpose.msra.mxu0 0.0
    %1714 = vmatprep.subr.mxu0 0.0
    %1715 = vmatpush1.xpose.msra.mxu0 0.0
    %1716 = vmatprep.subr.mxu0 0.0
    %1717 = vmatpush1.xpose.msra.mxu0 %v1686
    %1718 = vmatprep.subr.mxu0 0.0
    %1719 = vmatpush1.xpose.msra.mxu0 %v1683
    %1720 = vmatprep.subr.mxu0 0.0
    %1721 = vmatpush2.xpose.msra.mxu0 0.0
    %1722 = vmatprep.subr.mxu0 0.0
    %1723 = vmatpush2.xpose.msra.mxu0 0.0
    %1724 = vmatprep.subr.mxu0 0.0
    %1725 = vmatpush2.xpose.msra.mxu0 0.0
    %1726 = vmatprep.subr.mxu0 0.0
    %1727 = vmatpush2.xpose.msra.mxu0 0.0
    %1728 = vmatprep.subr.mxu0 0.0
    %1729 = vmatpush2.xpose.msra.mxu0 0.0
    %1730 = vmatprep.subr.mxu0 0.0
    %1731 = vmatpush2.xpose.msra.mxu0 0.0
    %1732 = vmatprep.subr.mxu0 0.0
    %1733 = vmatpush2.xpose.msra.mxu0 0.0
    %1734 = vmatprep.subr.mxu0 0.0
    %1735 = vmatpush2.xpose.msra.mxu0 0.0
    %1736 = vmatprep.subr.mxu0 0.0
    %1737 = vmatpush2.xpose.msra.mxu0 0.0
    %1738 = vmatprep.subr.mxu0 0.0
    %1739 = vmatpush2.xpose.msra.mxu0 0.0
    %1740 = vmatprep.subr.mxu0 0.0
    %1741 = vmatpush2.xpose.msra.mxu0 0.0
    %1742 = vmatprep.subr.mxu0 0.0
    %1743 = vmatpush2.xpose.msra.mxu0 0.0
    %1744 = vmatprep.subr.mxu0 0.0
    %1745 = vmatpush2.xpose.msra.mxu0 0.0
    %1746 = vmatprep.subr.mxu0 0.0
    %1747 = vmatpush2.xpose.msra.mxu0 0.0
    %1748 = vmatprep.subr.mxu0 0.0
    %1749 = vmatpush2.xpose.msra.mxu0 0.0
    %1750 = vmatprep.subr.mxu0 0.0
    %1751 = vmatpush2.xpose.msra.mxu0 0.0
    %1752 = vmatprep.mubr.f32.mxu0 0.0
    %1753 = vmatmul.mubr.f32.gmra.mxu0 %v1680
    %v1754 = vpop.f32.mrf.mxu0
    %v1755 = vadd.f32 0.0, %v1754
    %v1756 = vpop.f32.mrf.mxu0
    %1757 = vdwg.mxu0
    %v1758 = vadd.f32 %v1475, %v1755
    %1759 = vrot.lane.b32.xlu0 %v242, 48
    %v1760 = vpop.permute.xlu0 %1759
    %1761 = vrot.lane.b32.xlu0 %v248, 48
    %v1762 = vpop.permute.xlu0 %1761
    %1763 = vrot.lane.b32.xlu0 %v244, 48
    %v1764 = vpop.permute.xlu0 %1763
    %1765 = vrot.lane.b32.xlu0 %v250, 48
    %v1766 = vpop.permute.xlu0 %1765
    %v1767 = vsel %vm350, %v1760, 0
    %v1769 = vsel %vm350, %v1762, 0
    %v1771 = vsel %vm350, %v1764, 0
    %v1773 = vsel %vm350, %v1766, 0
    %1775 = vmatprep.subr.mxu0 0.0
    %1776 = vmatpush1.xpose.msra.mxu0 0.0
    %1777 = vmatprep.subr.mxu0 0.0
    %1778 = vmatpush1.xpose.msra.mxu0 0.0
    %1779 = vmatprep.subr.mxu0 0.0
    %1780 = vmatpush1.xpose.msra.mxu0 0.0
    %1781 = vmatprep.subr.mxu0 0.0
    %1782 = vmatpush1.xpose.msra.mxu0 0.0
    %1783 = vmatprep.subr.mxu0 0.0
    %1784 = vmatpush1.xpose.msra.mxu0 0.0
    %1785 = vmatprep.subr.mxu0 0.0
    %1786 = vmatpush1.xpose.msra.mxu0 0.0
    %1787 = vmatprep.subr.mxu0 0.0
    %1788 = vmatpush1.xpose.msra.mxu0 0.0
    %1789 = vmatprep.subr.mxu0 0.0
    %1790 = vmatpush1.xpose.msra.mxu0 0.0
    %1791 = vmatprep.subr.mxu0 0.0
    %1792 = vmatpush1.xpose.msra.mxu0 0.0
    %1793 = vmatprep.subr.mxu0 0.0
    %1794 = vmatpush1.xpose.msra.mxu0 0.0
    %1795 = vmatprep.subr.mxu0 0.0
    %1796 = vmatpush1.xpose.msra.mxu0 0.0
    %1797 = vmatprep.subr.mxu0 0.0
    %1798 = vmatpush1.xpose.msra.mxu0 0.0
    %1799 = vmatprep.subr.mxu0 0.0
    %1800 = vmatpush1.xpose.msra.mxu0 0.0
    %1801 = vmatprep.subr.mxu0 0.0
    %1802 = vmatpush1.xpose.msra.mxu0 0.0
    %1803 = vmatprep.subr.mxu0 0.0
    %1804 = vmatpush1.xpose.msra.mxu0 %v1773
    %1805 = vmatprep.subr.mxu0 0.0
    %1806 = vmatpush1.xpose.msra.mxu0 %v1771
    %1807 = vmatprep.subr.mxu0 0.0
    %1808 = vmatpush2.xpose.msra.mxu0 0.0
    %1809 = vmatprep.subr.mxu0 0.0
    %1810 = vmatpush2.xpose.msra.mxu0 0.0
    %1811 = vmatprep.subr.mxu0 0.0
    %1812 = vmatpush2.xpose.msra.mxu0 0.0
    %1813 = vmatprep.subr.mxu0 0.0
    %1814 = vmatpush2.xpose.msra.mxu0 0.0
    %1815 = vmatprep.subr.mxu0 0.0
    %1816 = vmatpush2.xpose.msra.mxu0 0.0
    %1817 = vmatprep.subr.mxu0 0.0
    %1818 = vmatpush2.xpose.msra.mxu0 0.0
    %1819 = vmatprep.subr.mxu0 0.0
    %1820 = vmatpush2.xpose.msra.mxu0 0.0
    %1821 = vmatprep.subr.mxu0 0.0
    %1822 = vmatpush2.xpose.msra.mxu0 0.0
    %1823 = vmatprep.subr.mxu0 0.0
    %1824 = vmatpush2.xpose.msra.mxu0 0.0
    %1825 = vmatprep.subr.mxu0 0.0
    %1826 = vmatpush2.xpose.msra.mxu0 0.0
    %1827 = vmatprep.subr.mxu0 0.0
    %1828 = vmatpush2.xpose.msra.mxu0 0.0
    %1829 = vmatprep.subr.mxu0 0.0
    %1830 = vmatpush2.xpose.msra.mxu0 0.0
    %1831 = vmatprep.subr.mxu0 0.0
    %1832 = vmatpush2.xpose.msra.mxu0 0.0
    %1833 = vmatprep.subr.mxu0 0.0
    %1834 = vmatpush2.xpose.msra.mxu0 0.0
    %1835 = vmatprep.subr.mxu0 0.0
    %1836 = vmatpush2.xpose.msra.mxu0 0.0
    %1837 = vmatprep.subr.mxu0 0.0
    %1838 = vmatpush2.xpose.msra.mxu0 0.0
    %1839 = vmatprep.mubr.f32.mxu0 0.0
    %1840 = vmatmul.mubr.f32.gmra.mxu0 %v1767
    %v1841 = vpop.f32.mrf.mxu0
    %v1842 = vadd.f32 0.0, %v1841
    %v1843 = vpop.f32.mrf.mxu0
    %1844 = vmatprep.mubr.f32.mxu0 0.0
    %1845 = vmatmul.mubr.f32.gmra.mxu0 %v1769
    %v1846 = vpop.f32.mrf.mxu0
    %v1847 = vadd.f32 0.0, %v1846
    %v1848 = vpop.f32.mrf.mxu0
    %1849 = vdwg.mxu0
    %v1850 = vmul.f32 %v1842, 0.2581989
    %v1851 = vmul.f32 %v1847, 0.2581989
    %v1852 = vsel %vm350, %v1850, -inf
    %1853 = vmax.xlane.f32.xlu0 %v1852
    %v1854 = vpop.xlane.xlu0 %1853
    %v1855 = vsel %vm350, %v1851, -inf
    %1856 = vmax.xlane.f32.xlu0 %v1855
    %v1857 = vpop.xlane.xlu0 %1856
    %v1858 = vsub.f32 %v1850, %v1854
    %v1859 = vsub.f32 %v1851, %v1857
    %v1860 = vmul.f32 %v1858, 1.442695
    %v1861 = vpow.pop %v1860
    %v1862 = vmul.f32 %v1859, 1.442695
    %v1863 = vpow.pop %v1862
    %v1864 = vsel %vm350, %v1861, 0.0
    %1865 = vadd.xlane.f32.xlu0 %v1864
    %v1866 = vpop.xlane.xlu0 %1865
    %v1867 = vsel %vm350, %v1863, 0.0
    %1868 = vadd.xlane.f32.xlu0 %v1867
    %v1869 = vpop.xlane.xlu0 %1868
    %v1870 = vrcp.pop %v1866
    %v1871 = vrcp.pop %v1869
    %v1872 = vmul.f32 %v1861, %v1870
    %v1873 = vmul.f32 %v1863, %v1871
    %1874 = vrot.lane.b32.xlu0 %v331, 48
    %v1875 = vpop.permute.xlu0 %1874
    %1876 = vrot.lane.b32.xlu0 %v336, 48
    %v1877 = vpop.permute.xlu0 %1876
    %v1881 = vsel %vm350, %v1872, 0
    %v1884 = vsel %vm350, %v1873, 0
    %1886 = vmatprep.subr.mxu0 0.0
    %1887 = vmatpush1.msra.mxu0 0.0
    %1888 = vmatprep.subr.mxu0 0.0
    %1889 = vmatpush1.msra.mxu0 0.0
    %1890 = vmatprep.subr.mxu0 0.0
    %1891 = vmatpush1.msra.mxu0 0.0
    %1892 = vmatprep.subr.mxu0 0.0
    %1893 = vmatpush1.msra.mxu0 0.0
    %1894 = vmatprep.subr.mxu0 0.0
    %1895 = vmatpush1.msra.mxu0 0.0
    %1896 = vmatprep.subr.mxu0 0.0
    %1897 = vmatpush1.msra.mxu0 0.0
    %1898 = vmatprep.subr.mxu0 0.0
    %1899 = vmatpush1.msra.mxu0 0.0
    %1900 = vmatprep.subr.mxu0 0.0
    %1901 = vmatpush1.msra.mxu0 0.0
    %1902 = vmatprep.subr.mxu0 0.0
    %1903 = vmatpush1.msra.mxu0 0.0
    %1904 = vmatprep.subr.mxu0 0.0
    %1905 = vmatpush1.msra.mxu0 0.0
    %1906 = vmatprep.subr.mxu0 0.0
    %1907 = vmatpush1.msra.mxu0 0.0
    %1908 = vmatprep.subr.mxu0 0.0
    %1909 = vmatpush1.msra.mxu0 0.0
    %1910 = vmatprep.subr.mxu0 0.0
    %1911 = vmatpush1.msra.mxu0 0.0
    %1912 = vmatprep.subr.mxu0 0.0
    %1913 = vmatpush1.msra.mxu0 0.0
    %1914 = vmatprep.subr.mxu0 0.0
    %1915 = vmatpush1.msra.mxu0 %v1877
    %1916 = vmatprep.subr.mxu0 0.0
    %1917 = vmatpush1.msra.mxu0 %v1875
    %1918 = vmatprep.subr.mxu0 0.0
    %1919 = vmatpush2.msra.mxu0 0.0
    %1920 = vmatprep.subr.mxu0 0.0
    %1921 = vmatpush2.msra.mxu0 0.0
    %1922 = vmatprep.subr.mxu0 0.0
    %1923 = vmatpush2.msra.mxu0 0.0
    %1924 = vmatprep.subr.mxu0 0.0
    %1925 = vmatpush2.msra.mxu0 0.0
    %1926 = vmatprep.subr.mxu0 0.0
    %1927 = vmatpush2.msra.mxu0 0.0
    %1928 = vmatprep.subr.mxu0 0.0
    %1929 = vmatpush2.msra.mxu0 0.0
    %1930 = vmatprep.subr.mxu0 0.0
    %1931 = vmatpush2.msra.mxu0 0.0
    %1932 = vmatprep.subr.mxu0 0.0
    %1933 = vmatpush2.msra.mxu0 0.0
    %1934 = vmatprep.subr.mxu0 0.0
    %1935 = vmatpush2.msra.mxu0 0.0
    %1936 = vmatprep.subr.mxu0 0.0
    %1937 = vmatpush2.msra.mxu0 0.0
    %1938 = vmatprep.subr.mxu0 0.0
    %1939 = vmatpush2.msra.mxu0 0.0
    %1940 = vmatprep.subr.mxu0 0.0
    %1941 = vmatpush2.msra.mxu0 0.0
    %1942 = vmatprep.subr.mxu0 0.0
    %1943 = vmatpush2.msra.mxu0 0.0
    %1944 = vmatprep.subr.mxu0 0.0
    %1945 = vmatpush2.msra.mxu0 0.0
    %1946 = vmatprep.subr.mxu0 0.0
    %1947 = vmatpush2.msra.mxu0 0.0
    %1948 = vmatprep.subr.mxu0 0.0
    %1949 = vmatpush2.msra.mxu0 0.0
    %1950 = vmatprep.mubr.f32.mxu0 0.0
    %1951 = vmatmul.mubr.f32.gmra.mxu0 %v1881
    %v1952 = vpop.f32.mrf.mxu0
    %v1953 = vadd.f32 0.0, %v1952
    %v1954 = vpop.f32.mrf.mxu0
    %1955 = vmatprep.mubr.f32.mxu0 0.0
    %1956 = vmatmul.mubr.f32.gmra.mxu0 %v1884
    %v1957 = vpop.f32.mrf.mxu0
    %v1958 = vadd.f32 0.0, %v1957
    %v1959 = vpop.f32.mrf.mxu0
    %1960 = vdwg.mxu0
    %1961 = vrot.lane.b32.xlu0 %v751, 48
    %v1962 = vpop.permute.xlu0 %1961
    %v1963 = vsel %vm350, %v1962, 0
    %v1966 = vsel %vm350, %v1953, 0
    %v1969 = vsel %vm350, %v1958, 0
    %1971 = vmatprep.subr.mxu0 0.0
    %1972 = vmatpush1.xpose.msra.mxu0 0.0
    %1973 = vmatprep.subr.mxu0 0.0
    %1974 = vmatpush1.xpose.msra.mxu0 0.0
    %1975 = vmatprep.subr.mxu0 0.0
    %1976 = vmatpush1.xpose.msra.mxu0 0.0
    %1977 = vmatprep.subr.mxu0 0.0
    %1978 = vmatpush1.xpose.msra.mxu0 0.0
    %1979 = vmatprep.subr.mxu0 0.0
    %1980 = vmatpush1.xpose.msra.mxu0 0.0
    %1981 = vmatprep.subr.mxu0 0.0
    %1982 = vmatpush1.xpose.msra.mxu0 0.0
    %1983 = vmatprep.subr.mxu0 0.0
    %1984 = vmatpush1.xpose.msra.mxu0 0.0
    %1985 = vmatprep.subr.mxu0 0.0
    %1986 = vmatpush1.xpose.msra.mxu0 0.0
    %1987 = vmatprep.subr.mxu0 0.0
    %1988 = vmatpush1.xpose.msra.mxu0 0.0
    %1989 = vmatprep.subr.mxu0 0.0
    %1990 = vmatpush1.xpose.msra.mxu0 0.0
    %1991 = vmatprep.subr.mxu0 0.0
    %1992 = vmatpush1.xpose.msra.mxu0 0.0
    %1993 = vmatprep.subr.mxu0 0.0
    %1994 = vmatpush1.xpose.msra.mxu0 0.0
    %1995 = vmatprep.subr.mxu0 0.0
    %1996 = vmatpush1.xpose.msra.mxu0 0.0
    %1997 = vmatprep.subr.mxu0 0.0
    %1998 = vmatpush1.xpose.msra.mxu0 0.0
    %1999 = vmatprep.subr.mxu0 0.0
    %2000 = vmatpush1.xpose.msra.mxu0 %v1969
    %2001 = vmatprep.subr.mxu0 0.0
    %2002 = vmatpush1.xpose.msra.mxu0 %v1966
    %2003 = vmatprep.subr.mxu0 0.0
    %2004 = vmatpush2.xpose.msra.mxu0 0.0
    %2005 = vmatprep.subr.mxu0 0.0
    %2006 = vmatpush2.xpose.msra.mxu0 0.0
    %2007 = vmatprep.subr.mxu0 0.0
    %2008 = vmatpush2.xpose.msra.mxu0 0.0
    %2009 = vmatprep.subr.mxu0 0.0
    %2010 = vmatpush2.xpose.msra.mxu0 0.0
    %2011 = vmatprep.subr.mxu0 0.0
    %2012 = vmatpush2.xpose.msra.mxu0 0.0
    %2013 = vmatprep.subr.mxu0 0.0
    %2014 = vmatpush2.xpose.msra.mxu0 0.0
    %2015 = vmatprep.subr.mxu0 0.0
    %2016 = vmatpush2.xpose.msra.mxu0 0.0
    %2017 = vmatprep.subr.mxu0 0.0
    %2018 = vmatpush2.xpose.msra.mxu0 0.0
    %2019 = vmatprep.subr.mxu0 0.0
    %2020 = vmatpush2.xpose.msra.mxu0 0.0
    %2021 = vmatprep.subr.mxu0 0.0
    %2022 = vmatpush2.xpose.msra.mxu0 0.0
    %2023 = vmatprep.subr.mxu0 0.0
    %2024 = vmatpush2.xpose.msra.mxu0 0.0
    %2025 = vmatprep.subr.mxu0 0.0
    %2026 = vmatpush2.xpose.msra.mxu0 0.0
    %2027 = vmatprep.subr.mxu0 0.0
    %2028 = vmatpush2.xpose.msra.mxu0 0.0
    %2029 = vmatprep.subr.mxu0 0.0
    %2030 = vmatpush2.xpose.msra.mxu0 0.0
    %2031 = vmatprep.subr.mxu0 0.0
    %2032 = vmatpush2.xpose.msra.mxu0 0.0
    %2033 = vmatprep.subr.mxu0 0.0
    %2034 = vmatpush2.xpose.msra.mxu0 0.0
    %2035 = vmatprep.mubr.f32.mxu0 0.0
    %2036 = vmatmul.mubr.f32.gmra.mxu0 %v1963
    %v2037 = vpop.f32.mrf.mxu0
    %v2038 = vadd.f32 0.0, %v2037
    %v2039 = vpop.f32.mrf.mxu0
    %2040 = vdwg.mxu0
    %v2041 = vadd.f32 %v1758, %v2038
    %2042 = vrot.lane.b32.xlu0 %v242, 32
    %v2043 = vpop.permute.xlu0 %2042
    %2044 = vrot.lane.b32.xlu0 %v248, 32
    %v2045 = vpop.permute.xlu0 %2044
    %2046 = vrot.lane.b32.xlu0 %v244, 32
    %v2047 = vpop.permute.xlu0 %2046
    %2048 = vrot.lane.b32.xlu0 %v250, 32
    %v2049 = vpop.permute.xlu0 %2048
    %v2050 = vsel %vm350, %v2043, 0
    %v2052 = vsel %vm350, %v2045, 0
    %v2054 = vsel %vm350, %v2047, 0
    %v2056 = vsel %vm350, %v2049, 0
    %2058 = vmatprep.subr.mxu0 0.0
    %2059 = vmatpush1.xpose.msra.mxu0 0.0
    %2060 = vmatprep.subr.mxu0 0.0
    %2061 = vmatpush1.xpose.msra.mxu0 0.0
    %2062 = vmatprep.subr.mxu0 0.0
    %2063 = vmatpush1.xpose.msra.mxu0 0.0
    %2064 = vmatprep.subr.mxu0 0.0
    %2065 = vmatpush1.xpose.msra.mxu0 0.0
    %2066 = vmatprep.subr.mxu0 0.0
    %2067 = vmatpush1.xpose.msra.mxu0 0.0
    %2068 = vmatprep.subr.mxu0 0.0
    %2069 = vmatpush1.xpose.msra.mxu0 0.0
    %2070 = vmatprep.subr.mxu0 0.0
    %2071 = vmatpush1.xpose.msra.mxu0 0.0
    %2072 = vmatprep.subr.mxu0 0.0
    %2073 = vmatpush1.xpose.msra.mxu0 0.0
    %2074 = vmatprep.subr.mxu0 0.0
    %2075 = vmatpush1.xpose.msra.mxu0 0.0
    %2076 = vmatprep.subr.mxu0 0.0
    %2077 = vmatpush1.xpose.msra.mxu0 0.0
    %2078 = vmatprep.subr.mxu0 0.0
    %2079 = vmatpush1.xpose.msra.mxu0 0.0
    %2080 = vmatprep.subr.mxu0 0.0
    %2081 = vmatpush1.xpose.msra.mxu0 0.0
    %2082 = vmatprep.subr.mxu0 0.0
    %2083 = vmatpush1.xpose.msra.mxu0 0.0
    %2084 = vmatprep.subr.mxu0 0.0
    %2085 = vmatpush1.xpose.msra.mxu0 0.0
    %2086 = vmatprep.subr.mxu0 0.0
    %2087 = vmatpush1.xpose.msra.mxu0 %v2056
    %2088 = vmatprep.subr.mxu0 0.0
    %2089 = vmatpush1.xpose.msra.mxu0 %v2054
    %2090 = vmatprep.subr.mxu0 0.0
    %2091 = vmatpush2.xpose.msra.mxu0 0.0
    %2092 = vmatprep.subr.mxu0 0.0
    %2093 = vmatpush2.xpose.msra.mxu0 0.0
    %2094 = vmatprep.subr.mxu0 0.0
    %2095 = vmatpush2.xpose.msra.mxu0 0.0
    %2096 = vmatprep.subr.mxu0 0.0
    %2097 = vmatpush2.xpose.msra.mxu0 0.0
    %2098 = vmatprep.subr.mxu0 0.0
    %2099 = vmatpush2.xpose.msra.mxu0 0.0
    %2100 = vmatprep.subr.mxu0 0.0
    %2101 = vmatpush2.xpose.msra.mxu0 0.0
    %2102 = vmatprep.subr.mxu0 0.0
    %2103 = vmatpush2.xpose.msra.mxu0 0.0
    %2104 = vmatprep.subr.mxu0 0.0
    %2105 = vmatpush2.xpose.msra.mxu0 0.0
    %2106 = vmatprep.subr.mxu0 0.0
    %2107 = vmatpush2.xpose.msra.mxu0 0.0
    %2108 = vmatprep.subr.mxu0 0.0
    %2109 = vmatpush2.xpose.msra.mxu0 0.0
    %2110 = vmatprep.subr.mxu0 0.0
    %2111 = vmatpush2.xpose.msra.mxu0 0.0
    %2112 = vmatprep.subr.mxu0 0.0
    %2113 = vmatpush2.xpose.msra.mxu0 0.0
    %2114 = vmatprep.subr.mxu0 0.0
    %2115 = vmatpush2.xpose.msra.mxu0 0.0
    %2116 = vmatprep.subr.mxu0 0.0
    %2117 = vmatpush2.xpose.msra.mxu0 0.0
    %2118 = vmatprep.subr.mxu0 0.0
    %2119 = vmatpush2.xpose.msra.mxu0 0.0
    %2120 = vmatprep.subr.mxu0 0.0
    %2121 = vmatpush2.xpose.msra.mxu0 0.0
    %2122 = vmatprep.mubr.f32.mxu0 0.0
    %2123 = vmatmul.mubr.f32.gmra.mxu0 %v2050
    %v2124 = vpop.f32.mrf.mxu0
    %v2125 = vadd.f32 0.0, %v2124
    %v2126 = vpop.f32.mrf.mxu0
    %2127 = vmatprep.mubr.f32.mxu0 0.0
    %2128 = vmatmul.mubr.f32.gmra.mxu0 %v2052
    %v2129 = vpop.f32.mrf.mxu0
    %v2130 = vadd.f32 0.0, %v2129
    %v2131 = vpop.f32.mrf.mxu0
    %2132 = vdwg.mxu0
    %v2133 = vmul.f32 %v2125, 0.2581989
    %v2134 = vmul.f32 %v2130, 0.2581989
    %v2135 = vsel %vm350, %v2133, -inf
    %2136 = vmax.xlane.f32.xlu0 %v2135
    %v2137 = vpop.xlane.xlu0 %2136
    %v2138 = vsel %vm350, %v2134, -inf
    %2139 = vmax.xlane.f32.xlu0 %v2138
    %v2140 = vpop.xlane.xlu0 %2139
    %v2141 = vsub.f32 %v2133, %v2137
    %v2142 = vsub.f32 %v2134, %v2140
    %v2143 = vmul.f32 %v2141, 1.442695
    %v2144 = vpow.pop %v2143
    %v2145 = vmul.f32 %v2142, 1.442695
    %v2146 = vpow.pop %v2145
    %v2147 = vsel %vm350, %v2144, 0.0
    %2148 = vadd.xlane.f32.xlu0 %v2147
    %v2149 = vpop.xlane.xlu0 %2148
    %v2150 = vsel %vm350, %v2146, 0.0
    %2151 = vadd.xlane.f32.xlu0 %v2150
    %v2152 = vpop.xlane.xlu0 %2151
    %v2153 = vrcp.pop %v2149
    %v2154 = vrcp.pop %v2152
    %v2155 = vmul.f32 %v2144, %v2153
    %v2156 = vmul.f32 %v2146, %v2154
    %2157 = vrot.lane.b32.xlu0 %v331, 32
    %v2158 = vpop.permute.xlu0 %2157
    %2159 = vrot.lane.b32.xlu0 %v336, 32
    %v2160 = vpop.permute.xlu0 %2159
    %v2164 = vsel %vm350, %v2155, 0
    %v2167 = vsel %vm350, %v2156, 0
    %2169 = vmatprep.subr.mxu0 0.0
    %2170 = vmatpush1.msra.mxu0 0.0
    %2171 = vmatprep.subr.mxu0 0.0
    %2172 = vmatpush1.msra.mxu0 0.0
    %2173 = vmatprep.subr.mxu0 0.0
    %2174 = vmatpush1.msra.mxu0 0.0
    %2175 = vmatprep.subr.mxu0 0.0
    %2176 = vmatpush1.msra.mxu0 0.0
    %2177 = vmatprep.subr.mxu0 0.0
    %2178 = vmatpush1.msra.mxu0 0.0
    %2179 = vmatprep.subr.mxu0 0.0
    %2180 = vmatpush1.msra.mxu0 0.0
    %2181 = vmatprep.subr.mxu0 0.0
    %2182 = vmatpush1.msra.mxu0 0.0
    %2183 = vmatprep.subr.mxu0 0.0
    %2184 = vmatpush1.msra.mxu0 0.0
    %2185 = vmatprep.subr.mxu0 0.0
    %2186 = vmatpush1.msra.mxu0 0.0
    %2187 = vmatprep.subr.mxu0 0.0
    %2188 = vmatpush1.msra.mxu0 0.0
    %2189 = vmatprep.subr.mxu0 0.0
    %2190 = vmatpush1.msra.mxu0 0.0
    %2191 = vmatprep.subr.mxu0 0.0
    %2192 = vmatpush1.msra.mxu0 0.0
    %2193 = vmatprep.subr.mxu0 0.0
    %2194 = vmatpush1.msra.mxu0 0.0
    %2195 = vmatprep.subr.mxu0 0.0
    %2196 = vmatpush1.msra.mxu0 0.0
    %2197 = vmatprep.subr.mxu0 0.0
    %2198 = vmatpush1.msra.mxu0 %v2160
    %2199 = vmatprep.subr.mxu0 0.0
    %2200 = vmatpush1.msra.mxu0 %v2158
    %2201 = vmatprep.subr.mxu0 0.0
    %2202 = vmatpush2.msra.mxu0 0.0
    %2203 = vmatprep.subr.mxu0 0.0
    %2204 = vmatpush2.msra.mxu0 0.0
    %2205 = vmatprep.subr.mxu0 0.0
    %2206 = vmatpush2.msra.mxu0 0.0
    %2207 = vmatprep.subr.mxu0 0.0
    %2208 = vmatpush2.msra.mxu0 0.0
    %2209 = vmatprep.subr.mxu0 0.0
    %2210 = vmatpush2.msra.mxu0 0.0
    %2211 = vmatprep.subr.mxu0 0.0
    %2212 = vmatpush2.msra.mxu0 0.0
    %2213 = vmatprep.subr.mxu0 0.0
    %2214 = vmatpush2.msra.mxu0 0.0
    %2215 = vmatprep.subr.mxu0 0.0
    %2216 = vmatpush2.msra.mxu0 0.0
    %2217 = vmatprep.subr.mxu0 0.0
    %2218 = vmatpush2.msra.mxu0 0.0
    %2219 = vmatprep.subr.mxu0 0.0
    %2220 = vmatpush2.msra.mxu0 0.0
    %2221 = vmatprep.subr.mxu0 0.0
    %2222 = vmatpush2.msra.mxu0 0.0
    %2223 = vmatprep.subr.mxu0 0.0
    %2224 = vmatpush2.msra.mxu0 0.0
    %2225 = vmatprep.subr.mxu0 0.0
    %2226 = vmatpush2.msra.mxu0 0.0
    %2227 = vmatprep.subr.mxu0 0.0
    %2228 = vmatpush2.msra.mxu0 0.0
    %2229 = vmatprep.subr.mxu0 0.0
    %2230 = vmatpush2.msra.mxu0 0.0
    %2231 = vmatprep.subr.mxu0 0.0
    %2232 = vmatpush2.msra.mxu0 0.0
    %2233 = vmatprep.mubr.f32.mxu0 0.0
    %2234 = vmatmul.mubr.f32.gmra.mxu0 %v2164
    %v2235 = vpop.f32.mrf.mxu0
    %v2236 = vadd.f32 0.0, %v2235
    %v2237 = vpop.f32.mrf.mxu0
    %2238 = vmatprep.mubr.f32.mxu0 0.0
    %2239 = vmatmul.mubr.f32.gmra.mxu0 %v2167
    %v2240 = vpop.f32.mrf.mxu0
    %v2241 = vadd.f32 0.0, %v2240
    %v2242 = vpop.f32.mrf.mxu0
    %2243 = vdwg.mxu0
    %2244 = vrot.lane.b32.xlu0 %v751, 32
    %v2245 = vpop.permute.xlu0 %2244
    %v2246 = vsel %vm350, %v2245, 0
    %v2249 = vsel %vm350, %v2236, 0
    %v2252 = vsel %vm350, %v2241, 0
    %2254 = vmatprep.subr.mxu0 0.0
    %2255 = vmatpush1.xpose.msra.mxu0 0.0
    %2256 = vmatprep.subr.mxu0 0.0
    %2257 = vmatpush1.xpose.msra.mxu0 0.0
    %2258 = vmatprep.subr.mxu0 0.0
    %2259 = vmatpush1.xpose.msra.mxu0 0.0
    %2260 = vmatprep.subr.mxu0 0.0
    %2261 = vmatpush1.xpose.msra.mxu0 0.0
    %2262 = vmatprep.subr.mxu0 0.0
    %2263 = vmatpush1.xpose.msra.mxu0 0.0
    %2264 = vmatprep.subr.mxu0 0.0
    %2265 = vmatpush1.xpose.msra.mxu0 0.0
    %2266 = vmatprep.subr.mxu0 0.0
    %2267 = vmatpush1.xpose.msra.mxu0 0.0
    %2268 = vmatprep.subr.mxu0 0.0
    %2269 = vmatpush1.xpose.msra.mxu0 0.0
    %2270 = vmatprep.subr.mxu0 0.0
    %2271 = vmatpush1.xpose.msra.mxu0 0.0
    %2272 = vmatprep.subr.mxu0 0.0
    %2273 = vmatpush1.xpose.msra.mxu0 0.0
    %2274 = vmatprep.subr.mxu0 0.0
    %2275 = vmatpush1.xpose.msra.mxu0 0.0
    %2276 = vmatprep.subr.mxu0 0.0
    %2277 = vmatpush1.xpose.msra.mxu0 0.0
    %2278 = vmatprep.subr.mxu0 0.0
    %2279 = vmatpush1.xpose.msra.mxu0 0.0
    %2280 = vmatprep.subr.mxu0 0.0
    %2281 = vmatpush1.xpose.msra.mxu0 0.0
    %2282 = vmatprep.subr.mxu0 0.0
    %2283 = vmatpush1.xpose.msra.mxu0 %v2252
    %2284 = vmatprep.subr.mxu0 0.0
    %2285 = vmatpush1.xpose.msra.mxu0 %v2249
    %2286 = vmatprep.subr.mxu0 0.0
    %2287 = vmatpush2.xpose.msra.mxu0 0.0
    %2288 = vmatprep.subr.mxu0 0.0
    %2289 = vmatpush2.xpose.msra.mxu0 0.0
    %2290 = vmatprep.subr.mxu0 0.0
    %2291 = vmatpush2.xpose.msra.mxu0 0.0
    %2292 = vmatprep.subr.mxu0 0.0
    %2293 = vmatpush2.xpose.msra.mxu0 0.0
    %2294 = vmatprep.subr.mxu0 0.0
    %2295 = vmatpush2.xpose.msra.mxu0 0.0
    %2296 = vmatprep.subr.mxu0 0.0
    %2297 = vmatpush2.xpose.msra.mxu0 0.0
    %2298 = vmatprep.subr.mxu0 0.0
    %2299 = vmatpush2.xpose.msra.mxu0 0.0
    %2300 = vmatprep.subr.mxu0 0.0
    %2301 = vmatpush2.xpose.msra.mxu0 0.0
    %2302 = vmatprep.subr.mxu0 0.0
    %2303 = vmatpush2.xpose.msra.mxu0 0.0
    %2304 = vmatprep.subr.mxu0 0.0
    %2305 = vmatpush2.xpose.msra.mxu0 0.0
    %2306 = vmatprep.subr.mxu0 0.0
    %2307 = vmatpush2.xpose.msra.mxu0 0.0
    %2308 = vmatprep.subr.mxu0 0.0
    %2309 = vmatpush2.xpose.msra.mxu0 0.0
    %2310 = vmatprep.subr.mxu0 0.0
    %2311 = vmatpush2.xpose.msra.mxu0 0.0
    %2312 = vmatprep.subr.mxu0 0.0
    %2313 = vmatpush2.xpose.msra.mxu0 0.0
    %2314 = vmatprep.subr.mxu0 0.0
    %2315 = vmatpush2.xpose.msra.mxu0 0.0
    %2316 = vmatprep.subr.mxu0 0.0
    %2317 = vmatpush2.xpose.msra.mxu0 0.0
    %2318 = vmatprep.mubr.f32.mxu0 0.0
    %2319 = vmatmul.mubr.f32.gmra.mxu0 %v2246
    %v2320 = vpop.f32.mrf.mxu0
    %v2321 = vadd.f32 0.0, %v2320
    %v2322 = vpop.f32.mrf.mxu0
    %2323 = vdwg.mxu0
    %v2324 = vadd.f32 %v2041, %v2321
    %2325 = vrot.lane.b32.xlu0 %v242, 16
    %v2326 = vpop.permute.xlu0 %2325
    %2327 = vrot.lane.b32.xlu0 %v248, 16
    %v2328 = vpop.permute.xlu0 %2327
    %2329 = vrot.lane.b32.xlu0 %v244, 16
    %v2330 = vpop.permute.xlu0 %2329
    %2331 = vrot.lane.b32.xlu0 %v250, 16
    %v2332 = vpop.permute.xlu0 %2331
    %v2333 = vsel %vm350, %v2326, 0
    %v2335 = vsel %vm350, %v2328, 0
    %v2337 = vsel %vm350, %v2330, 0
    %v2339 = vsel %vm350, %v2332, 0
    %2341 = vmatprep.subr.mxu0 0.0
    %2342 = vmatpush1.xpose.msra.mxu0 0.0
    %2343 = vmatprep.subr.mxu0 0.0
    %2344 = vmatpush1.xpose.msra.mxu0 0.0
    %2345 = vmatprep.subr.mxu0 0.0
    %2346 = vmatpush1.xpose.msra.mxu0 0.0
    %2347 = vmatprep.subr.mxu0 0.0
    %2348 = vmatpush1.xpose.msra.mxu0 0.0
    %2349 = vmatprep.subr.mxu0 0.0
    %2350 = vmatpush1.xpose.msra.mxu0 0.0
    %2351 = vmatprep.subr.mxu0 0.0
    %2352 = vmatpush1.xpose.msra.mxu0 0.0
    %2353 = vmatprep.subr.mxu0 0.0
    %2354 = vmatpush1.xpose.msra.mxu0 0.0
    %2355 = vmatprep.subr.mxu0 0.0
    %2356 = vmatpush1.xpose.msra.mxu0 0.0
    %2357 = vmatprep.subr.mxu0 0.0
    %2358 = vmatpush1.xpose.msra.mxu0 0.0
    %2359 = vmatprep.subr.mxu0 0.0
    %2360 = vmatpush1.xpose.msra.mxu0 0.0
    %2361 = vmatprep.subr.mxu0 0.0
    %2362 = vmatpush1.xpose.msra.mxu0 0.0
    %2363 = vmatprep.subr.mxu0 0.0
    %2364 = vmatpush1.xpose.msra.mxu0 0.0
    %2365 = vmatprep.subr.mxu0 0.0
    %2366 = vmatpush1.xpose.msra.mxu0 0.0
    %2367 = vmatprep.subr.mxu0 0.0
    %2368 = vmatpush1.xpose.msra.mxu0 0.0
    %2369 = vmatprep.subr.mxu0 0.0
    %2370 = vmatpush1.xpose.msra.mxu0 %v2339
    %2371 = vmatprep.subr.mxu0 0.0
    %2372 = vmatpush1.xpose.msra.mxu0 %v2337
    %2373 = vmatprep.subr.mxu0 0.0
    %2374 = vmatpush2.xpose.msra.mxu0 0.0
    %2375 = vmatprep.subr.mxu0 0.0
    %2376 = vmatpush2.xpose.msra.mxu0 0.0
    %2377 = vmatprep.subr.mxu0 0.0
    %2378 = vmatpush2.xpose.msra.mxu0 0.0
    %2379 = vmatprep.subr.mxu0 0.0
    %2380 = vmatpush2.xpose.msra.mxu0 0.0
    %2381 = vmatprep.subr.mxu0 0.0
    %2382 = vmatpush2.xpose.msra.mxu0 0.0
    %2383 = vmatprep.subr.mxu0 0.0
    %2384 = vmatpush2.xpose.msra.mxu0 0.0
    %2385 = vmatprep.subr.mxu0 0.0
    %2386 = vmatpush2.xpose.msra.mxu0 0.0
    %2387 = vmatprep.subr.mxu0 0.0
    %2388 = vmatpush2.xpose.msra.mxu0 0.0
    %2389 = vmatprep.subr.mxu0 0.0
    %2390 = vmatpush2.xpose.msra.mxu0 0.0
    %2391 = vmatprep.subr.mxu0 0.0
    %2392 = vmatpush2.xpose.msra.mxu0 0.0
    %2393 = vmatprep.subr.mxu0 0.0
    %2394 = vmatpush2.xpose.msra.mxu0 0.0
    %2395 = vmatprep.subr.mxu0 0.0
    %2396 = vmatpush2.xpose.msra.mxu0 0.0
    %2397 = vmatprep.subr.mxu0 0.0
    %2398 = vmatpush2.xpose.msra.mxu0 0.0
    %2399 = vmatprep.subr.mxu0 0.0
    %2400 = vmatpush2.xpose.msra.mxu0 0.0
    %2401 = vmatprep.subr.mxu0 0.0
    %2402 = vmatpush2.xpose.msra.mxu0 0.0
    %2403 = vmatprep.subr.mxu0 0.0
    %2404 = vmatpush2.xpose.msra.mxu0 0.0
    %2405 = vmatprep.mubr.f32.mxu0 0.0
    %2406 = vmatmul.mubr.f32.gmra.mxu0 %v2333
    %v2407 = vpop.f32.mrf.mxu0
    %v2408 = vadd.f32 0.0, %v2407
    %v2409 = vpop.f32.mrf.mxu0
    %2410 = vmatprep.mubr.f32.mxu0 0.0
    %2411 = vmatmul.mubr.f32.gmra.mxu0 %v2335
    %v2412 = vpop.f32.mrf.mxu0
    %v2413 = vadd.f32 0.0, %v2412
    %v2414 = vpop.f32.mrf.mxu0
    %2415 = vdwg.mxu0
    %v2416 = vmul.f32 %v2408, 0.2581989
    %v2417 = vmul.f32 %v2413, 0.2581989
    %v2418 = vsel %vm350, %v2416, -inf
    %2419 = vmax.xlane.f32.xlu0 %v2418
    %v2420 = vpop.xlane.xlu0 %2419
    %v2421 = vsel %vm350, %v2417, -inf
    %2422 = vmax.xlane.f32.xlu0 %v2421
    %v2423 = vpop.xlane.xlu0 %2422
    %v2424 = vsub.f32 %v2416, %v2420
    %v2425 = vsub.f32 %v2417, %v2423
    %v2426 = vmul.f32 %v2424, 1.442695
    %v2427 = vpow.pop %v2426
    %v2428 = vmul.f32 %v2425, 1.442695
    %v2429 = vpow.pop %v2428
    %v2430 = vsel %vm350, %v2427, 0.0
    %2431 = vadd.xlane.f32.xlu0 %v2430
    %v2432 = vpop.xlane.xlu0 %2431
    %v2433 = vsel %vm350, %v2429, 0.0
    %2434 = vadd.xlane.f32.xlu0 %v2433
    %v2435 = vpop.xlane.xlu0 %2434
    %v2436 = vrcp.pop %v2432
    %v2437 = vrcp.pop %v2435
    %v2438 = vmul.f32 %v2427, %v2436
    %v2439 = vmul.f32 %v2429, %v2437
    %2440 = vrot.lane.b32.xlu0 %v331, 16
    %v2441 = vpop.permute.xlu0 %2440
    %2442 = vrot.lane.b32.xlu0 %v336, 16
    %v2443 = vpop.permute.xlu0 %2442
    %v2447 = vsel %vm350, %v2438, 0
    %v2450 = vsel %vm350, %v2439, 0
    %2452 = vmatprep.subr.mxu0 0.0
    %2453 = vmatpush1.msra.mxu0 0.0
    %2454 = vmatprep.subr.mxu0 0.0
    %2455 = vmatpush1.msra.mxu0 0.0
    %2456 = vmatprep.subr.mxu0 0.0
    %2457 = vmatpush1.msra.mxu0 0.0
    %2458 = vmatprep.subr.mxu0 0.0
    %2459 = vmatpush1.msra.mxu0 0.0
    %2460 = vmatprep.subr.mxu0 0.0
    %2461 = vmatpush1.msra.mxu0 0.0
    %2462 = vmatprep.subr.mxu0 0.0
    %2463 = vmatpush1.msra.mxu0 0.0
    %2464 = vmatprep.subr.mxu0 0.0
    %2465 = vmatpush1.msra.mxu0 0.0
    %2466 = vmatprep.subr.mxu0 0.0
    %2467 = vmatpush1.msra.mxu0 0.0
    %2468 = vmatprep.subr.mxu0 0.0
    %2469 = vmatpush1.msra.mxu0 0.0
    %2470 = vmatprep.subr.mxu0 0.0
    %2471 = vmatpush1.msra.mxu0 0.0
    %2472 = vmatprep.subr.mxu0 0.0
    %2473 = vmatpush1.msra.mxu0 0.0
    %2474 = vmatprep.subr.mxu0 0.0
    %2475 = vmatpush1.msra.mxu0 0.0
    %2476 = vmatprep.subr.mxu0 0.0
    %2477 = vmatpush1.msra.mxu0 0.0
    %2478 = vmatprep.subr.mxu0 0.0
    %2479 = vmatpush1.msra.mxu0 0.0
    %2480 = vmatprep.subr.mxu0 0.0
    %2481 = vmatpush1.msra.mxu0 %v2443
    %2482 = vmatprep.subr.mxu0 0.0
    %2483 = vmatpush1.msra.mxu0 %v2441
    %2484 = vmatprep.subr.mxu0 0.0
    %2485 = vmatpush2.msra.mxu0 0.0
    %2486 = vmatprep.subr.mxu0 0.0
    %2487 = vmatpush2.msra.mxu0 0.0
    %2488 = vmatprep.subr.mxu0 0.0
    %2489 = vmatpush2.msra.mxu0 0.0
    %2490 = vmatprep.subr.mxu0 0.0
    %2491 = vmatpush2.msra.mxu0 0.0
    %2492 = vmatprep.subr.mxu0 0.0
    %2493 = vmatpush2.msra.mxu0 0.0
    %2494 = vmatprep.subr.mxu0 0.0
    %2495 = vmatpush2.msra.mxu0 0.0
    %2496 = vmatprep.subr.mxu0 0.0
    %2497 = vmatpush2.msra.mxu0 0.0
    %2498 = vmatprep.subr.mxu0 0.0
    %2499 = vmatpush2.msra.mxu0 0.0
    %2500 = vmatprep.subr.mxu0 0.0
    %2501 = vmatpush2.msra.mxu0 0.0
    %2502 = vmatprep.subr.mxu0 0.0
    %2503 = vmatpush2.msra.mxu0 0.0
    %2504 = vmatprep.subr.mxu0 0.0
    %2505 = vmatpush2.msra.mxu0 0.0
    %2506 = vmatprep.subr.mxu0 0.0
    %2507 = vmatpush2.msra.mxu0 0.0
    %2508 = vmatprep.subr.mxu0 0.0
    %2509 = vmatpush2.msra.mxu0 0.0
    %2510 = vmatprep.subr.mxu0 0.0
    %2511 = vmatpush2.msra.mxu0 0.0
    %2512 = vmatprep.subr.mxu0 0.0
    %2513 = vmatpush2.msra.mxu0 0.0
    %2514 = vmatprep.subr.mxu0 0.0
    %2515 = vmatpush2.msra.mxu0 0.0
    %2516 = vmatprep.mubr.f32.mxu0 0.0
    %2517 = vmatmul.mubr.f32.gmra.mxu0 %v2447
    %v2518 = vpop.f32.mrf.mxu0
    %v2519 = vadd.f32 0.0, %v2518
    %v2520 = vpop.f32.mrf.mxu0
    %2521 = vmatprep.mubr.f32.mxu0 0.0
    %2522 = vmatmul.mubr.f32.gmra.mxu0 %v2450
    %v2523 = vpop.f32.mrf.mxu0
    %v2524 = vadd.f32 0.0, %v2523
    %v2525 = vpop.f32.mrf.mxu0
    %2526 = vdwg.mxu0
    %2527 = vrot.lane.b32.xlu0 %v751, 16
    %v2528 = vpop.permute.xlu0 %2527
    %v2529 = vsel %vm350, %v2528, 0
    %v2532 = vsel %vm350, %v2519, 0
    %v2535 = vsel %vm350, %v2524, 0
    %2537 = vmatprep.subr.mxu0 0.0
    %2538 = vmatpush1.xpose.msra.mxu0 0.0
    %2539 = vmatprep.subr.mxu0 0.0
    %2540 = vmatpush1.xpose.msra.mxu0 0.0
    %2541 = vmatprep.subr.mxu0 0.0
    %2542 = vmatpush1.xpose.msra.mxu0 0.0
    %2543 = vmatprep.subr.mxu0 0.0
    %2544 = vmatpush1.xpose.msra.mxu0 0.0
    %2545 = vmatprep.subr.mxu0 0.0
    %2546 = vmatpush1.xpose.msra.mxu0 0.0
    %2547 = vmatprep.subr.mxu0 0.0
    %2548 = vmatpush1.xpose.msra.mxu0 0.0
    %2549 = vmatprep.subr.mxu0 0.0
    %2550 = vmatpush1.xpose.msra.mxu0 0.0
    %2551 = vmatprep.subr.mxu0 0.0
    %2552 = vmatpush1.xpose.msra.mxu0 0.0
    %2553 = vmatprep.subr.mxu0 0.0
    %2554 = vmatpush1.xpose.msra.mxu0 0.0
    %2555 = vmatprep.subr.mxu0 0.0
    %2556 = vmatpush1.xpose.msra.mxu0 0.0
    %2557 = vmatprep.subr.mxu0 0.0
    %2558 = vmatpush1.xpose.msra.mxu0 0.0
    %2559 = vmatprep.subr.mxu0 0.0
    %2560 = vmatpush1.xpose.msra.mxu0 0.0
    %2561 = vmatprep.subr.mxu0 0.0
    %2562 = vmatpush1.xpose.msra.mxu0 0.0
    %2563 = vmatprep.subr.mxu0 0.0
    %2564 = vmatpush1.xpose.msra.mxu0 0.0
    %2565 = vmatprep.subr.mxu0 0.0
    %2566 = vmatpush1.xpose.msra.mxu0 %v2535
    %2567 = vmatprep.subr.mxu0 0.0
    %2568 = vmatpush1.xpose.msra.mxu0 %v2532
    %2569 = vmatprep.subr.mxu0 0.0
    %2570 = vmatpush2.xpose.msra.mxu0 0.0
    %2571 = vmatprep.subr.mxu0 0.0
    %2572 = vmatpush2.xpose.msra.mxu0 0.0
    %2573 = vmatprep.subr.mxu0 0.0
    %2574 = vmatpush2.xpose.msra.mxu0 0.0
    %2575 = vmatprep.subr.mxu0 0.0
    %2576 = vmatpush2.xpose.msra.mxu0 0.0
    %2577 = vmatprep.subr.mxu0 0.0
    %2578 = vmatpush2.xpose.msra.mxu0 0.0
    %2579 = vmatprep.subr.mxu0 0.0
    %2580 = vmatpush2.xpose.msra.mxu0 0.0
    %2581 = vmatprep.subr.mxu0 0.0
    %2582 = vmatpush2.xpose.msra.mxu0 0.0
    %2583 = vmatprep.subr.mxu0 0.0
    %2584 = vmatpush2.xpose.msra.mxu0 0.0
    %2585 = vmatprep.subr.mxu0 0.0
    %2586 = vmatpush2.xpose.msra.mxu0 0.0
    %2587 = vmatprep.subr.mxu0 0.0
    %2588 = vmatpush2.xpose.msra.mxu0 0.0
    %2589 = vmatprep.subr.mxu0 0.0
    %2590 = vmatpush2.xpose.msra.mxu0 0.0
    %2591 = vmatprep.subr.mxu0 0.0
    %2592 = vmatpush2.xpose.msra.mxu0 0.0
    %2593 = vmatprep.subr.mxu0 0.0
    %2594 = vmatpush2.xpose.msra.mxu0 0.0
    %2595 = vmatprep.subr.mxu0 0.0
    %2596 = vmatpush2.xpose.msra.mxu0 0.0
    %2597 = vmatprep.subr.mxu0 0.0
    %2598 = vmatpush2.xpose.msra.mxu0 0.0
    %2599 = vmatprep.subr.mxu0 0.0
    %2600 = vmatpush2.xpose.msra.mxu0 0.0
    %2601 = vmatprep.mubr.f32.mxu0 0.0
    %2602 = vmatmul.mubr.f32.gmra.mxu0 %v2529
    %v2603 = vpop.f32.mrf.mxu0
    %v2604 = vadd.f32 0.0, %v2603
    %v2605 = vpop.f32.mrf.mxu0
    %2606 = vdwg.mxu0
    %v2607 = vadd.f32 %v2324, %v2604
    %v2609 = vsel %vm350, %v254, 0
    %v2612 = vsel %vm350, %v260, 0
    %v2615 = vsel %vm350, %v256, 0
    %v2618 = vsel %vm350, %v262, 0
    %2620 = vmatprep.subr.mxu0 0.0
    %2621 = vmatpush1.xpose.msra.mxu0 0.0
    %2622 = vmatprep.subr.mxu0 0.0
    %2623 = vmatpush1.xpose.msra.mxu0 0.0
    %2624 = vmatprep.subr.mxu0 0.0
    %2625 = vmatpush1.xpose.msra.mxu0 0.0
    %2626 = vmatprep.subr.mxu0 0.0
    %2627 = vmatpush1.xpose.msra.mxu0 0.0
    %2628 = vmatprep.subr.mxu0 0.0
    %2629 = vmatpush1.xpose.msra.mxu0 0.0
    %2630 = vmatprep.subr.mxu0 0.0
    %2631 = vmatpush1.xpose.msra.mxu0 0.0
    %2632 = vmatprep.subr.mxu0 0.0
    %2633 = vmatpush1.xpose.msra.mxu0 0.0
    %2634 = vmatprep.subr.mxu0 0.0
    %2635 = vmatpush1.xpose.msra.mxu0 0.0
    %2636 = vmatprep.subr.mxu0 0.0
    %2637 = vmatpush1.xpose.msra.mxu0 0.0
    %2638 = vmatprep.subr.mxu0 0.0
    %2639 = vmatpush1.xpose.msra.mxu0 0.0
    %2640 = vmatprep.subr.mxu0 0.0
    %2641 = vmatpush1.xpose.msra.mxu0 0.0
    %2642 = vmatprep.subr.mxu0 0.0
    %2643 = vmatpush1.xpose.msra.mxu0 0.0
    %2644 = vmatprep.subr.mxu0 0.0
    %2645 = vmatpush1.xpose.msra.mxu0 0.0
    %2646 = vmatprep.subr.mxu0 0.0
    %2647 = vmatpush1.xpose.msra.mxu0 0.0
    %2648 = vmatprep.subr.mxu0 0.0
    %2649 = vmatpush1.xpose.msra.mxu0 %v2618
    %2650 = vmatprep.subr.mxu0 0.0
    %2651 = vmatpush1.xpose.msra.mxu0 %v2615
    %2652 = vmatprep.subr.mxu0 0.0
    %2653 = vmatpush2.xpose.msra.mxu0 0.0
    %2654 = vmatprep.subr.mxu0 0.0
    %2655 = vmatpush2.xpose.msra.mxu0 0.0
    %2656 = vmatprep.subr.mxu0 0.0
    %2657 = vmatpush2.xpose.msra.mxu0 0.0
    %2658 = vmatprep.subr.mxu0 0.0
    %2659 = vmatpush2.xpose.msra.mxu0 0.0
    %2660 = vmatprep.subr.mxu0 0.0
    %2661 = vmatpush2.xpose.msra.mxu0 0.0
    %2662 = vmatprep.subr.mxu0 0.0
    %2663 = vmatpush2.xpose.msra.mxu0 0.0
    %2664 = vmatprep.subr.mxu0 0.0
    %2665 = vmatpush2.xpose.msra.mxu0 0.0
    %2666 = vmatprep.subr.mxu0 0.0
    %2667 = vmatpush2.xpose.msra.mxu0 0.0
    %2668 = vmatprep.subr.mxu0 0.0
    %2669 = vmatpush2.xpose.msra.mxu0 0.0
    %2670 = vmatprep.subr.mxu0 0.0
    %2671 = vmatpush2.xpose.msra.mxu0 0.0
    %2672 = vmatprep.subr.mxu0 0.0
    %2673 = vmatpush2.xpose.msra.mxu0 0.0
    %2674 = vmatprep.subr.mxu0 0.0
    %2675 = vmatpush2.xpose.msra.mxu0 0.0
    %2676 = vmatprep.subr.mxu0 0.0
    %2677 = vmatpush2.xpose.msra.mxu0 0.0
    %2678 = vmatprep.subr.mxu0 0.0
    %2679 = vmatpush2.xpose.msra.mxu0 0.0
    %2680 = vmatprep.subr.mxu0 0.0
    %2681 = vmatpush2.xpose.msra.mxu0 0.0
    %2682 = vmatprep.subr.mxu0 0.0
    %2683 = vmatpush2.xpose.msra.mxu0 0.0
    %2684 = vmatprep.mubr.f32.mxu0 0.0
    %2685 = vmatmul.mubr.f32.gmra.mxu0 %v2609
    %v2686 = vpop.f32.mrf.mxu0
    %v2687 = vadd.f32 0.0, %v2686
    %v2688 = vpop.f32.mrf.mxu0
    %2689 = vmatprep.mubr.f32.mxu0 0.0
    %2690 = vmatmul.mubr.f32.gmra.mxu0 %v2612
    %v2691 = vpop.f32.mrf.mxu0
    %v2692 = vadd.f32 0.0, %v2691
    %v2693 = vpop.f32.mrf.mxu0
    %2694 = vdwg.mxu0
    %v2695 = vmul.f32 %v2687, 0.2581989
    %v2696 = vmul.f32 %v2692, 0.2581989
    %v2697 = vsel %vm350, %v2695, -inf
    %2698 = vmax.xlane.f32.xlu0 %v2697
    %v2699 = vpop.xlane.xlu0 %2698
    %v2700 = vsel %vm350, %v2696, -inf
    %2701 = vmax.xlane.f32.xlu0 %v2700
    %v2702 = vpop.xlane.xlu0 %2701
    %v2703 = vsub.f32 %v2695, %v2699
    %v2704 = vsub.f32 %v2696, %v2702
    %v2705 = vmul.f32 %v2703, 1.442695
    %v2706 = vpow.pop %v2705
    %v2707 = vmul.f32 %v2704, 1.442695
    %v2708 = vpow.pop %v2707
    %v2709 = vsel %vm350, %v2706, 0.0
    %2710 = vadd.xlane.f32.xlu0 %v2709
    %v2711 = vpop.xlane.xlu0 %2710
    %v2712 = vsel %vm350, %v2708, 0.0
    %2713 = vadd.xlane.f32.xlu0 %v2712
    %v2714 = vpop.xlane.xlu0 %2713
    %v2715 = vrcp.pop %v2711
    %v2716 = vrcp.pop %v2714
    %v2717 = vmul.f32 %v2706, %v2715
    %v2718 = vmul.f32 %v2708, %v2716
    %v2720 = vsel %vm350, %v2717, 0
    %v2723 = vsel %vm350, %v2718, 0
    %2725 = vmatprep.subr.mxu0 0.0
    %2726 = vmatpush1.msra.mxu0 0.0
    %2727 = vmatprep.subr.mxu0 0.0
    %2728 = vmatpush1.msra.mxu0 0.0
    %2729 = vmatprep.subr.mxu0 0.0
    %2730 = vmatpush1.msra.mxu0 0.0
    %2731 = vmatprep.subr.mxu0 0.0
    %2732 = vmatpush1.msra.mxu0 0.0
    %2733 = vmatprep.subr.mxu0 0.0
    %2734 = vmatpush1.msra.mxu0 0.0
    %2735 = vmatprep.subr.mxu0 0.0
    %2736 = vmatpush1.msra.mxu0 0.0
    %2737 = vmatprep.subr.mxu0 0.0
    %2738 = vmatpush1.msra.mxu0 0.0
    %2739 = vmatprep.subr.mxu0 0.0
    %2740 = vmatpush1.msra.mxu0 0.0
    %2741 = vmatprep.subr.mxu0 0.0
    %2742 = vmatpush1.msra.mxu0 0.0
    %2743 = vmatprep.subr.mxu0 0.0
    %2744 = vmatpush1.msra.mxu0 0.0
    %2745 = vmatprep.subr.mxu0 0.0
    %2746 = vmatpush1.msra.mxu0 0.0
    %2747 = vmatprep.subr.mxu0 0.0
    %2748 = vmatpush1.msra.mxu0 0.0
    %2749 = vmatprep.subr.mxu0 0.0
    %2750 = vmatpush1.msra.mxu0 0.0
    %2751 = vmatprep.subr.mxu0 0.0
    %2752 = vmatpush1.msra.mxu0 0.0
    %2753 = vmatprep.subr.mxu0 0.0
    %2754 = vmatpush1.msra.mxu0 %v346
    %2755 = vmatprep.subr.mxu0 0.0
    %2756 = vmatpush1.msra.mxu0 %v341
    %2757 = vmatprep.subr.mxu0 0.0
    %2758 = vmatpush2.msra.mxu0 0.0
    %2759 = vmatprep.subr.mxu0 0.0
    %2760 = vmatpush2.msra.mxu0 0.0
    %2761 = vmatprep.subr.mxu0 0.0
    %2762 = vmatpush2.msra.mxu0 0.0
    %2763 = vmatprep.subr.mxu0 0.0
    %2764 = vmatpush2.msra.mxu0 0.0
    %2765 = vmatprep.subr.mxu0 0.0
    %2766 = vmatpush2.msra.mxu0 0.0
    %2767 = vmatprep.subr.mxu0 0.0
    %2768 = vmatpush2.msra.mxu0 0.0
    %2769 = vmatprep.subr.mxu0 0.0
    %2770 = vmatpush2.msra.mxu0 0.0
    %2771 = vmatprep.subr.mxu0 0.0
    %2772 = vmatpush2.msra.mxu0 0.0
    %2773 = vmatprep.subr.mxu0 0.0
    %2774 = vmatpush2.msra.mxu0 0.0
    %2775 = vmatprep.subr.mxu0 0.0
    %2776 = vmatpush2.msra.mxu0 0.0
    %2777 = vmatprep.subr.mxu0 0.0
    %2778 = vmatpush2.msra.mxu0 0.0
    %2779 = vmatprep.subr.mxu0 0.0
    %2780 = vmatpush2.msra.mxu0 0.0
    %2781 = vmatprep.subr.mxu0 0.0
    %2782 = vmatpush2.msra.mxu0 0.0
    %2783 = vmatprep.subr.mxu0 0.0
    %2784 = vmatpush2.msra.mxu0 0.0
    %2785 = vmatprep.subr.mxu0 0.0
    %2786 = vmatpush2.msra.mxu0 0.0
    %2787 = vmatprep.subr.mxu0 0.0
    %2788 = vmatpush2.msra.mxu0 0.0
    %2789 = vmatprep.mubr.f32.mxu0 0.0
    %2790 = vmatmul.mubr.f32.gmra.mxu0 %v2720
    %v2791 = vpop.f32.mrf.mxu0
    %v2792 = vadd.f32 0.0, %v2791
    %v2793 = vpop.f32.mrf.mxu0
    %2794 = vmatprep.mubr.f32.mxu0 0.0
    %2795 = vmatmul.mubr.f32.gmra.mxu0 %v2723
    %v2796 = vpop.f32.mrf.mxu0
    %v2797 = vadd.f32 0.0, %v2796
    %v2798 = vpop.f32.mrf.mxu0
    %2799 = vdwg.mxu0
    %2800 = vrot.lane.b32.xlu0 %v254, 112
    %v2801 = vpop.permute.xlu0 %2800
    %2802 = vrot.lane.b32.xlu0 %v260, 112
    %v2803 = vpop.permute.xlu0 %2802
    %2804 = vrot.lane.b32.xlu0 %v256, 112
    %v2805 = vpop.permute.xlu0 %2804
    %2806 = vrot.lane.b32.xlu0 %v262, 112
    %v2807 = vpop.permute.xlu0 %2806
    %v2808 = vsel %vm350, %v2801, 0
    %v2810 = vsel %vm350, %v2803, 0
    %v2812 = vsel %vm350, %v2805, 0
    %v2814 = vsel %vm350, %v2807, 0
    %2816 = vmatprep.subr.mxu0 0.0
    %2817 = vmatpush1.xpose.msra.mxu0 0.0
    %2818 = vmatprep.subr.mxu0 0.0
    %2819 = vmatpush1.xpose.msra.mxu0 0.0
    %2820 = vmatprep.subr.mxu0 0.0
    %2821 = vmatpush1.xpose.msra.mxu0 0.0
    %2822 = vmatprep.subr.mxu0 0.0
    %2823 = vmatpush1.xpose.msra.mxu0 0.0
    %2824 = vmatprep.subr.mxu0 0.0
    %2825 = vmatpush1.xpose.msra.mxu0 0.0
    %2826 = vmatprep.subr.mxu0 0.0
    %2827 = vmatpush1.xpose.msra.mxu0 0.0
    %2828 = vmatprep.subr.mxu0 0.0
    %2829 = vmatpush1.xpose.msra.mxu0 0.0
    %2830 = vmatprep.subr.mxu0 0.0
    %2831 = vmatpush1.xpose.msra.mxu0 0.0
    %2832 = vmatprep.subr.mxu0 0.0
    %2833 = vmatpush1.xpose.msra.mxu0 0.0
    %2834 = vmatprep.subr.mxu0 0.0
    %2835 = vmatpush1.xpose.msra.mxu0 0.0
    %2836 = vmatprep.subr.mxu0 0.0
    %2837 = vmatpush1.xpose.msra.mxu0 0.0
    %2838 = vmatprep.subr.mxu0 0.0
    %2839 = vmatpush1.xpose.msra.mxu0 0.0
    %2840 = vmatprep.subr.mxu0 0.0
    %2841 = vmatpush1.xpose.msra.mxu0 0.0
    %2842 = vmatprep.subr.mxu0 0.0
    %2843 = vmatpush1.xpose.msra.mxu0 0.0
    %2844 = vmatprep.subr.mxu0 0.0
    %2845 = vmatpush1.xpose.msra.mxu0 %v2814
    %2846 = vmatprep.subr.mxu0 0.0
    %2847 = vmatpush1.xpose.msra.mxu0 %v2812
    %2848 = vmatprep.subr.mxu0 0.0
    %2849 = vmatpush2.xpose.msra.mxu0 0.0
    %2850 = vmatprep.subr.mxu0 0.0
    %2851 = vmatpush2.xpose.msra.mxu0 0.0
    %2852 = vmatprep.subr.mxu0 0.0
    %2853 = vmatpush2.xpose.msra.mxu0 0.0
    %2854 = vmatprep.subr.mxu0 0.0
    %2855 = vmatpush2.xpose.msra.mxu0 0.0
    %2856 = vmatprep.subr.mxu0 0.0
    %2857 = vmatpush2.xpose.msra.mxu0 0.0
    %2858 = vmatprep.subr.mxu0 0.0
    %2859 = vmatpush2.xpose.msra.mxu0 0.0
    %2860 = vmatprep.subr.mxu0 0.0
    %2861 = vmatpush2.xpose.msra.mxu0 0.0
    %2862 = vmatprep.subr.mxu0 0.0
    %2863 = vmatpush2.xpose.msra.mxu0 0.0
    %2864 = vmatprep.subr.mxu0 0.0
    %2865 = vmatpush2.xpose.msra.mxu0 0.0
    %2866 = vmatprep.subr.mxu0 0.0
    %2867 = vmatpush2.xpose.msra.mxu0 0.0
    %2868 = vmatprep.subr.mxu0 0.0
    %2869 = vmatpush2.xpose.msra.mxu0 0.0
    %2870 = vmatprep.subr.mxu0 0.0
    %2871 = vmatpush2.xpose.msra.mxu0 0.0
    %2872 = vmatprep.subr.mxu0 0.0
    %2873 = vmatpush2.xpose.msra.mxu0 0.0
    %2874 = vmatprep.subr.mxu0 0.0
    %2875 = vmatpush2.xpose.msra.mxu0 0.0
    %2876 = vmatprep.subr.mxu0 0.0
    %2877 = vmatpush2.xpose.msra.mxu0 0.0
    %2878 = vmatprep.subr.mxu0 0.0
    %2879 = vmatpush2.xpose.msra.mxu0 0.0
    %2880 = vmatprep.mubr.f32.mxu0 0.0
    %2881 = vmatmul.mubr.f32.gmra.mxu0 %v2808
    %v2882 = vpop.f32.mrf.mxu0
    %v2883 = vadd.f32 0.0, %v2882
    %v2884 = vpop.f32.mrf.mxu0
    %2885 = vmatprep.mubr.f32.mxu0 0.0
    %2886 = vmatmul.mubr.f32.gmra.mxu0 %v2810
    %v2887 = vpop.f32.mrf.mxu0
    %v2888 = vadd.f32 0.0, %v2887
    %v2889 = vpop.f32.mrf.mxu0
    %2890 = vdwg.mxu0
    %v2891 = vmul.f32 %v2883, 0.2581989
    %v2892 = vmul.f32 %v2888, 0.2581989
    %v2893 = vsel %vm350, %v2891, -inf
    %2894 = vmax.xlane.f32.xlu0 %v2893
    %v2895 = vpop.xlane.xlu0 %2894
    %v2896 = vsel %vm350, %v2892, -inf
    %2897 = vmax.xlane.f32.xlu0 %v2896
    %v2898 = vpop.xlane.xlu0 %2897
    %v2899 = vsub.f32 %v2891, %v2895
    %v2900 = vsub.f32 %v2892, %v2898
    %v2901 = vmul.f32 %v2899, 1.442695
    %v2902 = vpow.pop %v2901
    %v2903 = vmul.f32 %v2900, 1.442695
    %v2904 = vpow.pop %v2903
    %v2905 = vsel %vm350, %v2902, 0.0
    %2906 = vadd.xlane.f32.xlu0 %v2905
    %v2907 = vpop.xlane.xlu0 %2906
    %v2908 = vsel %vm350, %v2904, 0.0
    %2909 = vadd.xlane.f32.xlu0 %v2908
    %v2910 = vpop.xlane.xlu0 %2909
    %v2911 = vrcp.pop %v2907
    %v2912 = vrcp.pop %v2910
    %v2913 = vmul.f32 %v2902, %v2911
    %v2914 = vmul.f32 %v2904, %v2912
    %2917 = vrot.lane.b32.xlu0 %v341, 112
    %v2918 = vpop.permute.xlu0 %2917
    %2919 = vrot.lane.b32.xlu0 %v346, 112
    %v2920 = vpop.permute.xlu0 %2919
    %v2924 = vsel %vm350, %v2913, 0
    %v2927 = vsel %vm350, %v2914, 0
    %2929 = vmatprep.subr.mxu0 0.0
    %2930 = vmatpush1.msra.mxu0 0.0
    %2931 = vmatprep.subr.mxu0 0.0
    %2932 = vmatpush1.msra.mxu0 0.0
    %2933 = vmatprep.subr.mxu0 0.0
    %2934 = vmatpush1.msra.mxu0 0.0
    %2935 = vmatprep.subr.mxu0 0.0
    %2936 = vmatpush1.msra.mxu0 0.0
    %2937 = vmatprep.subr.mxu0 0.0
    %2938 = vmatpush1.msra.mxu0 0.0
    %2939 = vmatprep.subr.mxu0 0.0
    %2940 = vmatpush1.msra.mxu0 0.0
    %2941 = vmatprep.subr.mxu0 0.0
    %2942 = vmatpush1.msra.mxu0 0.0
    %2943 = vmatprep.subr.mxu0 0.0
    %2944 = vmatpush1.msra.mxu0 0.0
    %2945 = vmatprep.subr.mxu0 0.0
    %2946 = vmatpush1.msra.mxu0 0.0
    %2947 = vmatprep.subr.mxu0 0.0
    %2948 = vmatpush1.msra.mxu0 0.0
    %2949 = vmatprep.subr.mxu0 0.0
    %2950 = vmatpush1.msra.mxu0 0.0
    %2951 = vmatprep.subr.mxu0 0.0
    %2952 = vmatpush1.msra.mxu0 0.0
    %2953 = vmatprep.subr.mxu0 0.0
    %2954 = vmatpush1.msra.mxu0 0.0
    %2955 = vmatprep.subr.mxu0 0.0
    %2956 = vmatpush1.msra.mxu0 0.0
    %2957 = vmatprep.subr.mxu0 0.0
    %2958 = vmatpush1.msra.mxu0 %v2920
    %2959 = vmatprep.subr.mxu0 0.0
    %2960 = vmatpush1.msra.mxu0 %v2918
    %2961 = vmatprep.subr.mxu0 0.0
    %2962 = vmatpush2.msra.mxu0 0.0
    %2963 = vmatprep.subr.mxu0 0.0
    %2964 = vmatpush2.msra.mxu0 0.0
    %2965 = vmatprep.subr.mxu0 0.0
    %2966 = vmatpush2.msra.mxu0 0.0
    %2967 = vmatprep.subr.mxu0 0.0
    %2968 = vmatpush2.msra.mxu0 0.0
    %2969 = vmatprep.subr.mxu0 0.0
    %2970 = vmatpush2.msra.mxu0 0.0
    %2971 = vmatprep.subr.mxu0 0.0
    %2972 = vmatpush2.msra.mxu0 0.0
    %2973 = vmatprep.subr.mxu0 0.0
    %2974 = vmatpush2.msra.mxu0 0.0
    %2975 = vmatprep.subr.mxu0 0.0
    %2976 = vmatpush2.msra.mxu0 0.0
    %2977 = vmatprep.subr.mxu0 0.0
    %2978 = vmatpush2.msra.mxu0 0.0
    %2979 = vmatprep.subr.mxu0 0.0
    %2980 = vmatpush2.msra.mxu0 0.0
    %2981 = vmatprep.subr.mxu0 0.0
    %2982 = vmatpush2.msra.mxu0 0.0
    %2983 = vmatprep.subr.mxu0 0.0
    %2984 = vmatpush2.msra.mxu0 0.0
    %2985 = vmatprep.subr.mxu0 0.0
    %2986 = vmatpush2.msra.mxu0 0.0
    %2987 = vmatprep.subr.mxu0 0.0
    %2988 = vmatpush2.msra.mxu0 0.0
    %2989 = vmatprep.subr.mxu0 0.0
    %2990 = vmatpush2.msra.mxu0 0.0
    %2991 = vmatprep.subr.mxu0 0.0
    %2992 = vmatpush2.msra.mxu0 0.0
    %2993 = vmatprep.mubr.f32.mxu0 0.0
    %2994 = vmatmul.mubr.f32.gmra.mxu0 %v2924
    %v2995 = vpop.f32.mrf.mxu0
    %v2996 = vadd.f32 0.0, %v2995
    %v2997 = vpop.f32.mrf.mxu0
    %2998 = vmatprep.mubr.f32.mxu0 0.0
    %2999 = vmatmul.mubr.f32.gmra.mxu0 %v2927
    %v3000 = vpop.f32.mrf.mxu0
    %v3001 = vadd.f32 0.0, %v3000
    %v3002 = vpop.f32.mrf.mxu0
    %3003 = vdwg.mxu0
    %v3005 = vsel %vm350, %v2996, 0
    %v3008 = vsel %vm350, %v3001, 0
    %3010 = vmatprep.subr.mxu0 0.0
    %3011 = vmatpush1.xpose.msra.mxu0 0.0
    %3012 = vmatprep.subr.mxu0 0.0
    %3013 = vmatpush1.xpose.msra.mxu0 0.0
    %3014 = vmatprep.subr.mxu0 0.0
    %3015 = vmatpush1.xpose.msra.mxu0 0.0
    %3016 = vmatprep.subr.mxu0 0.0
    %3017 = vmatpush1.xpose.msra.mxu0 0.0
    %3018 = vmatprep.subr.mxu0 0.0
    %3019 = vmatpush1.xpose.msra.mxu0 0.0
    %3020 = vmatprep.subr.mxu0 0.0
    %3021 = vmatpush1.xpose.msra.mxu0 0.0
    %3022 = vmatprep.subr.mxu0 0.0
    %3023 = vmatpush1.xpose.msra.mxu0 0.0
    %3024 = vmatprep.subr.mxu0 0.0
    %3025 = vmatpush1.xpose.msra.mxu0 0.0
    %3026 = vmatprep.subr.mxu0 0.0
    %3027 = vmatpush1.xpose.msra.mxu0 0.0
    %3028 = vmatprep.subr.mxu0 0.0
    %3029 = vmatpush1.xpose.msra.mxu0 0.0
    %3030 = vmatprep.subr.mxu0 0.0
    %3031 = vmatpush1.xpose.msra.mxu0 0.0
    %3032 = vmatprep.subr.mxu0 0.0
    %3033 = vmatpush1.xpose.msra.mxu0 0.0
    %3034 = vmatprep.subr.mxu0 0.0
    %3035 = vmatpush1.xpose.msra.mxu0 0.0
    %3036 = vmatprep.subr.mxu0 0.0
    %3037 = vmatpush1.xpose.msra.mxu0 0.0
    %3038 = vmatprep.subr.mxu0 0.0
    %3039 = vmatpush1.xpose.msra.mxu0 %v3008
    %3040 = vmatprep.subr.mxu0 0.0
    %3041 = vmatpush1.xpose.msra.mxu0 %v3005
    %3042 = vmatprep.subr.mxu0 0.0
    %3043 = vmatpush2.xpose.msra.mxu0 0.0
    %3044 = vmatprep.subr.mxu0 0.0
    %3045 = vmatpush2.xpose.msra.mxu0 0.0
    %3046 = vmatprep.subr.mxu0 0.0
    %3047 = vmatpush2.xpose.msra.mxu0 0.0
    %3048 = vmatprep.subr.mxu0 0.0
    %3049 = vmatpush2.xpose.msra.mxu0 0.0
    %3050 = vmatprep.subr.mxu0 0.0
    %3051 = vmatpush2.xpose.msra.mxu0 0.0
    %3052 = vmatprep.subr.mxu0 0.0
    %3053 = vmatpush2.xpose.msra.mxu0 0.0
    %3054 = vmatprep.subr.mxu0 0.0
    %3055 = vmatpush2.xpose.msra.mxu0 0.0
    %3056 = vmatprep.subr.mxu0 0.0
    %3057 = vmatpush2.xpose.msra.mxu0 0.0
    %3058 = vmatprep.subr.mxu0 0.0
    %3059 = vmatpush2.xpose.msra.mxu0 0.0
    %3060 = vmatprep.subr.mxu0 0.0
    %3061 = vmatpush2.xpose.msra.mxu0 0.0
    %3062 = vmatprep.subr.mxu0 0.0
    %3063 = vmatpush2.xpose.msra.mxu0 0.0
    %3064 = vmatprep.subr.mxu0 0.0
    %3065 = vmatpush2.xpose.msra.mxu0 0.0
    %3066 = vmatprep.subr.mxu0 0.0
    %3067 = vmatpush2.xpose.msra.mxu0 0.0
    %3068 = vmatprep.subr.mxu0 0.0
    %3069 = vmatpush2.xpose.msra.mxu0 0.0
    %3070 = vmatprep.subr.mxu0 0.0
    %3071 = vmatpush2.xpose.msra.mxu0 0.0
    %3072 = vmatprep.subr.mxu0 0.0
    %3073 = vmatpush2.xpose.msra.mxu0 0.0
    %3074 = vmatprep.mubr.f32.mxu0 0.0
    %3075 = vmatmul.mubr.f32.gmra.mxu0 %v754
    %v3076 = vpop.f32.mrf.mxu0
    %v3077 = vadd.f32 0.0, %v3076
    %v3078 = vpop.f32.mrf.mxu0
    %3079 = vdwg.mxu0
    %v3081 = vsel %vm350, %v2792, 0
    %v3084 = vsel %vm350, %v2797, 0
    %3086 = vmatprep.subr.mxu0 0.0
    %3087 = vmatpush1.xpose.msra.mxu0 0.0
    %3088 = vmatprep.subr.mxu0 0.0
    %3089 = vmatpush1.xpose.msra.mxu0 0.0
    %3090 = vmatprep.subr.mxu0 0.0
    %3091 = vmatpush1.xpose.msra.mxu0 0.0
    %3092 = vmatprep.subr.mxu0 0.0
    %3093 = vmatpush1.xpose.msra.mxu0 0.0
    %3094 = vmatprep.subr.mxu0 0.0
    %3095 = vmatpush1.xpose.msra.mxu0 0.0
    %3096 = vmatprep.subr.mxu0 0.0
    %3097 = vmatpush1.xpose.msra.mxu0 0.0
    %3098 = vmatprep.subr.mxu0 0.0
    %3099 = vmatpush1.xpose.msra.mxu0 0.0
    %3100 = vmatprep.subr.mxu0 0.0
    %3101 = vmatpush1.xpose.msra.mxu0 0.0
    %3102 = vmatprep.subr.mxu0 0.0
    %3103 = vmatpush1.xpose.msra.mxu0 0.0
    %3104 = vmatprep.subr.mxu0 0.0
    %3105 = vmatpush1.xpose.msra.mxu0 0.0
    %3106 = vmatprep.subr.mxu0 0.0
    %3107 = vmatpush1.xpose.msra.mxu0 0.0
    %3108 = vmatprep.subr.mxu0 0.0
    %3109 = vmatpush1.xpose.msra.mxu0 0.0
    %3110 = vmatprep.subr.mxu0 0.0
    %3111 = vmatpush1.xpose.msra.mxu0 0.0
    %3112 = vmatprep.subr.mxu0 0.0
    %3113 = vmatpush1.xpose.msra.mxu0 0.0
    %3114 = vmatprep.subr.mxu0 0.0
    %3115 = vmatpush1.xpose.msra.mxu0 %v3084
    %3116 = vmatprep.subr.mxu0 0.0
    %3117 = vmatpush1.xpose.msra.mxu0 %v3081
    %3118 = vmatprep.subr.mxu0 0.0
    %3119 = vmatpush2.xpose.msra.mxu0 0.0
    %3120 = vmatprep.subr.mxu0 0.0
    %3121 = vmatpush2.xpose.msra.mxu0 0.0
    %3122 = vmatprep.subr.mxu0 0.0
    %3123 = vmatpush2.xpose.msra.mxu0 0.0
    %3124 = vmatprep.subr.mxu0 0.0
    %3125 = vmatpush2.xpose.msra.mxu0 0.0
    %3126 = vmatprep.subr.mxu0 0.0
    %3127 = vmatpush2.xpose.msra.mxu0 0.0
    %3128 = vmatprep.subr.mxu0 0.0
    %3129 = vmatpush2.xpose.msra.mxu0 0.0
    %3130 = vmatprep.subr.mxu0 0.0
    %3131 = vmatpush2.xpose.msra.mxu0 0.0
    %3132 = vmatprep.subr.mxu0 0.0
    %3133 = vmatpush2.xpose.msra.mxu0 0.0
    %3134 = vmatprep.subr.mxu0 0.0
    %3135 = vmatpush2.xpose.msra.mxu0 0.0
    %3136 = vmatprep.subr.mxu0 0.0
    %3137 = vmatpush2.xpose.msra.mxu0 0.0
    %3138 = vmatprep.subr.mxu0 0.0
    %3139 = vmatpush2.xpose.msra.mxu0 0.0
    %3140 = vmatprep.subr.mxu0 0.0
    %3141 = vmatpush2.xpose.msra.mxu0 0.0
    %3142 = vmatprep.subr.mxu0 0.0
    %3143 = vmatpush2.xpose.msra.mxu0 0.0
    %3144 = vmatprep.subr.mxu0 0.0
    %3145 = vmatpush2.xpose.msra.mxu0 0.0
    %3146 = vmatprep.subr.mxu0 0.0
    %3147 = vmatpush2.xpose.msra.mxu0 0.0
    %3148 = vmatprep.subr.mxu0 0.0
    %3149 = vmatpush2.xpose.msra.mxu0 0.0
    %3150 = vmatprep.mubr.f32.mxu0 0.0
    %3151 = vmatmul.mubr.f32.gmra.mxu0 %v832
    %v3152 = vpop.f32.mrf.mxu0
    %v3153 = vadd.f32 %v3077, %v3152
    %v3154 = vpop.f32.mrf.mxu0
    %3155 = vdwg.mxu0
    %3156 = vrot.lane.b32.xlu0 %v254, 96
    %v3157 = vpop.permute.xlu0 %3156
    %3158 = vrot.lane.b32.xlu0 %v260, 96
    %v3159 = vpop.permute.xlu0 %3158
    %3160 = vrot.lane.b32.xlu0 %v256, 96
    %v3161 = vpop.permute.xlu0 %3160
    %3162 = vrot.lane.b32.xlu0 %v262, 96
    %v3163 = vpop.permute.xlu0 %3162
    %v3164 = vsel %vm350, %v3157, 0
    %v3166 = vsel %vm350, %v3159, 0
    %v3168 = vsel %vm350, %v3161, 0
    %v3170 = vsel %vm350, %v3163, 0
    %3172 = vmatprep.subr.mxu0 0.0
    %3173 = vmatpush1.xpose.msra.mxu0 0.0
    %3174 = vmatprep.subr.mxu0 0.0
    %3175 = vmatpush1.xpose.msra.mxu0 0.0
    %3176 = vmatprep.subr.mxu0 0.0
    %3177 = vmatpush1.xpose.msra.mxu0 0.0
    %3178 = vmatprep.subr.mxu0 0.0
    %3179 = vmatpush1.xpose.msra.mxu0 0.0
    %3180 = vmatprep.subr.mxu0 0.0
    %3181 = vmatpush1.xpose.msra.mxu0 0.0
    %3182 = vmatprep.subr.mxu0 0.0
    %3183 = vmatpush1.xpose.msra.mxu0 0.0
    %3184 = vmatprep.subr.mxu0 0.0
    %3185 = vmatpush1.xpose.msra.mxu0 0.0
    %3186 = vmatprep.subr.mxu0 0.0
    %3187 = vmatpush1.xpose.msra.mxu0 0.0
    %3188 = vmatprep.subr.mxu0 0.0
    %3189 = vmatpush1.xpose.msra.mxu0 0.0
    %3190 = vmatprep.subr.mxu0 0.0
    %3191 = vmatpush1.xpose.msra.mxu0 0.0
    %3192 = vmatprep.subr.mxu0 0.0
    %3193 = vmatpush1.xpose.msra.mxu0 0.0
    %3194 = vmatprep.subr.mxu0 0.0
    %3195 = vmatpush1.xpose.msra.mxu0 0.0
    %3196 = vmatprep.subr.mxu0 0.0
    %3197 = vmatpush1.xpose.msra.mxu0 0.0
    %3198 = vmatprep.subr.mxu0 0.0
    %3199 = vmatpush1.xpose.msra.mxu0 0.0
    %3200 = vmatprep.subr.mxu0 0.0
    %3201 = vmatpush1.xpose.msra.mxu0 %v3170
    %3202 = vmatprep.subr.mxu0 0.0
    %3203 = vmatpush1.xpose.msra.mxu0 %v3168
    %3204 = vmatprep.subr.mxu0 0.0
    %3205 = vmatpush2.xpose.msra.mxu0 0.0
    %3206 = vmatprep.subr.mxu0 0.0
    %3207 = vmatpush2.xpose.msra.mxu0 0.0
    %3208 = vmatprep.subr.mxu0 0.0
    %3209 = vmatpush2.xpose.msra.mxu0 0.0
    %3210 = vmatprep.subr.mxu0 0.0
    %3211 = vmatpush2.xpose.msra.mxu0 0.0
    %3212 = vmatprep.subr.mxu0 0.0
    %3213 = vmatpush2.xpose.msra.mxu0 0.0
    %3214 = vmatprep.subr.mxu0 0.0
    %3215 = vmatpush2.xpose.msra.mxu0 0.0
    %3216 = vmatprep.subr.mxu0 0.0
    %3217 = vmatpush2.xpose.msra.mxu0 0.0
    %3218 = vmatprep.subr.mxu0 0.0
    %3219 = vmatpush2.xpose.msra.mxu0 0.0
    %3220 = vmatprep.subr.mxu0 0.0
    %3221 = vmatpush2.xpose.msra.mxu0 0.0
    %3222 = vmatprep.subr.mxu0 0.0
    %3223 = vmatpush2.xpose.msra.mxu0 0.0
    %3224 = vmatprep.subr.mxu0 0.0
    %3225 = vmatpush2.xpose.msra.mxu0 0.0
    %3226 = vmatprep.subr.mxu0 0.0
    %3227 = vmatpush2.xpose.msra.mxu0 0.0
    %3228 = vmatprep.subr.mxu0 0.0
    %3229 = vmatpush2.xpose.msra.mxu0 0.0
    %3230 = vmatprep.subr.mxu0 0.0
    %3231 = vmatpush2.xpose.msra.mxu0 0.0
    %3232 = vmatprep.subr.mxu0 0.0
    %3233 = vmatpush2.xpose.msra.mxu0 0.0
    %3234 = vmatprep.subr.mxu0 0.0
    %3235 = vmatpush2.xpose.msra.mxu0 0.0
    %3236 = vmatprep.mubr.f32.mxu0 0.0
    %3237 = vmatmul.mubr.f32.gmra.mxu0 %v3164
    %v3238 = vpop.f32.mrf.mxu0
    %v3239 = vadd.f32 0.0, %v3238
    %v3240 = vpop.f32.mrf.mxu0
    %3241 = vmatprep.mubr.f32.mxu0 0.0
    %3242 = vmatmul.mubr.f32.gmra.mxu0 %v3166
    %v3243 = vpop.f32.mrf.mxu0
    %v3244 = vadd.f32 0.0, %v3243
    %v3245 = vpop.f32.mrf.mxu0
    %3246 = vdwg.mxu0
    %v3247 = vmul.f32 %v3239, 0.2581989
    %v3248 = vmul.f32 %v3244, 0.2581989
    %v3249 = vsel %vm350, %v3247, -inf
    %3250 = vmax.xlane.f32.xlu0 %v3249
    %v3251 = vpop.xlane.xlu0 %3250
    %v3252 = vsel %vm350, %v3248, -inf
    %3253 = vmax.xlane.f32.xlu0 %v3252
    %v3254 = vpop.xlane.xlu0 %3253
    %v3255 = vsub.f32 %v3247, %v3251
    %v3256 = vsub.f32 %v3248, %v3254
    %v3257 = vmul.f32 %v3255, 1.442695
    %v3258 = vpow.pop %v3257
    %v3259 = vmul.f32 %v3256, 1.442695
    %v3260 = vpow.pop %v3259
    %v3261 = vsel %vm350, %v3258, 0.0
    %3262 = vadd.xlane.f32.xlu0 %v3261
    %v3263 = vpop.xlane.xlu0 %3262
    %v3264 = vsel %vm350, %v3260, 0.0
    %3265 = vadd.xlane.f32.xlu0 %v3264
    %v3266 = vpop.xlane.xlu0 %3265
    %v3267 = vrcp.pop %v3263
    %v3268 = vrcp.pop %v3266
    %v3269 = vmul.f32 %v3258, %v3267
    %v3270 = vmul.f32 %v3260, %v3268
    %3271 = vrot.lane.b32.xlu0 %v341, 96
    %v3272 = vpop.permute.xlu0 %3271
    %3273 = vrot.lane.b32.xlu0 %v346, 96
    %v3274 = vpop.permute.xlu0 %3273
    %v3278 = vsel %vm350, %v3269, 0
    %v3281 = vsel %vm350, %v3270, 0
    %3283 = vmatprep.subr.mxu0 0.0
    %3284 = vmatpush1.msra.mxu0 0.0
    %3285 = vmatprep.subr.mxu0 0.0
    %3286 = vmatpush1.msra.mxu0 0.0
    %3287 = vmatprep.subr.mxu0 0.0
    %3288 = vmatpush1.msra.mxu0 0.0
    %3289 = vmatprep.subr.mxu0 0.0
    %3290 = vmatpush1.msra.mxu0 0.0
    %3291 = vmatprep.subr.mxu0 0.0
    %3292 = vmatpush1.msra.mxu0 0.0
    %3293 = vmatprep.subr.mxu0 0.0
    %3294 = vmatpush1.msra.mxu0 0.0
    %3295 = vmatprep.subr.mxu0 0.0
    %3296 = vmatpush1.msra.mxu0 0.0
    %3297 = vmatprep.subr.mxu0 0.0
    %3298 = vmatpush1.msra.mxu0 0.0
    %3299 = vmatprep.subr.mxu0 0.0
    %3300 = vmatpush1.msra.mxu0 0.0
    %3301 = vmatprep.subr.mxu0 0.0
    %3302 = vmatpush1.msra.mxu0 0.0
    %3303 = vmatprep.subr.mxu0 0.0
    %3304 = vmatpush1.msra.mxu0 0.0
    %3305 = vmatprep.subr.mxu0 0.0
    %3306 = vmatpush1.msra.mxu0 0.0
    %3307 = vmatprep.subr.mxu0 0.0
    %3308 = vmatpush1.msra.mxu0 0.0
    %3309 = vmatprep.subr.mxu0 0.0
    %3310 = vmatpush1.msra.mxu0 0.0
    %3311 = vmatprep.subr.mxu0 0.0
    %3312 = vmatpush1.msra.mxu0 %v3274
    %3313 = vmatprep.subr.mxu0 0.0
    %3314 = vmatpush1.msra.mxu0 %v3272
    %3315 = vmatprep.subr.mxu0 0.0
    %3316 = vmatpush2.msra.mxu0 0.0
    %3317 = vmatprep.subr.mxu0 0.0
    %3318 = vmatpush2.msra.mxu0 0.0
    %3319 = vmatprep.subr.mxu0 0.0
    %3320 = vmatpush2.msra.mxu0 0.0
    %3321 = vmatprep.subr.mxu0 0.0
    %3322 = vmatpush2.msra.mxu0 0.0
    %3323 = vmatprep.subr.mxu0 0.0
    %3324 = vmatpush2.msra.mxu0 0.0
    %3325 = vmatprep.subr.mxu0 0.0
    %3326 = vmatpush2.msra.mxu0 0.0
    %3327 = vmatprep.subr.mxu0 0.0
    %3328 = vmatpush2.msra.mxu0 0.0
    %3329 = vmatprep.subr.mxu0 0.0
    %3330 = vmatpush2.msra.mxu0 0.0
    %3331 = vmatprep.subr.mxu0 0.0
    %3332 = vmatpush2.msra.mxu0 0.0
    %3333 = vmatprep.subr.mxu0 0.0
    %3334 = vmatpush2.msra.mxu0 0.0
    %3335 = vmatprep.subr.mxu0 0.0
    %3336 = vmatpush2.msra.mxu0 0.0
    %3337 = vmatprep.subr.mxu0 0.0
    %3338 = vmatpush2.msra.mxu0 0.0
    %3339 = vmatprep.subr.mxu0 0.0
    %3340 = vmatpush2.msra.mxu0 0.0
    %3341 = vmatprep.subr.mxu0 0.0
    %3342 = vmatpush2.msra.mxu0 0.0
    %3343 = vmatprep.subr.mxu0 0.0
    %3344 = vmatpush2.msra.mxu0 0.0
    %3345 = vmatprep.subr.mxu0 0.0
    %3346 = vmatpush2.msra.mxu0 0.0
    %3347 = vmatprep.mubr.f32.mxu0 0.0
    %3348 = vmatmul.mubr.f32.gmra.mxu0 %v3278
    %v3349 = vpop.f32.mrf.mxu0
    %v3350 = vadd.f32 0.0, %v3349
    %v3351 = vpop.f32.mrf.mxu0
    %3352 = vmatprep.mubr.f32.mxu0 0.0
    %3353 = vmatmul.mubr.f32.gmra.mxu0 %v3281
    %v3354 = vpop.f32.mrf.mxu0
    %v3355 = vadd.f32 0.0, %v3354
    %v3356 = vpop.f32.mrf.mxu0
    %3357 = vdwg.mxu0
    %v3359 = vsel %vm350, %v3350, 0
    %v3362 = vsel %vm350, %v3355, 0
    %3364 = vmatprep.subr.mxu0 0.0
    %3365 = vmatpush1.xpose.msra.mxu0 0.0
    %3366 = vmatprep.subr.mxu0 0.0
    %3367 = vmatpush1.xpose.msra.mxu0 0.0
    %3368 = vmatprep.subr.mxu0 0.0
    %3369 = vmatpush1.xpose.msra.mxu0 0.0
    %3370 = vmatprep.subr.mxu0 0.0
    %3371 = vmatpush1.xpose.msra.mxu0 0.0
    %3372 = vmatprep.subr.mxu0 0.0
    %3373 = vmatpush1.xpose.msra.mxu0 0.0
    %3374 = vmatprep.subr.mxu0 0.0
    %3375 = vmatpush1.xpose.msra.mxu0 0.0
    %3376 = vmatprep.subr.mxu0 0.0
    %3377 = vmatpush1.xpose.msra.mxu0 0.0
    %3378 = vmatprep.subr.mxu0 0.0
    %3379 = vmatpush1.xpose.msra.mxu0 0.0
    %3380 = vmatprep.subr.mxu0 0.0
    %3381 = vmatpush1.xpose.msra.mxu0 0.0
    %3382 = vmatprep.subr.mxu0 0.0
    %3383 = vmatpush1.xpose.msra.mxu0 0.0
    %3384 = vmatprep.subr.mxu0 0.0
    %3385 = vmatpush1.xpose.msra.mxu0 0.0
    %3386 = vmatprep.subr.mxu0 0.0
    %3387 = vmatpush1.xpose.msra.mxu0 0.0
    %3388 = vmatprep.subr.mxu0 0.0
    %3389 = vmatpush1.xpose.msra.mxu0 0.0
    %3390 = vmatprep.subr.mxu0 0.0
    %3391 = vmatpush1.xpose.msra.mxu0 0.0
    %3392 = vmatprep.subr.mxu0 0.0
    %3393 = vmatpush1.xpose.msra.mxu0 %v3362
    %3394 = vmatprep.subr.mxu0 0.0
    %3395 = vmatpush1.xpose.msra.mxu0 %v3359
    %3396 = vmatprep.subr.mxu0 0.0
    %3397 = vmatpush2.xpose.msra.mxu0 0.0
    %3398 = vmatprep.subr.mxu0 0.0
    %3399 = vmatpush2.xpose.msra.mxu0 0.0
    %3400 = vmatprep.subr.mxu0 0.0
    %3401 = vmatpush2.xpose.msra.mxu0 0.0
    %3402 = vmatprep.subr.mxu0 0.0
    %3403 = vmatpush2.xpose.msra.mxu0 0.0
    %3404 = vmatprep.subr.mxu0 0.0
    %3405 = vmatpush2.xpose.msra.mxu0 0.0
    %3406 = vmatprep.subr.mxu0 0.0
    %3407 = vmatpush2.xpose.msra.mxu0 0.0
    %3408 = vmatprep.subr.mxu0 0.0
    %3409 = vmatpush2.xpose.msra.mxu0 0.0
    %3410 = vmatprep.subr.mxu0 0.0
    %3411 = vmatpush2.xpose.msra.mxu0 0.0
    %3412 = vmatprep.subr.mxu0 0.0
    %3413 = vmatpush2.xpose.msra.mxu0 0.0
    %3414 = vmatprep.subr.mxu0 0.0
    %3415 = vmatpush2.xpose.msra.mxu0 0.0
    %3416 = vmatprep.subr.mxu0 0.0
    %3417 = vmatpush2.xpose.msra.mxu0 0.0
    %3418 = vmatprep.subr.mxu0 0.0
    %3419 = vmatpush2.xpose.msra.mxu0 0.0
    %3420 = vmatprep.subr.mxu0 0.0
    %3421 = vmatpush2.xpose.msra.mxu0 0.0
    %3422 = vmatprep.subr.mxu0 0.0
    %3423 = vmatpush2.xpose.msra.mxu0 0.0
    %3424 = vmatprep.subr.mxu0 0.0
    %3425 = vmatpush2.xpose.msra.mxu0 0.0
    %3426 = vmatprep.subr.mxu0 0.0
    %3427 = vmatpush2.xpose.msra.mxu0 0.0
    %3428 = vmatprep.mubr.f32.mxu0 0.0
    %3429 = vmatmul.mubr.f32.gmra.mxu0 %v1114
    %v3430 = vpop.f32.mrf.mxu0
    %v3431 = vadd.f32 0.0, %v3430
    %v3432 = vpop.f32.mrf.mxu0
    %3433 = vdwg.mxu0
    %v3434 = vadd.f32 %v3153, %v3431
    %3435 = vrot.lane.b32.xlu0 %v254, 80
    %v3436 = vpop.permute.xlu0 %3435
    %3437 = vrot.lane.b32.xlu0 %v260, 80
    %v3438 = vpop.permute.xlu0 %3437
    %3439 = vrot.lane.b32.xlu0 %v256, 80
    %v3440 = vpop.permute.xlu0 %3439
    %3441 = vrot.lane.b32.xlu0 %v262, 80
    %v3442 = vpop.permute.xlu0 %3441
    %v3443 = vsel %vm350, %v3436, 0
    %v3445 = vsel %vm350, %v3438, 0
    %v3447 = vsel %vm350, %v3440, 0
    %v3449 = vsel %vm350, %v3442, 0
    %3451 = vmatprep.subr.mxu0 0.0
    %3452 = vmatpush1.xpose.msra.mxu0 0.0
    %3453 = vmatprep.subr.mxu0 0.0
    %3454 = vmatpush1.xpose.msra.mxu0 0.0
    %3455 = vmatprep.subr.mxu0 0.0
    %3456 = vmatpush1.xpose.msra.mxu0 0.0
    %3457 = vmatprep.subr.mxu0 0.0
    %3458 = vmatpush1.xpose.msra.mxu0 0.0
    %3459 = vmatprep.subr.mxu0 0.0
    %3460 = vmatpush1.xpose.msra.mxu0 0.0
    %3461 = vmatprep.subr.mxu0 0.0
    %3462 = vmatpush1.xpose.msra.mxu0 0.0
    %3463 = vmatprep.subr.mxu0 0.0
    %3464 = vmatpush1.xpose.msra.mxu0 0.0
    %3465 = vmatprep.subr.mxu0 0.0
    %3466 = vmatpush1.xpose.msra.mxu0 0.0
    %3467 = vmatprep.subr.mxu0 0.0
    %3468 = vmatpush1.xpose.msra.mxu0 0.0
    %3469 = vmatprep.subr.mxu0 0.0
    %3470 = vmatpush1.xpose.msra.mxu0 0.0
    %3471 = vmatprep.subr.mxu0 0.0
    %3472 = vmatpush1.xpose.msra.mxu0 0.0
    %3473 = vmatprep.subr.mxu0 0.0
    %3474 = vmatpush1.xpose.msra.mxu0 0.0
    %3475 = vmatprep.subr.mxu0 0.0
    %3476 = vmatpush1.xpose.msra.mxu0 0.0
    %3477 = vmatprep.subr.mxu0 0.0
    %3478 = vmatpush1.xpose.msra.mxu0 0.0
    %3479 = vmatprep.subr.mxu0 0.0
    %3480 = vmatpush1.xpose.msra.mxu0 %v3449
    %3481 = vmatprep.subr.mxu0 0.0
    %3482 = vmatpush1.xpose.msra.mxu0 %v3447
    %3483 = vmatprep.subr.mxu0 0.0
    %3484 = vmatpush2.xpose.msra.mxu0 0.0
    %3485 = vmatprep.subr.mxu0 0.0
    %3486 = vmatpush2.xpose.msra.mxu0 0.0
    %3487 = vmatprep.subr.mxu0 0.0
    %3488 = vmatpush2.xpose.msra.mxu0 0.0
    %3489 = vmatprep.subr.mxu0 0.0
    %3490 = vmatpush2.xpose.msra.mxu0 0.0
    %3491 = vmatprep.subr.mxu0 0.0
    %3492 = vmatpush2.xpose.msra.mxu0 0.0
    %3493 = vmatprep.subr.mxu0 0.0
    %3494 = vmatpush2.xpose.msra.mxu0 0.0
    %3495 = vmatprep.subr.mxu0 0.0
    %3496 = vmatpush2.xpose.msra.mxu0 0.0
    %3497 = vmatprep.subr.mxu0 0.0
    %3498 = vmatpush2.xpose.msra.mxu0 0.0
    %3499 = vmatprep.subr.mxu0 0.0
    %3500 = vmatpush2.xpose.msra.mxu0 0.0
    %3501 = vmatprep.subr.mxu0 0.0
    %3502 = vmatpush2.xpose.msra.mxu0 0.0
    %3503 = vmatprep.subr.mxu0 0.0
    %3504 = vmatpush2.xpose.msra.mxu0 0.0
    %3505 = vmatprep.subr.mxu0 0.0
    %3506 = vmatpush2.xpose.msra.mxu0 0.0
    %3507 = vmatprep.subr.mxu0 0.0
    %3508 = vmatpush2.xpose.msra.mxu0 0.0
    %3509 = vmatprep.subr.mxu0 0.0
    %3510 = vmatpush2.xpose.msra.mxu0 0.0
    %3511 = vmatprep.subr.mxu0 0.0
    %3512 = vmatpush2.xpose.msra.mxu0 0.0
    %3513 = vmatprep.subr.mxu0 0.0
    %3514 = vmatpush2.xpose.msra.mxu0 0.0
    %3515 = vmatprep.mubr.f32.mxu0 0.0
    %3516 = vmatmul.mubr.f32.gmra.mxu0 %v3443
    %v3517 = vpop.f32.mrf.mxu0
    %v3518 = vadd.f32 0.0, %v3517
    %v3519 = vpop.f32.mrf.mxu0
    %3520 = vmatprep.mubr.f32.mxu0 0.0
    %3521 = vmatmul.mubr.f32.gmra.mxu0 %v3445
    %v3522 = vpop.f32.mrf.mxu0
    %v3523 = vadd.f32 0.0, %v3522
    %v3524 = vpop.f32.mrf.mxu0
    %3525 = vdwg.mxu0
    %v3526 = vmul.f32 %v3518, 0.2581989
    %v3527 = vmul.f32 %v3523, 0.2581989
    %v3528 = vsel %vm350, %v3526, -inf
    %3529 = vmax.xlane.f32.xlu0 %v3528
    %v3530 = vpop.xlane.xlu0 %3529
    %v3531 = vsel %vm350, %v3527, -inf
    %3532 = vmax.xlane.f32.xlu0 %v3531
    %v3533 = vpop.xlane.xlu0 %3532
    %v3534 = vsub.f32 %v3526, %v3530
    %v3535 = vsub.f32 %v3527, %v3533
    %v3536 = vmul.f32 %v3534, 1.442695
    %v3537 = vpow.pop %v3536
    %v3538 = vmul.f32 %v3535, 1.442695
    %v3539 = vpow.pop %v3538
    %v3540 = vsel %vm350, %v3537, 0.0
    %3541 = vadd.xlane.f32.xlu0 %v3540
    %v3542 = vpop.xlane.xlu0 %3541
    %v3543 = vsel %vm350, %v3539, 0.0
    %3544 = vadd.xlane.f32.xlu0 %v3543
    %v3545 = vpop.xlane.xlu0 %3544
    %v3546 = vrcp.pop %v3542
    %v3547 = vrcp.pop %v3545
    %v3548 = vmul.f32 %v3537, %v3546
    %v3549 = vmul.f32 %v3539, %v3547
    %3550 = vrot.lane.b32.xlu0 %v341, 80
    %v3551 = vpop.permute.xlu0 %3550
    %3552 = vrot.lane.b32.xlu0 %v346, 80
    %v3553 = vpop.permute.xlu0 %3552
    %v3557 = vsel %vm350, %v3548, 0
    %v3560 = vsel %vm350, %v3549, 0
    %3562 = vmatprep.subr.mxu0 0.0
    %3563 = vmatpush1.msra.mxu0 0.0
    %3564 = vmatprep.subr.mxu0 0.0
    %3565 = vmatpush1.msra.mxu0 0.0
    %3566 = vmatprep.subr.mxu0 0.0
    %3567 = vmatpush1.msra.mxu0 0.0
    %3568 = vmatprep.subr.mxu0 0.0
    %3569 = vmatpush1.msra.mxu0 0.0
    %3570 = vmatprep.subr.mxu0 0.0
    %3571 = vmatpush1.msra.mxu0 0.0
    %3572 = vmatprep.subr.mxu0 0.0
    %3573 = vmatpush1.msra.mxu0 0.0
    %3574 = vmatprep.subr.mxu0 0.0
    %3575 = vmatpush1.msra.mxu0 0.0
    %3576 = vmatprep.subr.mxu0 0.0
    %3577 = vmatpush1.msra.mxu0 0.0
    %3578 = vmatprep.subr.mxu0 0.0
    %3579 = vmatpush1.msra.mxu0 0.0
    %3580 = vmatprep.subr.mxu0 0.0
    %3581 = vmatpush1.msra.mxu0 0.0
    %3582 = vmatprep.subr.mxu0 0.0
    %3583 = vmatpush1.msra.mxu0 0.0
    %3584 = vmatprep.subr.mxu0 0.0
    %3585 = vmatpush1.msra.mxu0 0.0
    %3586 = vmatprep.subr.mxu0 0.0
    %3587 = vmatpush1.msra.mxu0 0.0
    %3588 = vmatprep.subr.mxu0 0.0
    %3589 = vmatpush1.msra.mxu0 0.0
    %3590 = vmatprep.subr.mxu0 0.0
    %3591 = vmatpush1.msra.mxu0 %v3553
    %3592 = vmatprep.subr.mxu0 0.0
    %3593 = vmatpush1.msra.mxu0 %v3551
    %3594 = vmatprep.subr.mxu0 0.0
    %3595 = vmatpush2.msra.mxu0 0.0
    %3596 = vmatprep.subr.mxu0 0.0
    %3597 = vmatpush2.msra.mxu0 0.0
    %3598 = vmatprep.subr.mxu0 0.0
    %3599 = vmatpush2.msra.mxu0 0.0
    %3600 = vmatprep.subr.mxu0 0.0
    %3601 = vmatpush2.msra.mxu0 0.0
    %3602 = vmatprep.subr.mxu0 0.0
    %3603 = vmatpush2.msra.mxu0 0.0
    %3604 = vmatprep.subr.mxu0 0.0
    %3605 = vmatpush2.msra.mxu0 0.0
    %3606 = vmatprep.subr.mxu0 0.0
    %3607 = vmatpush2.msra.mxu0 0.0
    %3608 = vmatprep.subr.mxu0 0.0
    %3609 = vmatpush2.msra.mxu0 0.0
    %3610 = vmatprep.subr.mxu0 0.0
    %3611 = vmatpush2.msra.mxu0 0.0
    %3612 = vmatprep.subr.mxu0 0.0
    %3613 = vmatpush2.msra.mxu0 0.0
    %3614 = vmatprep.subr.mxu0 0.0
    %3615 = vmatpush2.msra.mxu0 0.0
    %3616 = vmatprep.subr.mxu0 0.0
    %3617 = vmatpush2.msra.mxu0 0.0
    %3618 = vmatprep.subr.mxu0 0.0
    %3619 = vmatpush2.msra.mxu0 0.0
    %3620 = vmatprep.subr.mxu0 0.0
    %3621 = vmatpush2.msra.mxu0 0.0
    %3622 = vmatprep.subr.mxu0 0.0
    %3623 = vmatpush2.msra.mxu0 0.0
    %3624 = vmatprep.subr.mxu0 0.0
    %3625 = vmatpush2.msra.mxu0 0.0
    %3626 = vmatprep.mubr.f32.mxu0 0.0
    %3627 = vmatmul.mubr.f32.gmra.mxu0 %v3557
    %v3628 = vpop.f32.mrf.mxu0
    %v3629 = vadd.f32 0.0, %v3628
    %v3630 = vpop.f32.mrf.mxu0
    %3631 = vmatprep.mubr.f32.mxu0 0.0
    %3632 = vmatmul.mubr.f32.gmra.mxu0 %v3560
    %v3633 = vpop.f32.mrf.mxu0
    %v3634 = vadd.f32 0.0, %v3633
    %v3635 = vpop.f32.mrf.mxu0
    %3636 = vdwg.mxu0
    %v3638 = vsel %vm350, %v3629, 0
    %v3641 = vsel %vm350, %v3634, 0
    %3643 = vmatprep.subr.mxu0 0.0
    %3644 = vmatpush1.xpose.msra.mxu0 0.0
    %3645 = vmatprep.subr.mxu0 0.0
    %3646 = vmatpush1.xpose.msra.mxu0 0.0
    %3647 = vmatprep.subr.mxu0 0.0
    %3648 = vmatpush1.xpose.msra.mxu0 0.0
    %3649 = vmatprep.subr.mxu0 0.0
    %3650 = vmatpush1.xpose.msra.mxu0 0.0
    %3651 = vmatprep.subr.mxu0 0.0
    %3652 = vmatpush1.xpose.msra.mxu0 0.0
    %3653 = vmatprep.subr.mxu0 0.0
    %3654 = vmatpush1.xpose.msra.mxu0 0.0
    %3655 = vmatprep.subr.mxu0 0.0
    %3656 = vmatpush1.xpose.msra.mxu0 0.0
    %3657 = vmatprep.subr.mxu0 0.0
    %3658 = vmatpush1.xpose.msra.mxu0 0.0
    %3659 = vmatprep.subr.mxu0 0.0
    %3660 = vmatpush1.xpose.msra.mxu0 0.0
    %3661 = vmatprep.subr.mxu0 0.0
    %3662 = vmatpush1.xpose.msra.mxu0 0.0
    %3663 = vmatprep.subr.mxu0 0.0
    %3664 = vmatpush1.xpose.msra.mxu0 0.0
    %3665 = vmatprep.subr.mxu0 0.0
    %3666 = vmatpush1.xpose.msra.mxu0 0.0
    %3667 = vmatprep.subr.mxu0 0.0
    %3668 = vmatpush1.xpose.msra.mxu0 0.0
    %3669 = vmatprep.subr.mxu0 0.0
    %3670 = vmatpush1.xpose.msra.mxu0 0.0
    %3671 = vmatprep.subr.mxu0 0.0
    %3672 = vmatpush1.xpose.msra.mxu0 %v3641
    %3673 = vmatprep.subr.mxu0 0.0
    %3674 = vmatpush1.xpose.msra.mxu0 %v3638
    %3675 = vmatprep.subr.mxu0 0.0
    %3676 = vmatpush2.xpose.msra.mxu0 0.0
    %3677 = vmatprep.subr.mxu0 0.0
    %3678 = vmatpush2.xpose.msra.mxu0 0.0
    %3679 = vmatprep.subr.mxu0 0.0
    %3680 = vmatpush2.xpose.msra.mxu0 0.0
    %3681 = vmatprep.subr.mxu0 0.0
    %3682 = vmatpush2.xpose.msra.mxu0 0.0
    %3683 = vmatprep.subr.mxu0 0.0
    %3684 = vmatpush2.xpose.msra.mxu0 0.0
    %3685 = vmatprep.subr.mxu0 0.0
    %3686 = vmatpush2.xpose.msra.mxu0 0.0
    %3687 = vmatprep.subr.mxu0 0.0
    %3688 = vmatpush2.xpose.msra.mxu0 0.0
    %3689 = vmatprep.subr.mxu0 0.0
    %3690 = vmatpush2.xpose.msra.mxu0 0.0
    %3691 = vmatprep.subr.mxu0 0.0
    %3692 = vmatpush2.xpose.msra.mxu0 0.0
    %3693 = vmatprep.subr.mxu0 0.0
    %3694 = vmatpush2.xpose.msra.mxu0 0.0
    %3695 = vmatprep.subr.mxu0 0.0
    %3696 = vmatpush2.xpose.msra.mxu0 0.0
    %3697 = vmatprep.subr.mxu0 0.0
    %3698 = vmatpush2.xpose.msra.mxu0 0.0
    %3699 = vmatprep.subr.mxu0 0.0
    %3700 = vmatpush2.xpose.msra.mxu0 0.0
    %3701 = vmatprep.subr.mxu0 0.0
    %3702 = vmatpush2.xpose.msra.mxu0 0.0
    %3703 = vmatprep.subr.mxu0 0.0
    %3704 = vmatpush2.xpose.msra.mxu0 0.0
    %3705 = vmatprep.subr.mxu0 0.0
    %3706 = vmatpush2.xpose.msra.mxu0 0.0
    %3707 = vmatprep.mubr.f32.mxu0 0.0
    %3708 = vmatmul.mubr.f32.gmra.mxu0 %v1397
    %v3709 = vpop.f32.mrf.mxu0
    %v3710 = vadd.f32 0.0, %v3709
    %v3711 = vpop.f32.mrf.mxu0
    %3712 = vdwg.mxu0
    %v3713 = vadd.f32 %v3434, %v3710
    %3714 = vrot.lane.b32.xlu0 %v254, 64
    %v3715 = vpop.permute.xlu0 %3714
    %3716 = vrot.lane.b32.xlu0 %v260, 64
    %v3717 = vpop.permute.xlu0 %3716
    %3718 = vrot.lane.b32.xlu0 %v256, 64
    %v3719 = vpop.permute.xlu0 %3718
    %3720 = vrot.lane.b32.xlu0 %v262, 64
    %v3721 = vpop.permute.xlu0 %3720
    %v3722 = vsel %vm350, %v3715, 0
    %v3724 = vsel %vm350, %v3717, 0
    %v3726 = vsel %vm350, %v3719, 0
    %v3728 = vsel %vm350, %v3721, 0
    %3730 = vmatprep.subr.mxu0 0.0
    %3731 = vmatpush1.xpose.msra.mxu0 0.0
    %3732 = vmatprep.subr.mxu0 0.0
    %3733 = vmatpush1.xpose.msra.mxu0 0.0
    %3734 = vmatprep.subr.mxu0 0.0
    %3735 = vmatpush1.xpose.msra.mxu0 0.0
    %3736 = vmatprep.subr.mxu0 0.0
    %3737 = vmatpush1.xpose.msra.mxu0 0.0
    %3738 = vmatprep.subr.mxu0 0.0
    %3739 = vmatpush1.xpose.msra.mxu0 0.0
    %3740 = vmatprep.subr.mxu0 0.0
    %3741 = vmatpush1.xpose.msra.mxu0 0.0
    %3742 = vmatprep.subr.mxu0 0.0
    %3743 = vmatpush1.xpose.msra.mxu0 0.0
    %3744 = vmatprep.subr.mxu0 0.0
    %3745 = vmatpush1.xpose.msra.mxu0 0.0
    %3746 = vmatprep.subr.mxu0 0.0
    %3747 = vmatpush1.xpose.msra.mxu0 0.0
    %3748 = vmatprep.subr.mxu0 0.0
    %3749 = vmatpush1.xpose.msra.mxu0 0.0
    %3750 = vmatprep.subr.mxu0 0.0
    %3751 = vmatpush1.xpose.msra.mxu0 0.0
    %3752 = vmatprep.subr.mxu0 0.0
    %3753 = vmatpush1.xpose.msra.mxu0 0.0
    %3754 = vmatprep.subr.mxu0 0.0
    %3755 = vmatpush1.xpose.msra.mxu0 0.0
    %3756 = vmatprep.subr.mxu0 0.0
    %3757 = vmatpush1.xpose.msra.mxu0 0.0
    %3758 = vmatprep.subr.mxu0 0.0
    %3759 = vmatpush1.xpose.msra.mxu0 %v3728
    %3760 = vmatprep.subr.mxu0 0.0
    %3761 = vmatpush1.xpose.msra.mxu0 %v3726
    %3762 = vmatprep.subr.mxu0 0.0
    %3763 = vmatpush2.xpose.msra.mxu0 0.0
    %3764 = vmatprep.subr.mxu0 0.0
    %3765 = vmatpush2.xpose.msra.mxu0 0.0
    %3766 = vmatprep.subr.mxu0 0.0
    %3767 = vmatpush2.xpose.msra.mxu0 0.0
    %3768 = vmatprep.subr.mxu0 0.0
    %3769 = vmatpush2.xpose.msra.mxu0 0.0
    %3770 = vmatprep.subr.mxu0 0.0
    %3771 = vmatpush2.xpose.msra.mxu0 0.0
    %3772 = vmatprep.subr.mxu0 0.0
    %3773 = vmatpush2.xpose.msra.mxu0 0.0
    %3774 = vmatprep.subr.mxu0 0.0
    %3775 = vmatpush2.xpose.msra.mxu0 0.0
    %3776 = vmatprep.subr.mxu0 0.0
    %3777 = vmatpush2.xpose.msra.mxu0 0.0
    %3778 = vmatprep.subr.mxu0 0.0
    %3779 = vmatpush2.xpose.msra.mxu0 0.0
    %3780 = vmatprep.subr.mxu0 0.0
    %3781 = vmatpush2.xpose.msra.mxu0 0.0
    %3782 = vmatprep.subr.mxu0 0.0
    %3783 = vmatpush2.xpose.msra.mxu0 0.0
    %3784 = vmatprep.subr.mxu0 0.0
    %3785 = vmatpush2.xpose.msra.mxu0 0.0
    %3786 = vmatprep.subr.mxu0 0.0
    %3787 = vmatpush2.xpose.msra.mxu0 0.0
    %3788 = vmatprep.subr.mxu0 0.0
    %3789 = vmatpush2.xpose.msra.mxu0 0.0
    %3790 = vmatprep.subr.mxu0 0.0
    %3791 = vmatpush2.xpose.msra.mxu0 0.0
    %3792 = vmatprep.subr.mxu0 0.0
    %3793 = vmatpush2.xpose.msra.mxu0 0.0
    %3794 = vmatprep.mubr.f32.mxu0 0.0
    %3795 = vmatmul.mubr.f32.gmra.mxu0 %v3722
    %v3796 = vpop.f32.mrf.mxu0
    %v3797 = vadd.f32 0.0, %v3796
    %v3798 = vpop.f32.mrf.mxu0
    %3799 = vmatprep.mubr.f32.mxu0 0.0
    %3800 = vmatmul.mubr.f32.gmra.mxu0 %v3724
    %v3801 = vpop.f32.mrf.mxu0
    %v3802 = vadd.f32 0.0, %v3801
    %v3803 = vpop.f32.mrf.mxu0
    %3804 = vdwg.mxu0
    %v3805 = vmul.f32 %v3797, 0.2581989
    %v3806 = vmul.f32 %v3802, 0.2581989
    %v3807 = vsel %vm350, %v3805, -inf
    %3808 = vmax.xlane.f32.xlu0 %v3807
    %v3809 = vpop.xlane.xlu0 %3808
    %v3810 = vsel %vm350, %v3806, -inf
    %3811 = vmax.xlane.f32.xlu0 %v3810
    %v3812 = vpop.xlane.xlu0 %3811
    %v3813 = vsub.f32 %v3805, %v3809
    %v3814 = vsub.f32 %v3806, %v3812
    %v3815 = vmul.f32 %v3813, 1.442695
    %v3816 = vpow.pop %v3815
    %v3817 = vmul.f32 %v3814, 1.442695
    %v3818 = vpow.pop %v3817
    %v3819 = vsel %vm350, %v3816, 0.0
    %3820 = vadd.xlane.f32.xlu0 %v3819
    %v3821 = vpop.xlane.xlu0 %3820
    %v3822 = vsel %vm350, %v3818, 0.0
    %3823 = vadd.xlane.f32.xlu0 %v3822
    %v3824 = vpop.xlane.xlu0 %3823
    %v3825 = vrcp.pop %v3821
    %v3826 = vrcp.pop %v3824
    %v3827 = vmul.f32 %v3816, %v3825
    %v3828 = vmul.f32 %v3818, %v3826
    %3829 = vrot.lane.b32.xlu0 %v341, 64
    %v3830 = vpop.permute.xlu0 %3829
    %3831 = vrot.lane.b32.xlu0 %v346, 64
    %v3832 = vpop.permute.xlu0 %3831
    %v3836 = vsel %vm350, %v3827, 0
    %v3839 = vsel %vm350, %v3828, 0
    %3841 = vmatprep.subr.mxu0 0.0
    %3842 = vmatpush1.msra.mxu0 0.0
    %3843 = vmatprep.subr.mxu0 0.0
    %3844 = vmatpush1.msra.mxu0 0.0
    %3845 = vmatprep.subr.mxu0 0.0
    %3846 = vmatpush1.msra.mxu0 0.0
    %3847 = vmatprep.subr.mxu0 0.0
    %3848 = vmatpush1.msra.mxu0 0.0
    %3849 = vmatprep.subr.mxu0 0.0
    %3850 = vmatpush1.msra.mxu0 0.0
    %3851 = vmatprep.subr.mxu0 0.0
    %3852 = vmatpush1.msra.mxu0 0.0
    %3853 = vmatprep.subr.mxu0 0.0
    %3854 = vmatpush1.msra.mxu0 0.0
    %3855 = vmatprep.subr.mxu0 0.0
    %3856 = vmatpush1.msra.mxu0 0.0
    %3857 = vmatprep.subr.mxu0 0.0
    %3858 = vmatpush1.msra.mxu0 0.0
    %3859 = vmatprep.subr.mxu0 0.0
    %3860 = vmatpush1.msra.mxu0 0.0
    %3861 = vmatprep.subr.mxu0 0.0
    %3862 = vmatpush1.msra.mxu0 0.0
    %3863 = vmatprep.subr.mxu0 0.0
    %3864 = vmatpush1.msra.mxu0 0.0
    %3865 = vmatprep.subr.mxu0 0.0
    %3866 = vmatpush1.msra.mxu0 0.0
    %3867 = vmatprep.subr.mxu0 0.0
    %3868 = vmatpush1.msra.mxu0 0.0
    %3869 = vmatprep.subr.mxu0 0.0
    %3870 = vmatpush1.msra.mxu0 %v3832
    %3871 = vmatprep.subr.mxu0 0.0
    %3872 = vmatpush1.msra.mxu0 %v3830
    %3873 = vmatprep.subr.mxu0 0.0
    %3874 = vmatpush2.msra.mxu0 0.0
    %3875 = vmatprep.subr.mxu0 0.0
    %3876 = vmatpush2.msra.mxu0 0.0
    %3877 = vmatprep.subr.mxu0 0.0
    %3878 = vmatpush2.msra.mxu0 0.0
    %3879 = vmatprep.subr.mxu0 0.0
    %3880 = vmatpush2.msra.mxu0 0.0
    %3881 = vmatprep.subr.mxu0 0.0
    %3882 = vmatpush2.msra.mxu0 0.0
    %3883 = vmatprep.subr.mxu0 0.0
    %3884 = vmatpush2.msra.mxu0 0.0
    %3885 = vmatprep.subr.mxu0 0.0
    %3886 = vmatpush2.msra.mxu0 0.0
    %3887 = vmatprep.subr.mxu0 0.0
    %3888 = vmatpush2.msra.mxu0 0.0
    %3889 = vmatprep.subr.mxu0 0.0
    %3890 = vmatpush2.msra.mxu0 0.0
    %3891 = vmatprep.subr.mxu0 0.0
    %3892 = vmatpush2.msra.mxu0 0.0
    %3893 = vmatprep.subr.mxu0 0.0
    %3894 = vmatpush2.msra.mxu0 0.0
    %3895 = vmatprep.subr.mxu0 0.0
    %3896 = vmatpush2.msra.mxu0 0.0
    %3897 = vmatprep.subr.mxu0 0.0
    %3898 = vmatpush2.msra.mxu0 0.0
    %3899 = vmatprep.subr.mxu0 0.0
    %3900 = vmatpush2.msra.mxu0 0.0
    %3901 = vmatprep.subr.mxu0 0.0
    %3902 = vmatpush2.msra.mxu0 0.0
    %3903 = vmatprep.subr.mxu0 0.0
    %3904 = vmatpush2.msra.mxu0 0.0
    %3905 = vmatprep.mubr.f32.mxu0 0.0
    %3906 = vmatmul.mubr.f32.gmra.mxu0 %v3836
    %v3907 = vpop.f32.mrf.mxu0
    %v3908 = vadd.f32 0.0, %v3907
    %v3909 = vpop.f32.mrf.mxu0
    %3910 = vmatprep.mubr.f32.mxu0 0.0
    %3911 = vmatmul.mubr.f32.gmra.mxu0 %v3839
    %v3912 = vpop.f32.mrf.mxu0
    %v3913 = vadd.f32 0.0, %v3912
    %v3914 = vpop.f32.mrf.mxu0
    %3915 = vdwg.mxu0
    %v3917 = vsel %vm350, %v3908, 0
    %v3920 = vsel %vm350, %v3913, 0
    %3922 = vmatprep.subr.mxu0 0.0
    %3923 = vmatpush1.xpose.msra.mxu0 0.0
    %3924 = vmatprep.subr.mxu0 0.0
    %3925 = vmatpush1.xpose.msra.mxu0 0.0
    %3926 = vmatprep.subr.mxu0 0.0
    %3927 = vmatpush1.xpose.msra.mxu0 0.0
    %3928 = vmatprep.subr.mxu0 0.0
    %3929 = vmatpush1.xpose.msra.mxu0 0.0
    %3930 = vmatprep.subr.mxu0 0.0
    %3931 = vmatpush1.xpose.msra.mxu0 0.0
    %3932 = vmatprep.subr.mxu0 0.0
    %3933 = vmatpush1.xpose.msra.mxu0 0.0
    %3934 = vmatprep.subr.mxu0 0.0
    %3935 = vmatpush1.xpose.msra.mxu0 0.0
    %3936 = vmatprep.subr.mxu0 0.0
    %3937 = vmatpush1.xpose.msra.mxu0 0.0
    %3938 = vmatprep.subr.mxu0 0.0
    %3939 = vmatpush1.xpose.msra.mxu0 0.0
    %3940 = vmatprep.subr.mxu0 0.0
    %3941 = vmatpush1.xpose.msra.mxu0 0.0
    %3942 = vmatprep.subr.mxu0 0.0
    %3943 = vmatpush1.xpose.msra.mxu0 0.0
    %3944 = vmatprep.subr.mxu0 0.0
    %3945 = vmatpush1.xpose.msra.mxu0 0.0
    %3946 = vmatprep.subr.mxu0 0.0
    %3947 = vmatpush1.xpose.msra.mxu0 0.0
    %3948 = vmatprep.subr.mxu0 0.0
    %3949 = vmatpush1.xpose.msra.mxu0 0.0
    %3950 = vmatprep.subr.mxu0 0.0
    %3951 = vmatpush1.xpose.msra.mxu0 %v3920
    %3952 = vmatprep.subr.mxu0 0.0
    %3953 = vmatpush1.xpose.msra.mxu0 %v3917
    %3954 = vmatprep.subr.mxu0 0.0
    %3955 = vmatpush2.xpose.msra.mxu0 0.0
    %3956 = vmatprep.subr.mxu0 0.0
    %3957 = vmatpush2.xpose.msra.mxu0 0.0
    %3958 = vmatprep.subr.mxu0 0.0
    %3959 = vmatpush2.xpose.msra.mxu0 0.0
    %3960 = vmatprep.subr.mxu0 0.0
    %3961 = vmatpush2.xpose.msra.mxu0 0.0
    %3962 = vmatprep.subr.mxu0 0.0
    %3963 = vmatpush2.xpose.msra.mxu0 0.0
    %3964 = vmatprep.subr.mxu0 0.0
    %3965 = vmatpush2.xpose.msra.mxu0 0.0
    %3966 = vmatprep.subr.mxu0 0.0
    %3967 = vmatpush2.xpose.msra.mxu0 0.0
    %3968 = vmatprep.subr.mxu0 0.0
    %3969 = vmatpush2.xpose.msra.mxu0 0.0
    %3970 = vmatprep.subr.mxu0 0.0
    %3971 = vmatpush2.xpose.msra.mxu0 0.0
    %3972 = vmatprep.subr.mxu0 0.0
    %3973 = vmatpush2.xpose.msra.mxu0 0.0
    %3974 = vmatprep.subr.mxu0 0.0
    %3975 = vmatpush2.xpose.msra.mxu0 0.0
    %3976 = vmatprep.subr.mxu0 0.0
    %3977 = vmatpush2.xpose.msra.mxu0 0.0
    %3978 = vmatprep.subr.mxu0 0.0
    %3979 = vmatpush2.xpose.msra.mxu0 0.0
    %3980 = vmatprep.subr.mxu0 0.0
    %3981 = vmatpush2.xpose.msra.mxu0 0.0
    %3982 = vmatprep.subr.mxu0 0.0
    %3983 = vmatpush2.xpose.msra.mxu0 0.0
    %3984 = vmatprep.subr.mxu0 0.0
    %3985 = vmatpush2.xpose.msra.mxu0 0.0
    %3986 = vmatprep.mubr.f32.mxu0 0.0
    %3987 = vmatmul.mubr.f32.gmra.mxu0 %v1680
    %v3988 = vpop.f32.mrf.mxu0
    %v3989 = vadd.f32 0.0, %v3988
    %v3990 = vpop.f32.mrf.mxu0
    %3991 = vdwg.mxu0
    %v3992 = vadd.f32 %v3713, %v3989
    %3993 = vrot.lane.b32.xlu0 %v254, 48
    %v3994 = vpop.permute.xlu0 %3993
    %3995 = vrot.lane.b32.xlu0 %v260, 48
    %v3996 = vpop.permute.xlu0 %3995
    %3997 = vrot.lane.b32.xlu0 %v256, 48
    %v3998 = vpop.permute.xlu0 %3997
    %3999 = vrot.lane.b32.xlu0 %v262, 48
    %v4000 = vpop.permute.xlu0 %3999
    %v4001 = vsel %vm350, %v3994, 0
    %v4003 = vsel %vm350, %v3996, 0
    %v4005 = vsel %vm350, %v3998, 0
    %v4007 = vsel %vm350, %v4000, 0
    %4009 = vmatprep.subr.mxu0 0.0
    %4010 = vmatpush1.xpose.msra.mxu0 0.0
    %4011 = vmatprep.subr.mxu0 0.0
    %4012 = vmatpush1.xpose.msra.mxu0 0.0
    %4013 = vmatprep.subr.mxu0 0.0
    %4014 = vmatpush1.xpose.msra.mxu0 0.0
    %4015 = vmatprep.subr.mxu0 0.0
    %4016 = vmatpush1.xpose.msra.mxu0 0.0
    %4017 = vmatprep.subr.mxu0 0.0
    %4018 = vmatpush1.xpose.msra.mxu0 0.0
    %4019 = vmatprep.subr.mxu0 0.0
    %4020 = vmatpush1.xpose.msra.mxu0 0.0
    %4021 = vmatprep.subr.mxu0 0.0
    %4022 = vmatpush1.xpose.msra.mxu0 0.0
    %4023 = vmatprep.subr.mxu0 0.0
    %4024 = vmatpush1.xpose.msra.mxu0 0.0
    %4025 = vmatprep.subr.mxu0 0.0
    %4026 = vmatpush1.xpose.msra.mxu0 0.0
    %4027 = vmatprep.subr.mxu0 0.0
    %4028 = vmatpush1.xpose.msra.mxu0 0.0
    %4029 = vmatprep.subr.mxu0 0.0
    %4030 = vmatpush1.xpose.msra.mxu0 0.0
    %4031 = vmatprep.subr.mxu0 0.0
    %4032 = vmatpush1.xpose.msra.mxu0 0.0
    %4033 = vmatprep.subr.mxu0 0.0
    %4034 = vmatpush1.xpose.msra.mxu0 0.0
    %4035 = vmatprep.subr.mxu0 0.0
    %4036 = vmatpush1.xpose.msra.mxu0 0.0
    %4037 = vmatprep.subr.mxu0 0.0
    %4038 = vmatpush1.xpose.msra.mxu0 %v4007
    %4039 = vmatprep.subr.mxu0 0.0
    %4040 = vmatpush1.xpose.msra.mxu0 %v4005
    %4041 = vmatprep.subr.mxu0 0.0
    %4042 = vmatpush2.xpose.msra.mxu0 0.0
    %4043 = vmatprep.subr.mxu0 0.0
    %4044 = vmatpush2.xpose.msra.mxu0 0.0
    %4045 = vmatprep.subr.mxu0 0.0
    %4046 = vmatpush2.xpose.msra.mxu0 0.0
    %4047 = vmatprep.subr.mxu0 0.0
    %4048 = vmatpush2.xpose.msra.mxu0 0.0
    %4049 = vmatprep.subr.mxu0 0.0
    %4050 = vmatpush2.xpose.msra.mxu0 0.0
    %4051 = vmatprep.subr.mxu0 0.0
    %4052 = vmatpush2.xpose.msra.mxu0 0.0
    %4053 = vmatprep.subr.mxu0 0.0
    %4054 = vmatpush2.xpose.msra.mxu0 0.0
    %4055 = vmatprep.subr.mxu0 0.0
    %4056 = vmatpush2.xpose.msra.mxu0 0.0
    %4057 = vmatprep.subr.mxu0 0.0
    %4058 = vmatpush2.xpose.msra.mxu0 0.0
    %4059 = vmatprep.subr.mxu0 0.0
    %4060 = vmatpush2.xpose.msra.mxu0 0.0
    %4061 = vmatprep.subr.mxu0 0.0
    %4062 = vmatpush2.xpose.msra.mxu0 0.0
    %4063 = vmatprep.subr.mxu0 0.0
    %4064 = vmatpush2.xpose.msra.mxu0 0.0
    %4065 = vmatprep.subr.mxu0 0.0
    %4066 = vmatpush2.xpose.msra.mxu0 0.0
    %4067 = vmatprep.subr.mxu0 0.0
    %4068 = vmatpush2.xpose.msra.mxu0 0.0
    %4069 = vmatprep.subr.mxu0 0.0
    %4070 = vmatpush2.xpose.msra.mxu0 0.0
    %4071 = vmatprep.subr.mxu0 0.0
    %4072 = vmatpush2.xpose.msra.mxu0 0.0
    %4073 = vmatprep.mubr.f32.mxu0 0.0
    %4074 = vmatmul.mubr.f32.gmra.mxu0 %v4001
    %v4075 = vpop.f32.mrf.mxu0
    %v4076 = vadd.f32 0.0, %v4075
    %v4077 = vpop.f32.mrf.mxu0
    %4078 = vmatprep.mubr.f32.mxu0 0.0
    %4079 = vmatmul.mubr.f32.gmra.mxu0 %v4003
    %v4080 = vpop.f32.mrf.mxu0
    %v4081 = vadd.f32 0.0, %v4080
    %v4082 = vpop.f32.mrf.mxu0
    %4083 = vdwg.mxu0
    %v4084 = vmul.f32 %v4076, 0.2581989
    %v4085 = vmul.f32 %v4081, 0.2581989
    %v4086 = vsel %vm350, %v4084, -inf
    %4087 = vmax.xlane.f32.xlu0 %v4086
    %v4088 = vpop.xlane.xlu0 %4087
    %v4089 = vsel %vm350, %v4085, -inf
    %4090 = vmax.xlane.f32.xlu0 %v4089
    %v4091 = vpop.xlane.xlu0 %4090
    %v4092 = vsub.f32 %v4084, %v4088
    %v4093 = vsub.f32 %v4085, %v4091
    %v4094 = vmul.f32 %v4092, 1.442695
    %v4095 = vpow.pop %v4094
    %v4096 = vmul.f32 %v4093, 1.442695
    %v4097 = vpow.pop %v4096
    %v4098 = vsel %vm350, %v4095, 0.0
    %4099 = vadd.xlane.f32.xlu0 %v4098
    %v4100 = vpop.xlane.xlu0 %4099
    %v4101 = vsel %vm350, %v4097, 0.0
    %4102 = vadd.xlane.f32.xlu0 %v4101
    %v4103 = vpop.xlane.xlu0 %4102
    %v4104 = vrcp.pop %v4100
    %v4105 = vrcp.pop %v4103
    %v4106 = vmul.f32 %v4095, %v4104
    %v4107 = vmul.f32 %v4097, %v4105
    %4108 = vrot.lane.b32.xlu0 %v341, 48
    %v4109 = vpop.permute.xlu0 %4108
    %4110 = vrot.lane.b32.xlu0 %v346, 48
    %v4111 = vpop.permute.xlu0 %4110
    %v4115 = vsel %vm350, %v4106, 0
    %v4118 = vsel %vm350, %v4107, 0
    %4120 = vmatprep.subr.mxu0 0.0
    %4121 = vmatpush1.msra.mxu0 0.0
    %4122 = vmatprep.subr.mxu0 0.0
    %4123 = vmatpush1.msra.mxu0 0.0
    %4124 = vmatprep.subr.mxu0 0.0
    %4125 = vmatpush1.msra.mxu0 0.0
    %4126 = vmatprep.subr.mxu0 0.0
    %4127 = vmatpush1.msra.mxu0 0.0
    %4128 = vmatprep.subr.mxu0 0.0
    %4129 = vmatpush1.msra.mxu0 0.0
    %4130 = vmatprep.subr.mxu0 0.0
    %4131 = vmatpush1.msra.mxu0 0.0
    %4132 = vmatprep.subr.mxu0 0.0
    %4133 = vmatpush1.msra.mxu0 0.0
    %4134 = vmatprep.subr.mxu0 0.0
    %4135 = vmatpush1.msra.mxu0 0.0
    %4136 = vmatprep.subr.mxu0 0.0
    %4137 = vmatpush1.msra.mxu0 0.0
    %4138 = vmatprep.subr.mxu0 0.0
    %4139 = vmatpush1.msra.mxu0 0.0
    %4140 = vmatprep.subr.mxu0 0.0
    %4141 = vmatpush1.msra.mxu0 0.0
    %4142 = vmatprep.subr.mxu0 0.0
    %4143 = vmatpush1.msra.mxu0 0.0
    %4144 = vmatprep.subr.mxu0 0.0
    %4145 = vmatpush1.msra.mxu0 0.0
    %4146 = vmatprep.subr.mxu0 0.0
    %4147 = vmatpush1.msra.mxu0 0.0
    %4148 = vmatprep.subr.mxu0 0.0
    %4149 = vmatpush1.msra.mxu0 %v4111
    %4150 = vmatprep.subr.mxu0 0.0
    %4151 = vmatpush1.msra.mxu0 %v4109
    %4152 = vmatprep.subr.mxu0 0.0
    %4153 = vmatpush2.msra.mxu0 0.0
    %4154 = vmatprep.subr.mxu0 0.0
    %4155 = vmatpush2.msra.mxu0 0.0
    %4156 = vmatprep.subr.mxu0 0.0
    %4157 = vmatpush2.msra.mxu0 0.0
    %4158 = vmatprep.subr.mxu0 0.0
    %4159 = vmatpush2.msra.mxu0 0.0
    %4160 = vmatprep.subr.mxu0 0.0
    %4161 = vmatpush2.msra.mxu0 0.0
    %4162 = vmatprep.subr.mxu0 0.0
    %4163 = vmatpush2.msra.mxu0 0.0
    %4164 = vmatprep.subr.mxu0 0.0
    %4165 = vmatpush2.msra.mxu0 0.0
    %4166 = vmatprep.subr.mxu0 0.0
    %4167 = vmatpush2.msra.mxu0 0.0
    %4168 = vmatprep.subr.mxu0 0.0
    %4169 = vmatpush2.msra.mxu0 0.0
    %4170 = vmatprep.subr.mxu0 0.0
    %4171 = vmatpush2.msra.mxu0 0.0
    %4172 = vmatprep.subr.mxu0 0.0
    %4173 = vmatpush2.msra.mxu0 0.0
    %4174 = vmatprep.subr.mxu0 0.0
    %4175 = vmatpush2.msra.mxu0 0.0
    %4176 = vmatprep.subr.mxu0 0.0
    %4177 = vmatpush2.msra.mxu0 0.0
    %4178 = vmatprep.subr.mxu0 0.0
    %4179 = vmatpush2.msra.mxu0 0.0
    %4180 = vmatprep.subr.mxu0 0.0
    %4181 = vmatpush2.msra.mxu0 0.0
    %4182 = vmatprep.subr.mxu0 0.0
    %4183 = vmatpush2.msra.mxu0 0.0
    %4184 = vmatprep.mubr.f32.mxu0 0.0
    %4185 = vmatmul.mubr.f32.gmra.mxu0 %v4115
    %v4186 = vpop.f32.mrf.mxu0
    %v4187 = vadd.f32 0.0, %v4186
    %v4188 = vpop.f32.mrf.mxu0
    %4189 = vmatprep.mubr.f32.mxu0 0.0
    %4190 = vmatmul.mubr.f32.gmra.mxu0 %v4118
    %v4191 = vpop.f32.mrf.mxu0
    %v4192 = vadd.f32 0.0, %v4191
    %v4193 = vpop.f32.mrf.mxu0
    %4194 = vdwg.mxu0
    %v4196 = vsel %vm350, %v4187, 0
    %v4199 = vsel %vm350, %v4192, 0
    %4201 = vmatprep.subr.mxu0 0.0
    %4202 = vmatpush1.xpose.msra.mxu0 0.0
    %4203 = vmatprep.subr.mxu0 0.0
    %4204 = vmatpush1.xpose.msra.mxu0 0.0
    %4205 = vmatprep.subr.mxu0 0.0
    %4206 = vmatpush1.xpose.msra.mxu0 0.0
    %4207 = vmatprep.subr.mxu0 0.0
    %4208 = vmatpush1.xpose.msra.mxu0 0.0
    %4209 = vmatprep.subr.mxu0 0.0
    %4210 = vmatpush1.xpose.msra.mxu0 0.0
    %4211 = vmatprep.subr.mxu0 0.0
    %4212 = vmatpush1.xpose.msra.mxu0 0.0
    %4213 = vmatprep.subr.mxu0 0.0
    %4214 = vmatpush1.xpose.msra.mxu0 0.0
    %4215 = vmatprep.subr.mxu0 0.0
    %4216 = vmatpush1.xpose.msra.mxu0 0.0
    %4217 = vmatprep.subr.mxu0 0.0
    %4218 = vmatpush1.xpose.msra.mxu0 0.0
    %4219 = vmatprep.subr.mxu0 0.0
    %4220 = vmatpush1.xpose.msra.mxu0 0.0
    %4221 = vmatprep.subr.mxu0 0.0
    %4222 = vmatpush1.xpose.msra.mxu0 0.0
    %4223 = vmatprep.subr.mxu0 0.0
    %4224 = vmatpush1.xpose.msra.mxu0 0.0
    %4225 = vmatprep.subr.mxu0 0.0
    %4226 = vmatpush1.xpose.msra.mxu0 0.0
    %4227 = vmatprep.subr.mxu0 0.0
    %4228 = vmatpush1.xpose.msra.mxu0 0.0
    %4229 = vmatprep.subr.mxu0 0.0
    %4230 = vmatpush1.xpose.msra.mxu0 %v4199
    %4231 = vmatprep.subr.mxu0 0.0
    %4232 = vmatpush1.xpose.msra.mxu0 %v4196
    %4233 = vmatprep.subr.mxu0 0.0
    %4234 = vmatpush2.xpose.msra.mxu0 0.0
    %4235 = vmatprep.subr.mxu0 0.0
    %4236 = vmatpush2.xpose.msra.mxu0 0.0
    %4237 = vmatprep.subr.mxu0 0.0
    %4238 = vmatpush2.xpose.msra.mxu0 0.0
    %4239 = vmatprep.subr.mxu0 0.0
    %4240 = vmatpush2.xpose.msra.mxu0 0.0
    %4241 = vmatprep.subr.mxu0 0.0
    %4242 = vmatpush2.xpose.msra.mxu0 0.0
    %4243 = vmatprep.subr.mxu0 0.0
    %4244 = vmatpush2.xpose.msra.mxu0 0.0
    %4245 = vmatprep.subr.mxu0 0.0
    %4246 = vmatpush2.xpose.msra.mxu0 0.0
    %4247 = vmatprep.subr.mxu0 0.0
    %4248 = vmatpush2.xpose.msra.mxu0 0.0
    %4249 = vmatprep.subr.mxu0 0.0
    %4250 = vmatpush2.xpose.msra.mxu0 0.0
    %4251 = vmatprep.subr.mxu0 0.0
    %4252 = vmatpush2.xpose.msra.mxu0 0.0
    %4253 = vmatprep.subr.mxu0 0.0
    %4254 = vmatpush2.xpose.msra.mxu0 0.0
    %4255 = vmatprep.subr.mxu0 0.0
    %4256 = vmatpush2.xpose.msra.mxu0 0.0
    %4257 = vmatprep.subr.mxu0 0.0
    %4258 = vmatpush2.xpose.msra.mxu0 0.0
    %4259 = vmatprep.subr.mxu0 0.0
    %4260 = vmatpush2.xpose.msra.mxu0 0.0
    %4261 = vmatprep.subr.mxu0 0.0
    %4262 = vmatpush2.xpose.msra.mxu0 0.0
    %4263 = vmatprep.subr.mxu0 0.0
    %4264 = vmatpush2.xpose.msra.mxu0 0.0
    %4265 = vmatprep.mubr.f32.mxu0 0.0
    %4266 = vmatmul.mubr.f32.gmra.mxu0 %v1963
    %v4267 = vpop.f32.mrf.mxu0
    %v4268 = vadd.f32 0.0, %v4267
    %v4269 = vpop.f32.mrf.mxu0
    %4270 = vdwg.mxu0
    %v4271 = vadd.f32 %v3992, %v4268
    %4272 = vrot.lane.b32.xlu0 %v254, 32
    %v4273 = vpop.permute.xlu0 %4272
    %4274 = vrot.lane.b32.xlu0 %v260, 32
    %v4275 = vpop.permute.xlu0 %4274
    %4276 = vrot.lane.b32.xlu0 %v256, 32
    %v4277 = vpop.permute.xlu0 %4276
    %4278 = vrot.lane.b32.xlu0 %v262, 32
    %v4279 = vpop.permute.xlu0 %4278
    %v4280 = vsel %vm350, %v4273, 0
    %v4282 = vsel %vm350, %v4275, 0
    %v4284 = vsel %vm350, %v4277, 0
    %v4286 = vsel %vm350, %v4279, 0
    %4288 = vmatprep.subr.mxu0 0.0
    %4289 = vmatpush1.xpose.msra.mxu0 0.0
    %4290 = vmatprep.subr.mxu0 0.0
    %4291 = vmatpush1.xpose.msra.mxu0 0.0
    %4292 = vmatprep.subr.mxu0 0.0
    %4293 = vmatpush1.xpose.msra.mxu0 0.0
    %4294 = vmatprep.subr.mxu0 0.0
    %4295 = vmatpush1.xpose.msra.mxu0 0.0
    %4296 = vmatprep.subr.mxu0 0.0
    %4297 = vmatpush1.xpose.msra.mxu0 0.0
    %4298 = vmatprep.subr.mxu0 0.0
    %4299 = vmatpush1.xpose.msra.mxu0 0.0
    %4300 = vmatprep.subr.mxu0 0.0
    %4301 = vmatpush1.xpose.msra.mxu0 0.0
    %4302 = vmatprep.subr.mxu0 0.0
    %4303 = vmatpush1.xpose.msra.mxu0 0.0
    %4304 = vmatprep.subr.mxu0 0.0
    %4305 = vmatpush1.xpose.msra.mxu0 0.0
    %4306 = vmatprep.subr.mxu0 0.0
    %4307 = vmatpush1.xpose.msra.mxu0 0.0
    %4308 = vmatprep.subr.mxu0 0.0
    %4309 = vmatpush1.xpose.msra.mxu0 0.0
    %4310 = vmatprep.subr.mxu0 0.0
    %4311 = vmatpush1.xpose.msra.mxu0 0.0
    %4312 = vmatprep.subr.mxu0 0.0
    %4313 = vmatpush1.xpose.msra.mxu0 0.0
    %4314 = vmatprep.subr.mxu0 0.0
    %4315 = vmatpush1.xpose.msra.mxu0 0.0
    %4316 = vmatprep.subr.mxu0 0.0
    %4317 = vmatpush1.xpose.msra.mxu0 %v4286
    %4318 = vmatprep.subr.mxu0 0.0
    %4319 = vmatpush1.xpose.msra.mxu0 %v4284
    %4320 = vmatprep.subr.mxu0 0.0
    %4321 = vmatpush2.xpose.msra.mxu0 0.0
    %4322 = vmatprep.subr.mxu0 0.0
    %4323 = vmatpush2.xpose.msra.mxu0 0.0
    %4324 = vmatprep.subr.mxu0 0.0
    %4325 = vmatpush2.xpose.msra.mxu0 0.0
    %4326 = vmatprep.subr.mxu0 0.0
    %4327 = vmatpush2.xpose.msra.mxu0 0.0
    %4328 = vmatprep.subr.mxu0 0.0
    %4329 = vmatpush2.xpose.msra.mxu0 0.0
    %4330 = vmatprep.subr.mxu0 0.0
    %4331 = vmatpush2.xpose.msra.mxu0 0.0
    %4332 = vmatprep.subr.mxu0 0.0
    %4333 = vmatpush2.xpose.msra.mxu0 0.0
    %4334 = vmatprep.subr.mxu0 0.0
    %4335 = vmatpush2.xpose.msra.mxu0 0.0
    %4336 = vmatprep.subr.mxu0 0.0
    %4337 = vmatpush2.xpose.msra.mxu0 0.0
    %4338 = vmatprep.subr.mxu0 0.0
    %4339 = vmatpush2.xpose.msra.mxu0 0.0
    %4340 = vmatprep.subr.mxu0 0.0
    %4341 = vmatpush2.xpose.msra.mxu0 0.0
    %4342 = vmatprep.subr.mxu0 0.0
    %4343 = vmatpush2.xpose.msra.mxu0 0.0
    %4344 = vmatprep.subr.mxu0 0.0
    %4345 = vmatpush2.xpose.msra.mxu0 0.0
    %4346 = vmatprep.subr.mxu0 0.0
    %4347 = vmatpush2.xpose.msra.mxu0 0.0
    %4348 = vmatprep.subr.mxu0 0.0
    %4349 = vmatpush2.xpose.msra.mxu0 0.0
    %4350 = vmatprep.subr.mxu0 0.0
    %4351 = vmatpush2.xpose.msra.mxu0 0.0
    %4352 = vmatprep.mubr.f32.mxu0 0.0
    %4353 = vmatmul.mubr.f32.gmra.mxu0 %v4280
    %v4354 = vpop.f32.mrf.mxu0
    %v4355 = vadd.f32 0.0, %v4354
    %v4356 = vpop.f32.mrf.mxu0
    %4357 = vmatprep.mubr.f32.mxu0 0.0
    %4358 = vmatmul.mubr.f32.gmra.mxu0 %v4282
    %v4359 = vpop.f32.mrf.mxu0
    %v4360 = vadd.f32 0.0, %v4359
    %v4361 = vpop.f32.mrf.mxu0
    %4362 = vdwg.mxu0
    %v4363 = vmul.f32 %v4355, 0.2581989
    %v4364 = vmul.f32 %v4360, 0.2581989
    %v4365 = vsel %vm350, %v4363, -inf
    %4366 = vmax.xlane.f32.xlu0 %v4365
    %v4367 = vpop.xlane.xlu0 %4366
    %v4368 = vsel %vm350, %v4364, -inf
    %4369 = vmax.xlane.f32.xlu0 %v4368
    %v4370 = vpop.xlane.xlu0 %4369
    %v4371 = vsub.f32 %v4363, %v4367
    %v4372 = vsub.f32 %v4364, %v4370
    %v4373 = vmul.f32 %v4371, 1.442695
    %v4374 = vpow.pop %v4373
    %v4375 = vmul.f32 %v4372, 1.442695
    %v4376 = vpow.pop %v4375
    %v4377 = vsel %vm350, %v4374, 0.0
    %4378 = vadd.xlane.f32.xlu0 %v4377
    %v4379 = vpop.xlane.xlu0 %4378
    %v4380 = vsel %vm350, %v4376, 0.0
    %4381 = vadd.xlane.f32.xlu0 %v4380
    %v4382 = vpop.xlane.xlu0 %4381
    %v4383 = vrcp.pop %v4379
    %v4384 = vrcp.pop %v4382
    %v4385 = vmul.f32 %v4374, %v4383
    %v4386 = vmul.f32 %v4376, %v4384
    %4387 = vrot.lane.b32.xlu0 %v341, 32
    %v4388 = vpop.permute.xlu0 %4387
    %4389 = vrot.lane.b32.xlu0 %v346, 32
    %v4390 = vpop.permute.xlu0 %4389
    %v4394 = vsel %vm350, %v4385, 0
    %v4397 = vsel %vm350, %v4386, 0
    %4399 = vmatprep.subr.mxu0 0.0
    %4400 = vmatpush1.msra.mxu0 0.0
    %4401 = vmatprep.subr.mxu0 0.0
    %4402 = vmatpush1.msra.mxu0 0.0
    %4403 = vmatprep.subr.mxu0 0.0
    %4404 = vmatpush1.msra.mxu0 0.0
    %4405 = vmatprep.subr.mxu0 0.0
    %4406 = vmatpush1.msra.mxu0 0.0
    %4407 = vmatprep.subr.mxu0 0.0
    %4408 = vmatpush1.msra.mxu0 0.0
    %4409 = vmatprep.subr.mxu0 0.0
    %4410 = vmatpush1.msra.mxu0 0.0
    %4411 = vmatprep.subr.mxu0 0.0
    %4412 = vmatpush1.msra.mxu0 0.0
    %4413 = vmatprep.subr.mxu0 0.0
    %4414 = vmatpush1.msra.mxu0 0.0
    %4415 = vmatprep.subr.mxu0 0.0
    %4416 = vmatpush1.msra.mxu0 0.0
    %4417 = vmatprep.subr.mxu0 0.0
    %4418 = vmatpush1.msra.mxu0 0.0
    %4419 = vmatprep.subr.mxu0 0.0
    %4420 = vmatpush1.msra.mxu0 0.0
    %4421 = vmatprep.subr.mxu0 0.0
    %4422 = vmatpush1.msra.mxu0 0.0
    %4423 = vmatprep.subr.mxu0 0.0
    %4424 = vmatpush1.msra.mxu0 0.0
    %4425 = vmatprep.subr.mxu0 0.0
    %4426 = vmatpush1.msra.mxu0 0.0
    %4427 = vmatprep.subr.mxu0 0.0
    %4428 = vmatpush1.msra.mxu0 %v4390
    %4429 = vmatprep.subr.mxu0 0.0
    %4430 = vmatpush1.msra.mxu0 %v4388
    %4431 = vmatprep.subr.mxu0 0.0
    %4432 = vmatpush2.msra.mxu0 0.0
    %4433 = vmatprep.subr.mxu0 0.0
    %4434 = vmatpush2.msra.mxu0 0.0
    %4435 = vmatprep.subr.mxu0 0.0
    %4436 = vmatpush2.msra.mxu0 0.0
    %4437 = vmatprep.subr.mxu0 0.0
    %4438 = vmatpush2.msra.mxu0 0.0
    %4439 = vmatprep.subr.mxu0 0.0
    %4440 = vmatpush2.msra.mxu0 0.0
    %4441 = vmatprep.subr.mxu0 0.0
    %4442 = vmatpush2.msra.mxu0 0.0
    %4443 = vmatprep.subr.mxu0 0.0
    %4444 = vmatpush2.msra.mxu0 0.0
    %4445 = vmatprep.subr.mxu0 0.0
    %4446 = vmatpush2.msra.mxu0 0.0
    %4447 = vmatprep.subr.mxu0 0.0
    %4448 = vmatpush2.msra.mxu0 0.0
    %4449 = vmatprep.subr.mxu0 0.0
    %4450 = vmatpush2.msra.mxu0 0.0
    %4451 = vmatprep.subr.mxu0 0.0
    %4452 = vmatpush2.msra.mxu0 0.0
    %4453 = vmatprep.subr.mxu0 0.0
    %4454 = vmatpush2.msra.mxu0 0.0
    %4455 = vmatprep.subr.mxu0 0.0
    %4456 = vmatpush2.msra.mxu0 0.0
    %4457 = vmatprep.subr.mxu0 0.0
    %4458 = vmatpush2.msra.mxu0 0.0
    %4459 = vmatprep.subr.mxu0 0.0
    %4460 = vmatpush2.msra.mxu0 0.0
    %4461 = vmatprep.subr.mxu0 0.0
    %4462 = vmatpush2.msra.mxu0 0.0
    %4463 = vmatprep.mubr.f32.mxu0 0.0
    %4464 = vmatmul.mubr.f32.gmra.mxu0 %v4394
    %v4465 = vpop.f32.mrf.mxu0
    %v4466 = vadd.f32 0.0, %v4465
    %v4467 = vpop.f32.mrf.mxu0
    %4468 = vmatprep.mubr.f32.mxu0 0.0
    %4469 = vmatmul.mubr.f32.gmra.mxu0 %v4397
    %v4470 = vpop.f32.mrf.mxu0
    %v4471 = vadd.f32 0.0, %v4470
    %v4472 = vpop.f32.mrf.mxu0
    %4473 = vdwg.mxu0
    %v4475 = vsel %vm350, %v4466, 0
    %v4478 = vsel %vm350, %v4471, 0
    %4480 = vmatprep.subr.mxu0 0.0
    %4481 = vmatpush1.xpose.msra.mxu0 0.0
    %4482 = vmatprep.subr.mxu0 0.0
    %4483 = vmatpush1.xpose.msra.mxu0 0.0
    %4484 = vmatprep.subr.mxu0 0.0
    %4485 = vmatpush1.xpose.msra.mxu0 0.0
    %4486 = vmatprep.subr.mxu0 0.0
    %4487 = vmatpush1.xpose.msra.mxu0 0.0
    %4488 = vmatprep.subr.mxu0 0.0
    %4489 = vmatpush1.xpose.msra.mxu0 0.0
    %4490 = vmatprep.subr.mxu0 0.0
    %4491 = vmatpush1.xpose.msra.mxu0 0.0
    %4492 = vmatprep.subr.mxu0 0.0
    %4493 = vmatpush1.xpose.msra.mxu0 0.0
    %4494 = vmatprep.subr.mxu0 0.0
    %4495 = vmatpush1.xpose.msra.mxu0 0.0
    %4496 = vmatprep.subr.mxu0 0.0
    %4497 = vmatpush1.xpose.msra.mxu0 0.0
    %4498 = vmatprep.subr.mxu0 0.0
    %4499 = vmatpush1.xpose.msra.mxu0 0.0
    %4500 = vmatprep.subr.mxu0 0.0
    %4501 = vmatpush1.xpose.msra.mxu0 0.0
    %4502 = vmatprep.subr.mxu0 0.0
    %4503 = vmatpush1.xpose.msra.mxu0 0.0
    %4504 = vmatprep.subr.mxu0 0.0
    %4505 = vmatpush1.xpose.msra.mxu0 0.0
    %4506 = vmatprep.subr.mxu0 0.0
    %4507 = vmatpush1.xpose.msra.mxu0 0.0
    %4508 = vmatprep.subr.mxu0 0.0
    %4509 = vmatpush1.xpose.msra.mxu0 %v4478
    %4510 = vmatprep.subr.mxu0 0.0
    %4511 = vmatpush1.xpose.msra.mxu0 %v4475
    %4512 = vmatprep.subr.mxu0 0.0
    %4513 = vmatpush2.xpose.msra.mxu0 0.0
    %4514 = vmatprep.subr.mxu0 0.0
    %4515 = vmatpush2.xpose.msra.mxu0 0.0
    %4516 = vmatprep.subr.mxu0 0.0
    %4517 = vmatpush2.xpose.msra.mxu0 0.0
    %4518 = vmatprep.subr.mxu0 0.0
    %4519 = vmatpush2.xpose.msra.mxu0 0.0
    %4520 = vmatprep.subr.mxu0 0.0
    %4521 = vmatpush2.xpose.msra.mxu0 0.0
    %4522 = vmatprep.subr.mxu0 0.0
    %4523 = vmatpush2.xpose.msra.mxu0 0.0
    %4524 = vmatprep.subr.mxu0 0.0
    %4525 = vmatpush2.xpose.msra.mxu0 0.0
    %4526 = vmatprep.subr.mxu0 0.0
    %4527 = vmatpush2.xpose.msra.mxu0 0.0
    %4528 = vmatprep.subr.mxu0 0.0
    %4529 = vmatpush2.xpose.msra.mxu0 0.0
    %4530 = vmatprep.subr.mxu0 0.0
    %4531 = vmatpush2.xpose.msra.mxu0 0.0
    %4532 = vmatprep.subr.mxu0 0.0
    %4533 = vmatpush2.xpose.msra.mxu0 0.0
    %4534 = vmatprep.subr.mxu0 0.0
    %4535 = vmatpush2.xpose.msra.mxu0 0.0
    %4536 = vmatprep.subr.mxu0 0.0
    %4537 = vmatpush2.xpose.msra.mxu0 0.0
    %4538 = vmatprep.subr.mxu0 0.0
    %4539 = vmatpush2.xpose.msra.mxu0 0.0
    %4540 = vmatprep.subr.mxu0 0.0
    %4541 = vmatpush2.xpose.msra.mxu0 0.0
    %4542 = vmatprep.subr.mxu0 0.0
    %4543 = vmatpush2.xpose.msra.mxu0 0.0
    %4544 = vmatprep.mubr.f32.mxu0 0.0
    %4545 = vmatmul.mubr.f32.gmra.mxu0 %v2246
    %v4546 = vpop.f32.mrf.mxu0
    %v4547 = vadd.f32 0.0, %v4546
    %v4548 = vpop.f32.mrf.mxu0
    %4549 = vdwg.mxu0
    %v4550 = vadd.f32 %v4271, %v4547
    %4551 = vrot.lane.b32.xlu0 %v254, 16
    %v4552 = vpop.permute.xlu0 %4551
    %4553 = vrot.lane.b32.xlu0 %v260, 16
    %v4554 = vpop.permute.xlu0 %4553
    %4555 = vrot.lane.b32.xlu0 %v256, 16
    %v4556 = vpop.permute.xlu0 %4555
    %4557 = vrot.lane.b32.xlu0 %v262, 16
    %v4558 = vpop.permute.xlu0 %4557
    %v4559 = vsel %vm350, %v4552, 0
    %v4561 = vsel %vm350, %v4554, 0
    %v4563 = vsel %vm350, %v4556, 0
    %v4565 = vsel %vm350, %v4558, 0
    %4567 = vmatprep.subr.mxu0 0.0
    %4568 = vmatpush1.xpose.msra.mxu0 0.0
    %4569 = vmatprep.subr.mxu0 0.0
    %4570 = vmatpush1.xpose.msra.mxu0 0.0
    %4571 = vmatprep.subr.mxu0 0.0
    %4572 = vmatpush1.xpose.msra.mxu0 0.0
    %4573 = vmatprep.subr.mxu0 0.0
    %4574 = vmatpush1.xpose.msra.mxu0 0.0
    %4575 = vmatprep.subr.mxu0 0.0
    %4576 = vmatpush1.xpose.msra.mxu0 0.0
    %4577 = vmatprep.subr.mxu0 0.0
    %4578 = vmatpush1.xpose.msra.mxu0 0.0
    %4579 = vmatprep.subr.mxu0 0.0
    %4580 = vmatpush1.xpose.msra.mxu0 0.0
    %4581 = vmatprep.subr.mxu0 0.0
    %4582 = vmatpush1.xpose.msra.mxu0 0.0
    %4583 = vmatprep.subr.mxu0 0.0
    %4584 = vmatpush1.xpose.msra.mxu0 0.0
    %4585 = vmatprep.subr.mxu0 0.0
    %4586 = vmatpush1.xpose.msra.mxu0 0.0
    %4587 = vmatprep.subr.mxu0 0.0
    %4588 = vmatpush1.xpose.msra.mxu0 0.0
    %4589 = vmatprep.subr.mxu0 0.0
    %4590 = vmatpush1.xpose.msra.mxu0 0.0
    %4591 = vmatprep.subr.mxu0 0.0
    %4592 = vmatpush1.xpose.msra.mxu0 0.0
    %4593 = vmatprep.subr.mxu0 0.0
    %4594 = vmatpush1.xpose.msra.mxu0 0.0
    %4595 = vmatprep.subr.mxu0 0.0
    %4596 = vmatpush1.xpose.msra.mxu0 %v4565
    %4597 = vmatprep.subr.mxu0 0.0
    %4598 = vmatpush1.xpose.msra.mxu0 %v4563
    %4599 = vmatprep.subr.mxu0 0.0
    %4600 = vmatpush2.xpose.msra.mxu0 0.0
    %4601 = vmatprep.subr.mxu0 0.0
    %4602 = vmatpush2.xpose.msra.mxu0 0.0
    %4603 = vmatprep.subr.mxu0 0.0
    %4604 = vmatpush2.xpose.msra.mxu0 0.0
    %4605 = vmatprep.subr.mxu0 0.0
    %4606 = vmatpush2.xpose.msra.mxu0 0.0
    %4607 = vmatprep.subr.mxu0 0.0
    %4608 = vmatpush2.xpose.msra.mxu0 0.0
    %4609 = vmatprep.subr.mxu0 0.0
    %4610 = vmatpush2.xpose.msra.mxu0 0.0
    %4611 = vmatprep.subr.mxu0 0.0
    %4612 = vmatpush2.xpose.msra.mxu0 0.0
    %4613 = vmatprep.subr.mxu0 0.0
    %4614 = vmatpush2.xpose.msra.mxu0 0.0
    %4615 = vmatprep.subr.mxu0 0.0
    %4616 = vmatpush2.xpose.msra.mxu0 0.0
    %4617 = vmatprep.subr.mxu0 0.0
    %4618 = vmatpush2.xpose.msra.mxu0 0.0
    %4619 = vmatprep.subr.mxu0 0.0
    %4620 = vmatpush2.xpose.msra.mxu0 0.0
    %4621 = vmatprep.subr.mxu0 0.0
    %4622 = vmatpush2.xpose.msra.mxu0 0.0
    %4623 = vmatprep.subr.mxu0 0.0
    %4624 = vmatpush2.xpose.msra.mxu0 0.0
    %4625 = vmatprep.subr.mxu0 0.0
    %4626 = vmatpush2.xpose.msra.mxu0 0.0
    %4627 = vmatprep.subr.mxu0 0.0
    %4628 = vmatpush2.xpose.msra.mxu0 0.0
    %4629 = vmatprep.subr.mxu0 0.0
    %4630 = vmatpush2.xpose.msra.mxu0 0.0
    %4631 = vmatprep.mubr.f32.mxu0 0.0
    %4632 = vmatmul.mubr.f32.gmra.mxu0 %v4559
    %v4633 = vpop.f32.mrf.mxu0
    %v4634 = vadd.f32 0.0, %v4633
    %v4635 = vpop.f32.mrf.mxu0
    %4636 = vmatprep.mubr.f32.mxu0 0.0
    %4637 = vmatmul.mubr.f32.gmra.mxu0 %v4561
    %v4638 = vpop.f32.mrf.mxu0
    %v4639 = vadd.f32 0.0, %v4638
    %v4640 = vpop.f32.mrf.mxu0
    %4641 = vdwg.mxu0
    %v4642 = vmul.f32 %v4634, 0.2581989
    %v4643 = vmul.f32 %v4639, 0.2581989
    %v4644 = vsel %vm350, %v4642, -inf
    %4645 = vmax.xlane.f32.xlu0 %v4644
    %v4646 = vpop.xlane.xlu0 %4645
    %v4647 = vsel %vm350, %v4643, -inf
    %4648 = vmax.xlane.f32.xlu0 %v4647
    %v4649 = vpop.xlane.xlu0 %4648
    %v4650 = vsub.f32 %v4642, %v4646
    %v4651 = vsub.f32 %v4643, %v4649
    %v4652 = vmul.f32 %v4650, 1.442695
    %v4653 = vpow.pop %v4652
    %v4654 = vmul.f32 %v4651, 1.442695
    %v4655 = vpow.pop %v4654
    %v4656 = vsel %vm350, %v4653, 0.0
    %4657 = vadd.xlane.f32.xlu0 %v4656
    %v4658 = vpop.xlane.xlu0 %4657
    %v4659 = vsel %vm350, %v4655, 0.0
    %4660 = vadd.xlane.f32.xlu0 %v4659
    %v4661 = vpop.xlane.xlu0 %4660
    %v4662 = vrcp.pop %v4658
    %v4663 = vrcp.pop %v4661
    %v4664 = vmul.f32 %v4653, %v4662
    %v4665 = vmul.f32 %v4655, %v4663
    %4666 = vrot.lane.b32.xlu0 %v341, 16
    %v4667 = vpop.permute.xlu0 %4666
    %4668 = vrot.lane.b32.xlu0 %v346, 16
    %v4669 = vpop.permute.xlu0 %4668
    %v4673 = vsel %vm350, %v4664, 0
    %v4676 = vsel %vm350, %v4665, 0
    %4678 = vmatprep.subr.mxu0 0.0
    %4679 = vmatpush1.msra.mxu0 0.0
    %4680 = vmatprep.subr.mxu0 0.0
    %4681 = vmatpush1.msra.mxu0 0.0
    %4682 = vmatprep.subr.mxu0 0.0
    %4683 = vmatpush1.msra.mxu0 0.0
    %4684 = vmatprep.subr.mxu0 0.0
    %4685 = vmatpush1.msra.mxu0 0.0
    %4686 = vmatprep.subr.mxu0 0.0
    %4687 = vmatpush1.msra.mxu0 0.0
    %4688 = vmatprep.subr.mxu0 0.0
    %4689 = vmatpush1.msra.mxu0 0.0
    %4690 = vmatprep.subr.mxu0 0.0
    %4691 = vmatpush1.msra.mxu0 0.0
    %4692 = vmatprep.subr.mxu0 0.0
    %4693 = vmatpush1.msra.mxu0 0.0
    %4694 = vmatprep.subr.mxu0 0.0
    %4695 = vmatpush1.msra.mxu0 0.0
    %4696 = vmatprep.subr.mxu0 0.0
    %4697 = vmatpush1.msra.mxu0 0.0
    %4698 = vmatprep.subr.mxu0 0.0
    %4699 = vmatpush1.msra.mxu0 0.0
    %4700 = vmatprep.subr.mxu0 0.0
    %4701 = vmatpush1.msra.mxu0 0.0
    %4702 = vmatprep.subr.mxu0 0.0
    %4703 = vmatpush1.msra.mxu0 0.0
    %4704 = vmatprep.subr.mxu0 0.0
    %4705 = vmatpush1.msra.mxu0 0.0
    %4706 = vmatprep.subr.mxu0 0.0
    %4707 = vmatpush1.msra.mxu0 %v4669
    %4708 = vmatprep.subr.mxu0 0.0
    %4709 = vmatpush1.msra.mxu0 %v4667
    %4710 = vmatprep.subr.mxu0 0.0
    %4711 = vmatpush2.msra.mxu0 0.0
    %4712 = vmatprep.subr.mxu0 0.0
    %4713 = vmatpush2.msra.mxu0 0.0
    %4714 = vmatprep.subr.mxu0 0.0
    %4715 = vmatpush2.msra.mxu0 0.0
    %4716 = vmatprep.subr.mxu0 0.0
    %4717 = vmatpush2.msra.mxu0 0.0
    %4718 = vmatprep.subr.mxu0 0.0
    %4719 = vmatpush2.msra.mxu0 0.0
    %4720 = vmatprep.subr.mxu0 0.0
    %4721 = vmatpush2.msra.mxu0 0.0
    %4722 = vmatprep.subr.mxu0 0.0
    %4723 = vmatpush2.msra.mxu0 0.0
    %4724 = vmatprep.subr.mxu0 0.0
    %4725 = vmatpush2.msra.mxu0 0.0
    %4726 = vmatprep.subr.mxu0 0.0
    %4727 = vmatpush2.msra.mxu0 0.0
    %4728 = vmatprep.subr.mxu0 0.0
    %4729 = vmatpush2.msra.mxu0 0.0
    %4730 = vmatprep.subr.mxu0 0.0
    %4731 = vmatpush2.msra.mxu0 0.0
    %4732 = vmatprep.subr.mxu0 0.0
    %4733 = vmatpush2.msra.mxu0 0.0
    %4734 = vmatprep.subr.mxu0 0.0
    %4735 = vmatpush2.msra.mxu0 0.0
    %4736 = vmatprep.subr.mxu0 0.0
    %4737 = vmatpush2.msra.mxu0 0.0
    %4738 = vmatprep.subr.mxu0 0.0
    %4739 = vmatpush2.msra.mxu0 0.0
    %4740 = vmatprep.subr.mxu0 0.0
    %4741 = vmatpush2.msra.mxu0 0.0
    %4742 = vmatprep.mubr.f32.mxu0 0.0
    %4743 = vmatmul.mubr.f32.gmra.mxu0 %v4673
    %v4744 = vpop.f32.mrf.mxu0
    %v4745 = vadd.f32 0.0, %v4744
    %v4746 = vpop.f32.mrf.mxu0
    %4747 = vmatprep.mubr.f32.mxu0 0.0
    %4748 = vmatmul.mubr.f32.gmra.mxu0 %v4676
    %v4749 = vpop.f32.mrf.mxu0
    %v4750 = vadd.f32 0.0, %v4749
    %v4751 = vpop.f32.mrf.mxu0
    %4752 = vdwg.mxu0
    %v4754 = vsel %vm350, %v4745, 0
    %v4757 = vsel %vm350, %v4750, 0
    %4759 = vmatprep.subr.mxu0 0.0
    %4760 = vmatpush1.xpose.msra.mxu0 0.0
    %4761 = vmatprep.subr.mxu0 0.0
    %4762 = vmatpush1.xpose.msra.mxu0 0.0
    %4763 = vmatprep.subr.mxu0 0.0
    %4764 = vmatpush1.xpose.msra.mxu0 0.0
    %4765 = vmatprep.subr.mxu0 0.0
    %4766 = vmatpush1.xpose.msra.mxu0 0.0
    %4767 = vmatprep.subr.mxu0 0.0
    %4768 = vmatpush1.xpose.msra.mxu0 0.0
    %4769 = vmatprep.subr.mxu0 0.0
    %4770 = vmatpush1.xpose.msra.mxu0 0.0
    %4771 = vmatprep.subr.mxu0 0.0
    %4772 = vmatpush1.xpose.msra.mxu0 0.0
    %4773 = vmatprep.subr.mxu0 0.0
    %4774 = vmatpush1.xpose.msra.mxu0 0.0
    %4775 = vmatprep.subr.mxu0 0.0
    %4776 = vmatpush1.xpose.msra.mxu0 0.0
    %4777 = vmatprep.subr.mxu0 0.0
    %4778 = vmatpush1.xpose.msra.mxu0 0.0
    %4779 = vmatprep.subr.mxu0 0.0
    %4780 = vmatpush1.xpose.msra.mxu0 0.0
    %4781 = vmatprep.subr.mxu0 0.0
    %4782 = vmatpush1.xpose.msra.mxu0 0.0
    %4783 = vmatprep.subr.mxu0 0.0
    %4784 = vmatpush1.xpose.msra.mxu0 0.0
    %4785 = vmatprep.subr.mxu0 0.0
    %4786 = vmatpush1.xpose.msra.mxu0 0.0
    %4787 = vmatprep.subr.mxu0 0.0
    %4788 = vmatpush1.xpose.msra.mxu0 %v4757
    %4789 = vmatprep.subr.mxu0 0.0
    %4790 = vmatpush1.xpose.msra.mxu0 %v4754
    %4791 = vmatprep.subr.mxu0 0.0
    %4792 = vmatpush2.xpose.msra.mxu0 0.0
    %4793 = vmatprep.subr.mxu0 0.0
    %4794 = vmatpush2.xpose.msra.mxu0 0.0
    %4795 = vmatprep.subr.mxu0 0.0
    %4796 = vmatpush2.xpose.msra.mxu0 0.0
    %4797 = vmatprep.subr.mxu0 0.0
    %4798 = vmatpush2.xpose.msra.mxu0 0.0
    %4799 = vmatprep.subr.mxu0 0.0
    %4800 = vmatpush2.xpose.msra.mxu0 0.0
    %4801 = vmatprep.subr.mxu0 0.0
    %4802 = vmatpush2.xpose.msra.mxu0 0.0
    %4803 = vmatprep.subr.mxu0 0.0
    %4804 = vmatpush2.xpose.msra.mxu0 0.0
    %4805 = vmatprep.subr.mxu0 0.0
    %4806 = vmatpush2.xpose.msra.mxu0 0.0
    %4807 = vmatprep.subr.mxu0 0.0
    %4808 = vmatpush2.xpose.msra.mxu0 0.0
    %4809 = vmatprep.subr.mxu0 0.0
    %4810 = vmatpush2.xpose.msra.mxu0 0.0
    %4811 = vmatprep.subr.mxu0 0.0
    %4812 = vmatpush2.xpose.msra.mxu0 0.0
    %4813 = vmatprep.subr.mxu0 0.0
    %4814 = vmatpush2.xpose.msra.mxu0 0.0
    %4815 = vmatprep.subr.mxu0 0.0
    %4816 = vmatpush2.xpose.msra.mxu0 0.0
    %4817 = vmatprep.subr.mxu0 0.0
    %4818 = vmatpush2.xpose.msra.mxu0 0.0
    %4819 = vmatprep.subr.mxu0 0.0
    %4820 = vmatpush2.xpose.msra.mxu0 0.0
    %4821 = vmatprep.subr.mxu0 0.0
    %4822 = vmatpush2.xpose.msra.mxu0 0.0
    %4823 = vmatprep.mubr.f32.mxu0 0.0
    %4824 = vmatmul.mubr.f32.gmra.mxu0 %v2529
    %v4825 = vpop.f32.mrf.mxu0
    %v4826 = vadd.f32 0.0, %v4825
    %v4827 = vpop.f32.mrf.mxu0
    %4828 = vdwg.mxu0
    %v4829 = vadd.f32 %v4550, %v4826
    %v4831 = vrot.slane %v4829, 7
    %vm4833 = vcmask 1040384
    %v4834 = vsel %vm4833, %v2607, %v4831
    %v4835 = vld [vmem:[#allocation2] sm:$0x1]
    %v4837 = vlaneseq
    %v4838 = vshrl.u32 %v4837, 7
    %v4839 = vsub.s32 0, %v4838
    %v4840 = vrot.slane %v4835, %v4839
    %4841 = vset.pattern.permute.xlu0 0
    %4842 = vperm.xlu0 %4841, %v4840
    %v4843 = vpop.permute.xlu0 %4842
    %v4845 = vadd.f32 %v4834, %v4843
    %v4846 = vld [vmem:[%s7] sm:$0xff]
    %v4847 = vld [vmem:[%s7 + $0x8] sm:$0xff]
    %v4849 = vsel %vm350, %v4845, 0
    %4851 = vmatprep.subr.mxu0 0.0
    %4852 = vmatpush1.msra.mxu0 0.0
    %4853 = vmatprep.subr.mxu0 0.0
    %4854 = vmatpush1.msra.mxu0 0.0
    %4855 = vmatprep.subr.mxu0 0.0
    %4856 = vmatpush1.msra.mxu0 0.0
    %4857 = vmatprep.subr.mxu0 0.0
    %4858 = vmatpush1.msra.mxu0 0.0
    %4859 = vmatprep.subr.mxu0 0.0
    %4860 = vmatpush1.msra.mxu0 0.0
    %4861 = vmatprep.subr.mxu0 0.0
    %4862 = vmatpush1.msra.mxu0 0.0
    %4863 = vmatprep.subr.mxu0 0.0
    %4864 = vmatpush1.msra.mxu0 0.0
    %4865 = vmatprep.subr.mxu0 0.0
    %4866 = vmatpush1.msra.mxu0 0.0
    %4867 = vmatprep.subr.mxu0 0.0
    %4868 = vmatpush1.msra.mxu0 0.0
    %4869 = vmatprep.subr.mxu0 0.0
    %4870 = vmatpush1.msra.mxu0 0.0
    %4871 = vmatprep.subr.mxu0 0.0
    %4872 = vmatpush1.msra.mxu0 0.0
    %4873 = vmatprep.subr.mxu0 0.0
    %4874 = vmatpush1.msra.mxu0 0.0
    %4875 = vmatprep.subr.mxu0 0.0
    %4876 = vmatpush1.msra.mxu0 0.0
    %4877 = vmatprep.subr.mxu0 0.0
    %4878 = vmatpush1.msra.mxu0 0.0
    %4879 = vmatprep.subr.mxu0 0.0
    %4880 = vmatpush1.msra.mxu0 %v4847
    %4881 = vmatprep.subr.mxu0 0.0
    %4882 = vmatpush1.msra.mxu0 %v4846
    %4883 = vmatprep.subr.mxu0 0.0
    %4884 = vmatpush2.msra.mxu0 0.0
    %4885 = vmatprep.subr.mxu0 0.0
    %4886 = vmatpush2.msra.mxu0 0.0
    %4887 = vmatprep.subr.mxu0 0.0
    %4888 = vmatpush2.msra.mxu0 0.0
    %4889 = vmatprep.subr.mxu0 0.0
    %4890 = vmatpush2.msra.mxu0 0.0
    %4891 = vmatprep.subr.mxu0 0.0
    %4892 = vmatpush2.msra.mxu0 0.0
    %4893 = vmatprep.subr.mxu0 0.0
    %4894 = vmatpush2.msra.mxu0 0.0
    %4895 = vmatprep.subr.mxu0 0.0
    %4896 = vmatpush2.msra.mxu0 0.0
    %4897 = vmatprep.subr.mxu0 0.0
    %4898 = vmatpush2.msra.mxu0 0.0
    %4899 = vmatprep.subr.mxu0 0.0
    %4900 = vmatpush2.msra.mxu0 0.0
    %4901 = vmatprep.subr.mxu0 0.0
    %4902 = vmatpush2.msra.mxu0 0.0
    %4903 = vmatprep.subr.mxu0 0.0
    %4904 = vmatpush2.msra.mxu0 0.0
    %4905 = vmatprep.subr.mxu0 0.0
    %4906 = vmatpush2.msra.mxu0 0.0
    %4907 = vmatprep.subr.mxu0 0.0
    %4908 = vmatpush2.msra.mxu0 0.0
    %4909 = vmatprep.subr.mxu0 0.0
    %4910 = vmatpush2.msra.mxu0 0.0
    %4911 = vmatprep.subr.mxu0 0.0
    %4912 = vmatpush2.msra.mxu0 0.0
    %4913 = vmatprep.subr.mxu0 0.0
    %4914 = vmatpush2.msra.mxu0 0.0
    %4915 = vmatprep.mubr.f32.mxu0 0.0
    %4916 = vmatmul.mubr.f32.gmra.mxu0 %v4849
    %v4917 = vpop.f32.mrf.mxu0
    %v4918 = vadd.f32 0.0, %v4917
    %v4919 = vpop.f32.mrf.mxu0
    %4920 = vdwg.mxu0
    %vm4921 = vcmask 254976
    %v4922 = vsel %vm4921, %v4918, 0.0
    %v4923 = vrot.slane %v4922, 4
    %v4924 = vadd.f32 %v4922, %v4923
    %v4925 = vrot.slane %v4924, 2
    %v4926 = vadd.f32 %v4924, %v4925
    %v4927 = vrot.slane %v4926, 1
    %v4928 = vadd.f32 %v4926, %v4927
    %v4929 = vrcp.pop 2.0
    %v4930 = vmul.f32 %v4928, %v4929
    %v4931 = vsub.f32 %v4918, %v4930
    %v4932 = vmul.f32 %v4931, %v4931
    %v4933 = vsel %vm4921, %v4932, 0.0
    %v4934 = vrot.slane %v4933, 4
    %v4935 = vadd.f32 %v4933, %v4934
    %v4936 = vrot.slane %v4935, 2
    %v4937 = vadd.f32 %v4935, %v4936
    %v4938 = vrot.slane %v4937, 1
    %v4939 = vadd.f32 %v4937, %v4938
    %v4940 = vmul.f32 %v4939, %v4929
    %v4941 = vld [vmem:[%s8] sm:$0x1]
    %v4943 = vlaneseq
    %v4944 = vshrl.u32 %v4943, 7
    %v4945 = vsub.s32 0, %v4944
    %v4946 = vrot.slane %v4941, %v4945
    %v4948 = vmul.f32 %v4946, %v4931
    %v4949 = vadd.f32 %v4940, 1e-05
    %v4950 = vrsqrt.pop %v4949
    %v4951 = vmul.f32 %v4948, %v4950
    %v4952 = vld [vmem:[%s9] sm:$0x1]
    %v4954 = vlaneseq
    %v4955 = vshrl.u32 %v4954, 7
    %v4956 = vsub.s32 0, %v4955
    %v4957 = vrot.slane %v4952, %v4956
    %v4959 = vadd.f32 %v4951, %v4957
    %v4960 = vmax.f32 %v4959, 0.0
    %v4961 = vld [vmem:[%s10] sm:$0xff]
    %v4962 = vld [vmem:[%s10 + $0x8] sm:$0xff]
    %v4963 = vld [vmem:[%s10 + $0x10] sm:$0xff]
    %v4964 = vld [vmem:[%s10 + $0x18] sm:$0xff]
    %vm4965 = vcmask 261120
    %v4967 = vsel %vm4965, %v4960, 0
    %4969 = vmatprep.subr.mxu0 0.0
    %4970 = vmatpush1.msra.mxu0 0.0
    %4971 = vmatprep.subr.mxu0 0.0
    %4972 = vmatpush1.msra.mxu0 0.0
    %4973 = vmatprep.subr.mxu0 0.0
    %4974 = vmatpush1.msra.mxu0 0.0
    %4975 = vmatprep.subr.mxu0 0.0
    %4976 = vmatpush1.msra.mxu0 0.0
    %4977 = vmatprep.subr.mxu0 0.0
    %4978 = vmatpush1.msra.mxu0 0.0
    %4979 = vmatprep.subr.mxu0 0.0
    %4980 = vmatpush1.msra.mxu0 0.0
    %4981 = vmatprep.subr.mxu0 0.0
    %4982 = vmatpush1.msra.mxu0 0.0
    %4983 = vmatprep.subr.mxu0 0.0
    %4984 = vmatpush1.msra.mxu0 0.0
    %4985 = vmatprep.subr.mxu0 0.0
    %4986 = vmatpush1.msra.mxu0 0.0
    %4987 = vmatprep.subr.mxu0 0.0
    %4988 = vmatpush1.msra.mxu0 0.0
    %4989 = vmatprep.subr.mxu0 0.0
    %4990 = vmatpush1.msra.mxu0 0.0
    %4991 = vmatprep.subr.mxu0 0.0
    %4992 = vmatpush1.msra.mxu0 0.0
    %4993 = vmatprep.subr.mxu0 0.0
    %4994 = vmatpush1.msra.mxu0 %v4964
    %4995 = vmatprep.subr.mxu0 0.0
    %4996 = vmatpush1.msra.mxu0 %v4963
    %4997 = vmatprep.subr.mxu0 0.0
    %4998 = vmatpush1.msra.mxu0 %v4962
    %4999 = vmatprep.subr.mxu0 0.0
    %5000 = vmatpush1.msra.mxu0 %v4961
    %5001 = vmatprep.subr.mxu0 0.0
    %5002 = vmatpush2.msra.mxu0 0.0
    %5003 = vmatprep.subr.mxu0 0.0
    %5004 = vmatpush2.msra.mxu0 0.0
    %5005 = vmatprep.subr.mxu0 0.0
    %5006 = vmatpush2.msra.mxu0 0.0
    %5007 = vmatprep.subr.mxu0 0.0
    %5008 = vmatpush2.msra.mxu0 0.0
    %5009 = vmatprep.subr.mxu0 0.0
    %5010 = vmatpush2.msra.mxu0 0.0
    %5011 = vmatprep.subr.mxu0 0.0
    %5012 = vmatpush2.msra.mxu0 0.0
    %5013 = vmatprep.subr.mxu0 0.0
    %5014 = vmatpush2.msra.mxu0 0.0
    %5015 = vmatprep.subr.mxu0 0.0
    %5016 = vmatpush2.msra.mxu0 0.0
    %5017 = vmatprep.subr.mxu0 0.0
    %5018 = vmatpush2.msra.mxu0 0.0
    %5019 = vmatprep.subr.mxu0 0.0
    %5020 = vmatpush2.msra.mxu0 0.0
    %5021 = vmatprep.subr.mxu0 0.0
    %5022 = vmatpush2.msra.mxu0 0.0
    %5023 = vmatprep.subr.mxu0 0.0
    %5024 = vmatpush2.msra.mxu0 0.0
    %5025 = vmatprep.subr.mxu0 0.0
    %5026 = vmatpush2.msra.mxu0 0.0
    %5027 = vmatprep.subr.mxu0 0.0
    %5028 = vmatpush2.msra.mxu0 0.0
    %5029 = vmatprep.subr.mxu0 0.0
    %5030 = vmatpush2.msra.mxu0 0.0
    %5031 = vmatprep.subr.mxu0 0.0
    %5032 = vmatpush2.msra.mxu0 0.0
    %5033 = vmatprep.mubr.f32.mxu0 0.0
    %5034 = vmatmul.mubr.f32.gmra.mxu0 %v4967
    %v5035 = vpop.f32.mrf.mxu0
    %v5036 = vadd.f32 0.0, %v5035
    %v5037 = vpop.f32.mrf.mxu0
    %5038 = vdwg.mxu0
    %v5039 = vmax.f32 %v5036, 0.0
    %v5040 = vsel %vm4921, %v5039, 0.0
    %5041 = vadd.xlane.f32.xlu0 %v5040
    %v5042 = vpop.xlane.xlu0 %5041
    %v5043 = vrcp.pop 32.0
    %v5044 = vmul.f32 %v5042, %v5043
    %v5045 = vsub.f32 %v5039, %v5044
    %v5046 = vmul.f32 %v5045, %v5045
    %v5047 = vsel %vm4921, %v5046, 0.0
    %5048 = vadd.xlane.f32.xlu0 %v5047
    %v5049 = vpop.xlane.xlu0 %5048
    %v5050 = vmul.f32 %v5049, %v5043
    %v5051 = vld [vmem:[%s11] sm:$0x1]
    %v5053 = vlaneseq
    %v5054 = vshrl.u32 %v5053, 7
    %v5055 = vsub.s32 0, %v5054
    %v5056 = vrot.slane %v5051, %v5055
    %v5058 = vmul.f32 %v5056, %v5045
    %v5059 = vadd.f32 %v5050, 1e-05
    %v5060 = vrsqrt.pop %v5059
    %v5061 = vmul.f32 %v5058, %v5060
    %v5062 = vld [vmem:[%s12] sm:$0x1]
    %v5064 = vlaneseq
    %v5065 = vshrl.u32 %v5064, 7
    %v5066 = vsub.s32 0, %v5065
    %v5067 = vrot.slane %v5062, %v5066
    %v5069 = vadd.f32 %v5061, %v5067
    %v5070 = vmax.f32 %v5069, 0.0
    %v5071 = vld [vmem:[%s13] sm:$0xff]
    %v5072 = vld [vmem:[%s13 + $0x8] sm:$0xff]
    %v5073 = vld [vmem:[%s13 + $0x10] sm:$0xff]
    %v5074 = vld [vmem:[%s13 + $0x18] sm:$0xff]
    %v5076 = vsel %vm4965, %v5070, 0
    %5078 = vmatprep.subr.mxu0 0.0
    %5079 = vmatpush1.msra.mxu0 0.0
    %5080 = vmatprep.subr.mxu0 0.0
    %5081 = vmatpush1.msra.mxu0 0.0
    %5082 = vmatprep.subr.mxu0 0.0
    %5083 = vmatpush1.msra.mxu0 0.0
    %5084 = vmatprep.subr.mxu0 0.0
    %5085 = vmatpush1.msra.mxu0 0.0
    %5086 = vmatprep.subr.mxu0 0.0
    %5087 = vmatpush1.msra.mxu0 0.0
    %5088 = vmatprep.subr.mxu0 0.0
    %5089 = vmatpush1.msra.mxu0 0.0
    %5090 = vmatprep.subr.mxu0 0.0
    %5091 = vmatpush1.msra.mxu0 0.0
    %5092 = vmatprep.subr.mxu0 0.0
    %5093 = vmatpush1.msra.mxu0 0.0
    %5094 = vmatprep.subr.mxu0 0.0
    %5095 = vmatpush1.msra.mxu0 0.0
    %5096 = vmatprep.subr.mxu0 0.0
    %5097 = vmatpush1.msra.mxu0 0.0
    %5098 = vmatprep.subr.mxu0 0.0
    %5099 = vmatpush1.msra.mxu0 0.0
    %5100 = vmatprep.subr.mxu0 0.0
    %5101 = vmatpush1.msra.mxu0 0.0
    %5102 = vmatprep.subr.mxu0 0.0
    %5103 = vmatpush1.msra.mxu0 %v5074
    %5104 = vmatprep.subr.mxu0 0.0
    %5105 = vmatpush1.msra.mxu0 %v5073
    %5106 = vmatprep.subr.mxu0 0.0
    %5107 = vmatpush1.msra.mxu0 %v5072
    %5108 = vmatprep.subr.mxu0 0.0
    %5109 = vmatpush1.msra.mxu0 %v5071
    %5110 = vmatprep.subr.mxu0 0.0
    %5111 = vmatpush2.msra.mxu0 0.0
    %5112 = vmatprep.subr.mxu0 0.0
    %5113 = vmatpush2.msra.mxu0 0.0
    %5114 = vmatprep.subr.mxu0 0.0
    %5115 = vmatpush2.msra.mxu0 0.0
    %5116 = vmatprep.subr.mxu0 0.0
    %5117 = vmatpush2.msra.mxu0 0.0
    %5118 = vmatprep.subr.mxu0 0.0
    %5119 = vmatpush2.msra.mxu0 0.0
    %5120 = vmatprep.subr.mxu0 0.0
    %5121 = vmatpush2.msra.mxu0 0.0
    %5122 = vmatprep.subr.mxu0 0.0
    %5123 = vmatpush2.msra.mxu0 0.0
    %5124 = vmatprep.subr.mxu0 0.0
    %5125 = vmatpush2.msra.mxu0 0.0
    %5126 = vmatprep.subr.mxu0 0.0
    %5127 = vmatpush2.msra.mxu0 0.0
    %5128 = vmatprep.subr.mxu0 0.0
    %5129 = vmatpush2.msra.mxu0 0.0
    %5130 = vmatprep.subr.mxu0 0.0
    %5131 = vmatpush2.msra.mxu0 0.0
    %5132 = vmatprep.subr.mxu0 0.0
    %5133 = vmatpush2.msra.mxu0 0.0
    %5134 = vmatprep.subr.mxu0 0.0
    %5135 = vmatpush2.msra.mxu0 0.0
    %5136 = vmatprep.subr.mxu0 0.0
    %5137 = vmatpush2.msra.mxu0 0.0
    %5138 = vmatprep.subr.mxu0 0.0
    %5139 = vmatpush2.msra.mxu0 0.0
    %5140 = vmatprep.subr.mxu0 0.0
    %5141 = vmatpush2.msra.mxu0 0.0
    %5142 = vmatprep.mubr.f32.mxu0 0.0
    %5143 = vmatmul.mubr.f32.gmra.mxu0 %v5076
    %v5144 = vpop.f32.mrf.mxu0
    %v5145 = vadd.f32 0.0, %v5144
    %v5146 = vpop.f32.mrf.mxu0
    %5147 = vdwg.mxu0
    %vm5148 = vcmask 58368
    %5149 = vst.msk [vmem:[#allocation6] sm:$0x3] %vm5148, %v5145
    // Predicated region
    $region62: #{my_model_forward.1} parent=1 // pred_check
      _
    $region63: #{my_model_forward.1} parent=1 // pred_check_branch
      %5151 = sbr.rel (0) target = $region65
    $region64: #{my_model_forward.1} parent=1 // pred_region
      %s5153 = ssub.s32 32, 32
      %5154 = vsyncadd [#allocation5], %s5153
      %s5156 = sshll.u32 [#allocation6], 4
      %s5157 = int_to_ptr.vmem [resolvable:$true] %s5156
      %5159 = dma.vmem_to_hbm [thread:$0]  %s5157, 32, %s14, [#allocation5]
    $region65: #{my_model_forward.1} parent=1 // pred_fallthru
      _
    // Predicated region
    $region66: #{my_model_forward.1} parent=1 // pred_check
      _
    $region67: #{my_model_forward.1} parent=1 // pred_check_branch
      %5161 = sbr.rel (0) target = $region69
    $region68: #{my_model_forward.1} parent=1 // pred_region
      %5162 = dma.done [#allocation5], 32
    $region69: #{my_model_forward.1} parent=1 // pred_fallthru
      _
    %5163 = vsyncpa [#allocation4], 1
    %5164 = vsyncpa [#allocation5], 1

</llo_original>
